<compile_context>
chip_gen: v6e
topology: v6e:2x2x1
jax: 0.10.0
libtpu: 0.0.40
codegen_flags: <defaults>
</compile_context>

<pallas_src>
import functools

import jax
import jax.numpy as jnp
from jax import lax
from jax.experimental import pallas as pl
from jax.experimental.pallas import tpu as pltpu

BIG = 1e30
_VMEM_LIMIT = 48 * 1024 * 1024   # > v5e/v6e/v7x scoped defaults, < v7x 64 MiB physical


# ------------------------- in-kernel building blocks -------------------------

def _channel_softmax(x):
    """Softmax over the channel (sublane) axis of a (C, V) tile."""
    m = jnp.max(x, axis=0, keepdims=True)
    e = jnp.exp(x - m)
    return e * (1.0 / jnp.sum(e, axis=0, keepdims=True))


def _build_tree_distances(pcol, kcol, prow, krow, d_scr):
    """Dense tree adjacency from (parent, weight) arrays, then Floyd-Warshall,
    entirely VMEM-resident (d_scr is a (V, V) scratch; never touches HBM).
    Column/row extraction uses masked reduces so no dynamic lane slicing is needed."""
    V = d_scr.shape[0]
    i_ids = lax.broadcasted_iota(jnp.int32, (V, V), 0)
    j_ids = lax.broadcasted_iota(jnp.int32, (V, V), 1)
    d_scr[...] = jnp.where(i_ids == j_ids, 0.0,
                  jnp.where(pcol == j_ids, kcol,          # edge (i, parent(i))
                   jnp.where(prow == i_ids, krow, BIG)))  # edge (parent(j), j)

    lane = lax.broadcasted_iota(jnp.int32, (1, V), 1)
    sub = lax.broadcasted_iota(jnp.int32, (V, 1), 0)

    def body(k, carry):
        d = d_scr[...]                                                        # (V, V)
        col = jnp.sum(jnp.where(lane == k, d, 0.0), axis=1, keepdims=True)    # D[:, k]
        row = jnp.sum(jnp.where(sub == k, d, 0.0), axis=0, keepdims=True)     # D[k, :]
        d_scr[...] = jnp.minimum(d, col + row)
        return carry

    lax.fori_loop(0, V, body, 0)


def _normalized_filter(feat, w_bf16):
    """AS = (feat @ W) / (1 @ W): both numerator and denominator on the MXU, bf16 feed."""
    num = jnp.dot(feat.astype(jnp.bfloat16), w_bf16, preferred_element_type=jnp.float32)
    ones = jnp.ones((1, w_bf16.shape[0]), jnp.bfloat16)
    den = jnp.dot(ones, w_bf16, preferred_element_type=jnp.float32)
    return num * pl.reciprocal(den, approx=True)          # den >= 1 (diag of D is 0)


# ----------------------------- Pallas kernels ------------------------------

def _low_tree_filter_kernel(pcol_ref, kcol_ref, prow_ref, krow_ref, preds_ref,
                            as_ref, d_scr, *, inv_sigma):
    """Fused per batch: tree distances (FW in VMEM) + softmax + low-tree filter."""
    _build_tree_distances(pcol_ref[0], kcol_ref[0], prow_ref[0], krow_ref[0], d_scr)
    prob = _channel_softmax(preds_ref[0])                  # (C, V)
    w = jnp.exp(d_scr[...] * (-inv_sigma)).astype(jnp.bfloat16)   # exp fused, never in HBM
    as_ref[0] = _normalized_filter(prob, w)


def _high_tree_loss_kernel(pcol_ref, kcol_ref, prow_ref, krow_ref, feat_ref,
                           preds_ref, roi_ref, loss_ref, n_ref, d_scr):
    """Fused per batch: tree distances + high-tree filter + masked-L1 loss reduction
    (AS2 never written to HBM; per-batch scalar outputs keep the grid 'parallel')."""
    _build_tree_distances(pcol_ref[0], kcol_ref[0], prow_ref[0], krow_ref[0], d_scr)
    w = jnp.exp(-d_scr[...]).astype(jnp.bfloat16)          # high tree: no sigma scaling
    as2 = _normalized_filter(feat_ref[0], w)               # (C, V)
    prob = _channel_softmax(preds_ref[0])                  # (C, V)
    roi = roi_ref[0]                                       # (1, V)
    loss_ref[...] = jnp.zeros_like(loss_ref) + jnp.sum(roi * jnp.abs(prob - as2))
    n_ref[...] = jnp.zeros_like(n_ref) + jnp.sum(roi)


def _masked_l1_kernel(preds_ref, as_ref, roi_ref, loss_ref, n_ref):
    """Loss-only reduction for the high_feats=None path (softmax fused)."""
    prob = _channel_softmax(preds_ref[0])
    roi = roi_ref[0]
    loss_ref[...] = jnp.zeros_like(loss_ref) + jnp.sum(roi * jnp.abs(prob - as_ref[0]))
    n_ref[...] = jnp.zeros_like(n_ref) + jnp.sum(roi)


# ----------------------------- kernel wrappers ------------------------------

def _tree_args(parent, key):
    B, V = parent.shape
    pcol = parent.reshape(B, V, 1).astype(jnp.int32)
    prow = parent.reshape(B, 1, V).astype(jnp.int32)
    kcol = key.reshape(B, V, 1).astype(jnp.float32)
    krow = key.reshape(B, 1, V).astype(jnp.float32)
    return pcol, kcol, prow, krow


def _tree_specs(V):
    return [pl.BlockSpec((1, V, 1), lambda b: (b, 0, 0)),
            pl.BlockSpec((1, V, 1), lambda b: (b, 0, 0)),
            pl.BlockSpec((1, 1, V), lambda b: (b, 0, 0)),
            pl.BlockSpec((1, 1, V), lambda b: (b, 0, 0))]


def tree_filter_low(parent, key, preds_flat, *, inv_sigma):
    """AS = normalized low-tree filter of softmax(preds); FW + exp + softmax fused in-kernel."""
    B, C, V = preds_flat.shape
    pcol, kcol, prow, krow = _tree_args(parent, key)
    kernel = functools.partial(_low_tree_filter_kernel, inv_sigma=inv_sigma)
    return pl.pallas_call(
        kernel,
        out_shape=jax.ShapeDtypeStruct((B, C, V), jnp.float32),
        grid=(B,),
        in_specs=_tree_specs(V) + [pl.BlockSpec((1, C, V), lambda b: (b, 0, 0))],
        out_specs=pl.BlockSpec((1, C, V), lambda b: (b, 0, 0)),
        scratch_shapes=[pltpu.VMEM((V, V), jnp.float32)],
        compiler_params=pltpu.CompilerParams(
            dimension_semantics=("parallel",),
            vmem_limit_bytes=_VMEM_LIMIT),
    )(pcol, kcol, prow, krow, preds_flat)


def tree_filter_high_loss(parent, key, feat, preds_flat, roi):
    """Fused high-tree filter + loss: returns (sum(roi*|prob - AS2|), sum(roi))."""
    B, C, V = feat.shape
    pcol, kcol, prow, krow = _tree_args(parent, key)
    loss, n = pl.pallas_call(
        _high_tree_loss_kernel,
        out_shape=(jax.ShapeDtypeStruct((B, 1, 1), jnp.float32),
                   jax.ShapeDtypeStruct((B, 1, 1), jnp.float32)),
        grid=(B,),
        in_specs=_tree_specs(V) + [pl.BlockSpec((1, C, V), lambda b: (b, 0, 0)),
                                   pl.BlockSpec((1, C, V), lambda b: (b, 0, 0)),
                                   pl.BlockSpec((1, 1, V), lambda b: (b, 0, 0))],
        out_specs=(pl.BlockSpec((1, 1, 1), lambda b: (b, 0, 0)),
                   pl.BlockSpec((1, 1, 1), lambda b: (b, 0, 0))),
        scratch_shapes=[pltpu.VMEM((V, V), jnp.float32)],
        compiler_params=pltpu.CompilerParams(
            dimension_semantics=("parallel",),
            vmem_limit_bytes=_VMEM_LIMIT),
    )(pcol, kcol, prow, krow, feat, preds_flat, roi)
    return jnp.sum(loss), jnp.sum(n)


def masked_l1_loss(preds_flat, AS, roi):
    """Loss-only reduction (used when high_feats is None)."""
    B, C, V = preds_flat.shape
    loss, n = pl.pallas_call(
        _masked_l1_kernel,
        out_shape=(jax.ShapeDtypeStruct((B, 1, 1), jnp.float32),
                   jax.ShapeDtypeStruct((B, 1, 1), jnp.float32)),
        grid=(B,),
        in_specs=[pl.BlockSpec((1, C, V), lambda b: (b, 0, 0)),
                  pl.BlockSpec((1, C, V), lambda b: (b, 0, 0)),
                  pl.BlockSpec((1, 1, V), lambda b: (b, 0, 0))],
        out_specs=(pl.BlockSpec((1, 1, 1), lambda b: (b, 0, 0)),
                   pl.BlockSpec((1, 1, 1), lambda b: (b, 0, 0))),
        compiler_params=pltpu.CompilerParams(
            dimension_semantics=("parallel",),
            vmem_limit_bytes=_VMEM_LIMIT),
    )(preds_flat, AS, roi)
    return jnp.sum(loss), jnp.sum(n)


# ------------------------------- JAX glue ----------------------------------

def bilinear_resize_nchw(x, out_h, out_w):
    """Matches torch.nn.functional.interpolate(mode='bilinear', align_corners=False)."""
    B, C, H, W = x.shape
    sh, sw = H / out_h, W / out_w
    sy = jnp.maximum((jnp.arange(out_h, dtype=jnp.float32) + 0.5) * sh - 0.5, 0.0)
    sx = jnp.maximum((jnp.arange(out_w, dtype=jnp.float32) + 0.5) * sw - 0.5, 0.0)
    y0 = jnp.floor(sy).astype(jnp.int32)
    x0 = jnp.floor(sx).astype(jnp.int32)
    y1 = jnp.minimum(y0 + 1, H - 1)
    x1 = jnp.minimum(x0 + 1, W - 1)
    wy1 = sy - y0.astype(jnp.float32)
    wx1 = sx - x0.astype(jnp.float32)
    wy0, wx0 = 1.0 - wy1, 1.0 - wx1

    def g(yi, xi):
        return x[:, :, yi[:, None], xi[None, :]]

    return (g(y0, x0) * (wy0[:, None] * wx0[None, :]) +
            g(y0, x1) * (wy0[:, None] * wx1[None, :]) +
            g(y1, x0) * (wy1[:, None] * wx0[None, :]) +
            g(y1, x1) * (wy1[:, None] * wx1[None, :]))


def nearest_resize_nchw(x, out_h, out_w):
    """Matches torch 'nearest' (floor index arithmetic)."""
    B, C, H, W = x.shape
    yi = jnp.minimum(jnp.arange(out_h) * H // out_h, H - 1)
    xi = jnp.minimum(jnp.arange(out_w) * W // out_w, W - 1)
    return x[:, :, yi[:, None], xi[None, :]]


def grid_edge_weights(feat):
    """Per-node 4-neighbour edge weights (squared L2 over channels); BIG where no edge."""
    B, C, H, W = feat.shape
    dh = jnp.sum((feat[:, :, :, :-1] - feat[:, :, :, 1:]) ** 2, axis=1)   # (B, H, W-1)
    dv = jnp.sum((feat[:, :, :-1, :] - feat[:, :, 1:, :]) ** 2, axis=1)   # (B, H-1, W)
    bigc = jnp.full((B, H, 1), BIG, jnp.float32)
    bigr = jnp.full((B, 1, W), BIG, jnp.float32)
    wr = jnp.concatenate([dh, bigc], axis=2).reshape(B, H * W)   # v -> v+1
    wl = jnp.concatenate([bigc, dh], axis=2).reshape(B, H * W)   # v -> v-1
    wd = jnp.concatenate([dv, bigr], axis=1).reshape(B, H * W)   # v -> v+W
    wu = jnp.concatenate([bigr, dv], axis=1).reshape(B, H * W)   # v -> v-W
    return wr, wl, wd, wu


def _prim_mst(wr, wl, wd, wu, *, W):
    """Prim's MST on the 4-connected grid using only O(V) per-node edge arrays.
    Returns (parent, key): for v != 0, the MST edge is (v, parent[v]) with weight key[v]."""
    # TODO(synk): sequential graph algorithm (original is CUDA Boruvka); no clean Pallas
    # equivalent, kept in plain JAX.
    V = wr.shape[0]
    ids = jnp.arange(V, dtype=jnp.int32)

    def neighbor_cand(u):
        return jnp.where(ids == u + 1, wr[u],
                jnp.where(ids == u - 1, wl[u],
                 jnp.where(ids == u + W, wd[u],
                  jnp.where(ids == u - W, wu[u], BIG))))

    in_tree = jnp.zeros((V,), jnp.bool_).at[0].set(True)
    key = neighbor_cand(0)
    parent = jnp.zeros((V,), jnp.int32)

    def body(_, state):
        key, parent, in_tree = state
        u = jnp.argmin(jnp.where(in_tree, BIG, key)).astype(jnp.int32)
        in_tree = in_tree.at[u].set(True)
        cand = neighbor_cand(u)
        better = (cand < key) & jnp.logical_not(in_tree)
        parent = jnp.where(better, u, parent)
        key = jnp.where(better, cand, key)
        return key, parent, in_tree

    key, parent, _ = lax.fori_loop(0, V - 1, body, (key, parent, in_tree))
    return parent, key


# ----------------------------- forward pass --------------------------------

@functools.partial(jax.jit, static_argnames=("weight", "sigma"))
def tree_energy_loss(preds, low_feats, high_feats, unlabeled_ROIs, *, weight, sigma):
    B, C, H, W = preds.shape
    V = H * W

    # no_grad block of the PyTorch module (resizes)
    low = bilinear_resize_nchw(low_feats.astype(jnp.float32), H, W)
    roi = nearest_resize_nchw(unlabeled_ROIs[:, None].astype(jnp.float32), H, W).reshape(B, 1, V)

    preds_flat = preds.reshape(B, C, V).astype(jnp.float32)

    # low-level tree: MST over the resized low-level embedding, then fused
    # (Floyd-Warshall + softmax + normalized filter) Pallas kernel
    parent_lo, key_lo = jax.vmap(functools.partial(_prim_mst, W=W))(*grid_edge_weights(low))
    AS = tree_filter_low(parent_lo, key_lo, preds_flat, inv_sigma=1.0 / sigma)

    if high_feats is not None:
        parent_hi, key_hi = jax.vmap(functools.partial(_prim_mst, W=W))(
            *grid_edge_weights(high_feats.astype(jnp.float32)))
        total, N = tree_filter_high_loss(parent_hi, key_hi, AS, preds_flat, roi)
    else:
        total, N = masked_l1_loss(preds_flat, AS, roi)

    # N is integer-valued (ROI is 0/1) so /max(N,1) matches the reference exactly and is grad-safe.
    tree_loss = total / jnp.maximum(N, 1.0)
    return weight * tree_loss


class TreeEnergyLossPallas:
    """Mirror of lib/loss/loss_helper.py::TreeEnergyLoss (deterministic synthetic config)."""

    def __init__(self, weight=0.4, sigma=0.02):
        self.weight = float(weight)
        self.sigma = float(sigma)

    def __call__(self, preds, low_feats, high_feats, unlabeled_ROIs):
        return tree_energy_loss(preds, low_feats, high_feats, unlabeled_ROIs,
                                weight=self.weight, sigma=self.sigma)


# --------------------------------- main -------------------------------------

if __name__ == "__main__":
    key = jax.random.PRNGKey(0)
    k1, k2, k3, k4 = jax.random.split(key, 4)

    B, num_classes, H, W = 2, 4, 16, 16
    preds = jax.random.normal(k1, (B, num_classes, H, W), jnp.float32)
    low_feats = 0.1 * jax.random.normal(k2, (B, 3, 8, 8), jnp.float32)     # upsampled to (H, W)
    high_feats = 0.1 * jax.random.normal(k3, (B, 8, H, W), jnp.float32)    # already at (H, W)
    unlabeled_ROIs = (jax.random.uniform(k4, (B, 8, 8)) > 0.5).astype(jnp.float32)

    loss_mod = TreeEnergyLossPallas(weight=0.4, sigma=0.02)

    loss = loss_mod(preds, low_feats, high_feats, unlabeled_ROIs)
    jax.block_until_ready(loss)
    assert jnp.isfinite(loss)

    loss_no_high = loss_mod(preds, low_feats, None, unlabeled_ROIs)        # high_feats=None path
    jax.block_until_ready(loss_no_high)
    assert jnp.isfinite(loss_no_high)

    print("KERNEL_OK")
</pallas_src>

<mosaic_0001>
module attributes {stable_mosaic.version = 11 : i64} {
  func.func @_low_tree_filter_kernel(%arg0: i32, %arg1: memref<1x256x1xi32, #tpu.memory_space<vmem>>, %arg2: memref<1x256x1xf32, #tpu.memory_space<vmem>>, %arg3: memref<1x1x256xi32, #tpu.memory_space<vmem>>, %arg4: memref<1x1x256xf32, #tpu.memory_space<vmem>>, %arg5: memref<1x4x256xf32, #tpu.memory_space<vmem>>, %arg6: memref<1x4x256xf32, #tpu.memory_space<vmem>>, %arg7: memref<256x256xf32, #tpu.memory_space<vmem>>) attributes {dimension_semantics = [#tpu.dimension_semantics<parallel>], iteration_bounds = array<i64: 2>, scalar_prefetch = 0 : i64, scratch_operands = 1 : i64, tpu.core_type = #tpu.core_type<tc>, window_params = [{transform_indices = @transform_0, window_bounds = array<i64: 1, 256, 1>}, {transform_indices = @transform_1, window_bounds = array<i64: 1, 256, 1>}, {transform_indices = @transform_2, window_bounds = array<i64: 1, 1, 256>}, {transform_indices = @transform_3, window_bounds = array<i64: 1, 1, 256>}, {transform_indices = @transform_4, window_bounds = array<i64: 1, 4, 256>}, {transform_indices = @transform_5, window_bounds = array<i64: 1, 4, 256>}]} {
    %c0 = arith.constant 0 : index
    %c0_0 = arith.constant 0 : index
    %c0_1 = arith.constant 0 : index
    %0 = vector.load %arg1[%c0, %c0_0, %c0_1] : memref<1x256x1xi32, #tpu.memory_space<vmem>>, vector<1x256x1xi32>
    %1 = vector.shape_cast %0 : vector<1x256x1xi32> to vector<256x1xi32>
    %c0_2 = arith.constant 0 : index
    %c0_3 = arith.constant 0 : index
    %c0_4 = arith.constant 0 : index
    %2 = vector.load %arg2[%c0_2, %c0_3, %c0_4] : memref<1x256x1xf32, #tpu.memory_space<vmem>>, vector<1x256x1xf32>
    %3 = vector.shape_cast %2 : vector<1x256x1xf32> to vector<256x1xf32>
    %c0_5 = arith.constant 0 : index
    %c0_6 = arith.constant 0 : index
    %c0_7 = arith.constant 0 : index
    %4 = vector.load %arg3[%c0_5, %c0_6, %c0_7] : memref<1x1x256xi32, #tpu.memory_space<vmem>>, vector<1x1x256xi32>
    %5 = vector.shape_cast %4 : vector<1x1x256xi32> to vector<1x256xi32>
    %c0_8 = arith.constant 0 : index
    %c0_9 = arith.constant 0 : index
    %c0_10 = arith.constant 0 : index
    %6 = vector.load %arg4[%c0_8, %c0_9, %c0_10] : memref<1x1x256xf32, #tpu.memory_space<vmem>>, vector<1x1x256xf32>
    %7 = vector.shape_cast %6 : vector<1x1x256xf32> to vector<1x256xf32>
    %8 = tpu.iota {dimensions = array<i32: 0>} : vector<256x256xi32>
    %9 = tpu.iota {dimensions = array<i32: 1>} : vector<256x256xi32>
    %10 = arith.cmpi eq, %8, %9 : vector<256x256xi32>
    %11 = vector.broadcast %1 : vector<256x1xi32> to vector<256x256xi32>
    %12 = arith.cmpi eq, %11, %9 : vector<256x256xi32>
    %13 = vector.broadcast %5 : vector<1x256xi32> to vector<256x256xi32>
    %14 = arith.cmpi eq, %13, %8 : vector<256x256xi32>
    %cst = arith.constant 1.000000e+30 : f32
    %15 = vector.shape_cast %7 : vector<1x256xf32> to vector<1x256xf32>
    %16 = vector.broadcast %15 : vector<1x256xf32> to vector<256x256xf32>
    %17 = vector.broadcast %cst : f32 to vector<256x256xf32>
    %18 = arith.select %14, %16, %17 : vector<256x256xi1>, vector<256x256xf32>
    %19 = vector.shape_cast %3 : vector<256x1xf32> to vector<256x1xf32>
    %20 = vector.broadcast %19 : vector<256x1xf32> to vector<256x256xf32>
    %21 = arith.select %12, %20, %18 : vector<256x256xi1>, vector<256x256xf32>
    %cst_11 = arith.constant 0.000000e+00 : f32
    %22 = vector.broadcast %cst_11 : f32 to vector<256x256xf32>
    %23 = arith.select %10, %22, %21 : vector<256x256xi1>, vector<256x256xf32>
    %c0_12 = arith.constant 0 : index
    %c0_13 = arith.constant 0 : index
    %24 = vector.load %arg7[%c0_12, %c0_13] : memref<256x256xf32, #tpu.memory_space<vmem>>, vector<256x256xf32>
    tpu.vector_store %arg7[%c0_12, %c0_13], %23 {strides = array<i32>} : memref<256x256xf32, #tpu.memory_space<vmem>>, vector<256x256xf32>,
    %25 = tpu.iota {dimensions = array<i32: 1>} : vector<1x256xi32>
    %26 = tpu.iota {dimensions = array<i32: 0>} : vector<256x1xi32>
    %c0_i32 = arith.constant 0 : i32
    %c256_i32 = arith.constant 256 : i32
    %27 = arith.addi %c0_i32, %c256_i32 : i32
    %c1_i32 = arith.constant 1 : i32
    scf.for %arg8 = %c0_i32 to %27 step %c1_i32  : i32 {
      %c0_30 = arith.constant 0 : index
      %c0_31 = arith.constant 0 : index
      %56 = vector.load %arg7[%c0_30, %c0_31] : memref<256x256xf32, #tpu.memory_space<vmem>>, vector<256x256xf32>
      %57 = vector.broadcast %arg8 : i32 to vector<1x256xi32>
      %58 = arith.cmpi eq, %25, %57 : vector<1x256xi32>
      %cst_32 = arith.constant 0.000000e+00 : f32
      %59 = vector.shape_cast %58 : vector<1x256xi1> to vector<1x256xi1>
      %60 = vector.broadcast %59 : vector<1x256xi1> to vector<256x256xi1>
      %61 = vector.broadcast %cst_32 : f32 to vector<256x256xf32>
      %62 = arith.select %60, %56, %61 : vector<256x256xi1>, vector<256x256xf32>
      %cst_33 = arith.constant dense<0.000000e+00> : vector<256xf32>
      %63 = vector.multi_reduction <add>, %62, %cst_33 [1] : vector<256x256xf32> to vector<256xf32>
      %64 = vector.shape_cast %63 : vector<256xf32> to vector<256x1xf32>
      %65 = vector.broadcast %arg8 : i32 to vector<256x1xi32>
      %66 = arith.cmpi eq, %26, %65 : vector<256x1xi32>
      %cst_34 = arith.constant 0.000000e+00 : f32
      %67 = vector.shape_cast %66 : vector<256x1xi1> to vector<256x1xi1>
      %68 = vector.broadcast %67 : vector<256x1xi1> to vector<256x256xi1>
      %69 = vector.broadcast %cst_34 : f32 to vector<256x256xf32>
      %70 = arith.select %68, %56, %69 : vector<256x256xi1>, vector<256x256xf32>
      %cst_35 = arith.constant dense<0.000000e+00> : vector<256xf32>
      %71 = vector.multi_reduction <add>, %70, %cst_35 [0] : vector<256x256xf32> to vector<256xf32>
      %72 = vector.shape_cast %71 : vector<256xf32> to vector<1x256xf32>
      %73 = vector.broadcast %64 : vector<256x1xf32> to vector<256x256xf32>
      %74 = vector.broadcast %72 : vector<1x256xf32> to vector<256x256xf32>
      %75 = arith.addf %73, %74 : vector<256x256xf32>
      %76 = arith.minimumf %56, %75 : vector<256x256xf32>
      %c0_36 = arith.constant 0 : index
      %c0_37 = arith.constant 0 : index
      %77 = vector.load %arg7[%c0_36, %c0_37] : memref<256x256xf32, #tpu.memory_space<vmem>>, vector<256x256xf32>
      tpu.vector_store %arg7[%c0_36, %c0_37], %76 {strides = array<i32>} : memref<256x256xf32, #tpu.memory_space<vmem>>, vector<256x256xf32>,
    }
    %c256_i32_14 = arith.constant 256 : i32
    %c0_15 = arith.constant 0 : index
    %c0_16 = arith.constant 0 : index
    %c0_17 = arith.constant 0 : index
    %28 = vector.load %arg5[%c0_15, %c0_16, %c0_17] : memref<1x4x256xf32, #tpu.memory_space<vmem>>, vector<1x4x256xf32>
    %29 = vector.shape_cast %28 : vector<1x4x256xf32> to vector<4x256xf32>
    %cst_18 = arith.constant dense<0xFF800000> : vector<256xf32>
    %30 = vector.multi_reduction <maximumf>, %29, %cst_18 [0] : vector<4x256xf32> to vector<256xf32>
    %31 = vector.shape_cast %30 : vector<256xf32> to vector<1x256xf32>
    %32 = vector.broadcast %31 : vector<1x256xf32> to vector<4x256xf32>
    %33 = arith.subf %29, %32 : vector<4x256xf32>
    %34 = math.exp %33 : vector<4x256xf32>
    %cst_19 = arith.constant dense<0.000000e+00> : vector<256xf32>
    %35 = vector.multi_reduction <add>, %34, %cst_19 [0] : vector<4x256xf32> to vector<256xf32>
    %36 = vector.shape_cast %35 : vector<256xf32> to vector<1x256xf32>
    %cst_20 = arith.constant 1.000000e+00 : f32
    %37 = vector.broadcast %cst_20 : f32 to vector<1x256xf32>
    %38 = arith.divf %37, %36 : vector<1x256xf32>
    %39 = vector.broadcast %38 : vector<1x256xf32> to vector<4x256xf32>
    %40 = arith.mulf %34, %39 : vector<4x256xf32>
    %c0_21 = arith.constant 0 : index
    %c0_22 = arith.constant 0 : index
    %41 = vector.load %arg7[%c0_21, %c0_22] : memref<256x256xf32, #tpu.memory_space<vmem>>, vector<256x256xf32>
    %cst_23 = arith.constant -5.000000e+01 : f32
    %42 = vector.broadcast %cst_23 : f32 to vector<256x256xf32>
    %43 = arith.mulf %41, %42 : vector<256x256xf32>
    %44 = math.exp %43 : vector<256x256xf32>
    %45 = arith.truncf %44 : vector<256x256xf32> to vector<256x256xbf16>
    %46 = arith.truncf %40 : vector<4x256xf32> to vector<4x256xbf16>
    %cst_24 = arith.constant dense<0.000000e+00> : vector<4x256xf32>
    %47 = tpu.matmul %46, %45, %cst_24 {dimension_numbers = #tpu.dot_dimension_numbers<[1], [0], [0], [1], [0, 0, 1, 1], [], []>} : vector<4x256xbf16>, vector<256x256xbf16>, vector<4x256xf32> -> vector<4x256xf32>
    %cst_25 = arith.constant 1.000000e+00 : bf16
    %48 = vector.broadcast %cst_25 : bf16 to vector<1x256xbf16>
    %cst_26 = arith.constant dense<0.000000e+00> : vector<1x256xf32>
    %49 = tpu.matmul %48, %45, %cst_26 {dimension_numbers = #tpu.dot_dimension_numbers<[1], [0], [0], [1], [0, 0, 1, 1], [], []>} : vector<1x256xbf16>, vector<256x256xbf16>, vector<1x256xf32> -> vector<1x256xf32>
    %50 = tpu.reciprocal %49 {approx = true} : vector<1x256xf32> -> vector<1x256xf32>
    %51 = vector.broadcast %50 : vector<1x256xf32> to vector<4x256xf32>
    %52 = arith.mulf %47, %51 : vector<4x256xf32>
    %c0_27 = arith.constant 0 : index
    %c0_28 = arith.constant 0 : index
    %c0_29 = arith.constant 0 : index
    %53 = vector.load %arg6[%c0_27, %c0_28, %c0_29] : memref<1x4x256xf32, #tpu.memory_space<vmem>>, vector<1x4x256xf32>
    %54 = vector.shape_cast %53 : vector<1x4x256xf32> to vector<4x256xf32>
    %55 = vector.shape_cast %52 : vector<4x256xf32> to vector<1x4x256xf32>
    tpu.vector_store %arg6[%c0_27, %c0_28, %c0_29], %55 {strides = array<i32>} : memref<1x4x256xf32, #tpu.memory_space<vmem>>, vector<1x4x256xf32>,
    return
  }
  func.func @transform_0(%arg0: i32) -> (i32, i32, i32) {
    %c0_i32 = arith.constant 0 : i32
    %c0_i32_0 = arith.constant 0 : i32
    %c0_i32_1 = arith.constant 0 : i32
    return %arg0, %c0_i32, %c0_i32_0 : i32, i32, i32
  }
  func.func @transform_1(%arg0: i32) -> (i32, i32, i32) {
    %c0_i32 = arith.constant 0 : i32
    %c0_i32_0 = arith.constant 0 : i32
    %c0_i32_1 = arith.constant 0 : i32
    return %arg0, %c0_i32, %c0_i32_0 : i32, i32, i32
  }
  func.func @transform_2(%arg0: i32) -> (i32, i32, i32) {
    %c0_i32 = arith.constant 0 : i32
    %c0_i32_0 = arith.constant 0 : i32
    %c0_i32_1 = arith.constant 0 : i32
    return %arg0, %c0_i32, %c0_i32_0 : i32, i32, i32
  }
  func.func @transform_3(%arg0: i32) -> (i32, i32, i32) {
    %c0_i32 = arith.constant 0 : i32
    %c0_i32_0 = arith.constant 0 : i32
    %c0_i32_1 = arith.constant 0 : i32
    return %arg0, %c0_i32, %c0_i32_0 : i32, i32, i32
  }
  func.func @transform_4(%arg0: i32) -> (i32, i32, i32) {
    %c0_i32 = arith.constant 0 : i32
    %c0_i32_0 = arith.constant 0 : i32
    %c0_i32_1 = arith.constant 0 : i32
    return %arg0, %c0_i32, %c0_i32_0 : i32, i32, i32
  }
  func.func @transform_5(%arg0: i32) -> (i32, i32, i32) {
    %c0_i32 = arith.constant 0 : i32
    %c0_i32_0 = arith.constant 0 : i32
    %c0_i32_1 = arith.constant 0 : i32
    return %arg0, %c0_i32, %c0_i32_0 : i32, i32, i32
  }
}

module attributes {stable_mosaic.version = 11 : i64} {
  func.func @_high_tree_loss_kernel(%arg0: i32, %arg1: memref<1x256x1xi32, #tpu.memory_space<vmem>>, %arg2: memref<1x256x1xf32, #tpu.memory_space<vmem>>, %arg3: memref<1x1x256xi32, #tpu.memory_space<vmem>>, %arg4: memref<1x1x256xf32, #tpu.memory_space<vmem>>, %arg5: memref<1x4x256xf32, #tpu.memory_space<vmem>>, %arg6: memref<1x4x256xf32, #tpu.memory_space<vmem>>, %arg7: memref<1x1x256xf32, #tpu.memory_space<vmem>>, %arg8: memref<1x1x1xf32, #tpu.memory_space<vmem>>, %arg9: memref<1x1x1xf32, #tpu.memory_space<vmem>>, %arg10: memref<256x256xf32, #tpu.memory_space<vmem>>) attributes {dimension_semantics = [#tpu.dimension_semantics<parallel>], iteration_bounds = array<i64: 2>, scalar_prefetch = 0 : i64, scratch_operands = 1 : i64, tpu.core_type = #tpu.core_type<tc>, window_params = [{transform_indices = @transform_0, window_bounds = array<i64: 1, 256, 1>}, {transform_indices = @transform_1, window_bounds = array<i64: 1, 256, 1>}, {transform_indices = @transform_2, window_bounds = array<i64: 1, 1, 256>}, {transform_indices = @transform_3, window_bounds = array<i64: 1, 1, 256>}, {transform_indices = @transform_4, window_bounds = array<i64: 1, 4, 256>}, {transform_indices = @transform_5, window_bounds = array<i64: 1, 4, 256>}, {transform_indices = @transform_6, window_bounds = array<i64: 1, 1, 256>}, {transform_indices = @transform_7, window_bounds = array<i64: 1, 1, 1>}, {transform_indices = @transform_8, window_bounds = array<i64: 1, 1, 1>}]} {
    %c0 = arith.constant 0 : index
    %c0_0 = arith.constant 0 : index
    %c0_1 = arith.constant 0 : index
    %0 = vector.load %arg1[%c0, %c0_0, %c0_1] : memref<1x256x1xi32, #tpu.memory_space<vmem>>, vector<1x256x1xi32>
    %1 = vector.shape_cast %0 : vector<1x256x1xi32> to vector<256x1xi32>
    %c0_2 = arith.constant 0 : index
    %c0_3 = arith.constant 0 : index
    %c0_4 = arith.constant 0 : index
    %2 = vector.load %arg2[%c0_2, %c0_3, %c0_4] : memref<1x256x1xf32, #tpu.memory_space<vmem>>, vector<1x256x1xf32>
    %3 = vector.shape_cast %2 : vector<1x256x1xf32> to vector<256x1xf32>
    %c0_5 = arith.constant 0 : index
    %c0_6 = arith.constant 0 : index
    %c0_7 = arith.constant 0 : index
    %4 = vector.load %arg3[%c0_5, %c0_6, %c0_7] : memref<1x1x256xi32, #tpu.memory_space<vmem>>, vector<1x1x256xi32>
    %5 = vector.shape_cast %4 : vector<1x1x256xi32> to vector<1x256xi32>
    %c0_8 = arith.constant 0 : index
    %c0_9 = arith.constant 0 : index
    %c0_10 = arith.constant 0 : index
    %6 = vector.load %arg4[%c0_8, %c0_9, %c0_10] : memref<1x1x256xf32, #tpu.memory_space<vmem>>, vector<1x1x256xf32>
    %7 = vector.shape_cast %6 : vector<1x1x256xf32> to vector<1x256xf32>
    %8 = tpu.iota {dimensions = array<i32: 0>} : vector<256x256xi32>
    %9 = tpu.iota {dimensions = array<i32: 1>} : vector<256x256xi32>
    %10 = arith.cmpi eq, %8, %9 : vector<256x256xi32>
    %11 = vector.broadcast %1 : vector<256x1xi32> to vector<256x256xi32>
    %12 = arith.cmpi eq, %11, %9 : vector<256x256xi32>
    %13 = vector.broadcast %5 : vector<1x256xi32> to vector<256x256xi32>
    %14 = arith.cmpi eq, %13, %8 : vector<256x256xi32>
    %cst = arith.constant 1.000000e+30 : f32
    %15 = vector.shape_cast %7 : vector<1x256xf32> to vector<1x256xf32>
    %16 = vector.broadcast %15 : vector<1x256xf32> to vector<256x256xf32>
    %17 = vector.broadcast %cst : f32 to vector<256x256xf32>
    %18 = arith.select %14, %16, %17 : vector<256x256xi1>, vector<256x256xf32>
    %19 = vector.shape_cast %3 : vector<256x1xf32> to vector<256x1xf32>
    %20 = vector.broadcast %19 : vector<256x1xf32> to vector<256x256xf32>
    %21 = arith.select %12, %20, %18 : vector<256x256xi1>, vector<256x256xf32>
    %cst_11 = arith.constant 0.000000e+00 : f32
    %22 = vector.broadcast %cst_11 : f32 to vector<256x256xf32>
    %23 = arith.select %10, %22, %21 : vector<256x256xi1>, vector<256x256xf32>
    %c0_12 = arith.constant 0 : index
    %c0_13 = arith.constant 0 : index
    %24 = vector.load %arg10[%c0_12, %c0_13] : memref<256x256xf32, #tpu.memory_space<vmem>>, vector<256x256xf32>
    tpu.vector_store %arg10[%c0_12, %c0_13], %23 {strides = array<i32>} : memref<256x256xf32, #tpu.memory_space<vmem>>, vector<256x256xf32>,
    %25 = tpu.iota {dimensions = array<i32: 1>} : vector<1x256xi32>
    %26 = tpu.iota {dimensions = array<i32: 0>} : vector<256x1xi32>
    %c0_i32 = arith.constant 0 : i32
    %c256_i32 = arith.constant 256 : i32
    %27 = arith.addi %c0_i32, %c256_i32 : i32
    %c1_i32 = arith.constant 1 : i32
    scf.for %arg11 = %c0_i32 to %27 step %c1_i32  : i32 {
      %c0_43 = arith.constant 0 : index
      %c0_44 = arith.constant 0 : index
      %77 = vector.load %arg10[%c0_43, %c0_44] : memref<256x256xf32, #tpu.memory_space<vmem>>, vector<256x256xf32>
      %78 = vector.broadcast %arg11 : i32 to vector<1x256xi32>
      %79 = arith.cmpi eq, %25, %78 : vector<1x256xi32>
      %cst_45 = arith.constant 0.000000e+00 : f32
      %80 = vector.shape_cast %79 : vector<1x256xi1> to vector<1x256xi1>
      %81 = vector.broadcast %80 : vector<1x256xi1> to vector<256x256xi1>
      %82 = vector.broadcast %cst_45 : f32 to vector<256x256xf32>
      %83 = arith.select %81, %77, %82 : vector<256x256xi1>, vector<256x256xf32>
      %cst_46 = arith.constant dense<0.000000e+00> : vector<256xf32>
      %84 = vector.multi_reduction <add>, %83, %cst_46 [1] : vector<256x256xf32> to vector<256xf32>
      %85 = vector.shape_cast %84 : vector<256xf32> to vector<256x1xf32>
      %86 = vector.broadcast %arg11 : i32 to vector<256x1xi32>
      %87 = arith.cmpi eq, %26, %86 : vector<256x1xi32>
      %cst_47 = arith.constant 0.000000e+00 : f32
      %88 = vector.shape_cast %87 : vector<256x1xi1> to vector<256x1xi1>
      %89 = vector.broadcast %88 : vector<256x1xi1> to vector<256x256xi1>
      %90 = vector.broadcast %cst_47 : f32 to vector<256x256xf32>
      %91 = arith.select %89, %77, %90 : vector<256x256xi1>, vector<256x256xf32>
      %cst_48 = arith.constant dense<0.000000e+00> : vector<256xf32>
      %92 = vector.multi_reduction <add>, %91, %cst_48 [0] : vector<256x256xf32> to vector<256xf32>
      %93 = vector.shape_cast %92 : vector<256xf32> to vector<1x256xf32>
      %94 = vector.broadcast %85 : vector<256x1xf32> to vector<256x256xf32>
      %95 = vector.broadcast %93 : vector<1x256xf32> to vector<256x256xf32>
      %96 = arith.addf %94, %95 : vector<256x256xf32>
      %97 = arith.minimumf %77, %96 : vector<256x256xf32>
      %c0_49 = arith.constant 0 : index
      %c0_50 = arith.constant 0 : index
      %98 = vector.load %arg10[%c0_49, %c0_50] : memref<256x256xf32, #tpu.memory_space<vmem>>, vector<256x256xf32>
      tpu.vector_store %arg10[%c0_49, %c0_50], %97 {strides = array<i32>} : memref<256x256xf32, #tpu.memory_space<vmem>>, vector<256x256xf32>,
    }
    %c256_i32_14 = arith.constant 256 : i32
    %c0_15 = arith.constant 0 : index
    %c0_16 = arith.constant 0 : index
    %28 = vector.load %arg10[%c0_15, %c0_16] : memref<256x256xf32, #tpu.memory_space<vmem>>, vector<256x256xf32>
    %cst_17 = arith.constant 0.000000e+00 : f32
    %29 = vector.broadcast %cst_17 : f32 to vector<256x256xf32>
    %30 = arith.subf %29, %28 : vector<256x256xf32>
    %31 = math.exp %30 : vector<256x256xf32>
    %32 = arith.truncf %31 : vector<256x256xf32> to vector<256x256xbf16>
    %c0_18 = arith.constant 0 : index
    %c0_19 = arith.constant 0 : index
    %c0_20 = arith.constant 0 : index
    %33 = vector.load %arg5[%c0_18, %c0_19, %c0_20] : memref<1x4x256xf32, #tpu.memory_space<vmem>>, vector<1x4x256xf32>
    %34 = vector.shape_cast %33 : vector<1x4x256xf32> to vector<4x256xf32>
    %35 = arith.truncf %34 : vector<4x256xf32> to vector<4x256xbf16>
    %cst_21 = arith.constant dense<0.000000e+00> : vector<4x256xf32>
    %36 = tpu.matmul %35, %32, %cst_21 {dimension_numbers = #tpu.dot_dimension_numbers<[1], [0], [0], [1], [0, 0, 1, 1], [], []>} : vector<4x256xbf16>, vector<256x256xbf16>, vector<4x256xf32> -> vector<4x256xf32>
    %cst_22 = arith.constant 1.000000e+00 : bf16
    %37 = vector.broadcast %cst_22 : bf16 to vector<1x256xbf16>
    %cst_23 = arith.constant dense<0.000000e+00> : vector<1x256xf32>
    %38 = tpu.matmul %37, %32, %cst_23 {dimension_numbers = #tpu.dot_dimension_numbers<[1], [0], [0], [1], [0, 0, 1, 1], [], []>} : vector<1x256xbf16>, vector<256x256xbf16>, vector<1x256xf32> -> vector<1x256xf32>
    %39 = tpu.reciprocal %38 {approx = true} : vector<1x256xf32> -> vector<1x256xf32>
    %40 = vector.broadcast %39 : vector<1x256xf32> to vector<4x256xf32>
    %41 = arith.mulf %36, %40 : vector<4x256xf32>
    %c0_24 = arith.constant 0 : index
    %c0_25 = arith.constant 0 : index
    %c0_26 = arith.constant 0 : index
    %42 = vector.load %arg6[%c0_24, %c0_25, %c0_26] : memref<1x4x256xf32, #tpu.memory_space<vmem>>, vector<1x4x256xf32>
    %43 = vector.shape_cast %42 : vector<1x4x256xf32> to vector<4x256xf32>
    %cst_27 = arith.constant dense<0xFF800000> : vector<256xf32>
    %44 = vector.multi_reduction <maximumf>, %43, %cst_27 [0] : vector<4x256xf32> to vector<256xf32>
    %45 = vector.shape_cast %44 : vector<256xf32> to vector<1x256xf32>
    %46 = vector.broadcast %45 : vector<1x256xf32> to vector<4x256xf32>
    %47 = arith.subf %43, %46 : vector<4x256xf32>
    %48 = math.exp %47 : vector<4x256xf32>
    %cst_28 = arith.constant dense<0.000000e+00> : vector<256xf32>
    %49 = vector.multi_reduction <add>, %48, %cst_28 [0] : vector<4x256xf32> to vector<256xf32>
    %50 = vector.shape_cast %49 : vector<256xf32> to vector<1x256xf32>
    %cst_29 = arith.constant 1.000000e+00 : f32
    %51 = vector.broadcast %cst_29 : f32 to vector<1x256xf32>
    %52 = arith.divf %51, %50 : vector<1x256xf32>
    %53 = vector.broadcast %52 : vector<1x256xf32> to vector<4x256xf32>
    %54 = arith.mulf %48, %53 : vector<4x256xf32>
    %c0_30 = arith.constant 0 : index
    %c0_31 = arith.constant 0 : index
    %c0_32 = arith.constant 0 : index
    %55 = vector.load %arg7[%c0_30, %c0_31, %c0_32] : memref<1x1x256xf32, #tpu.memory_space<vmem>>, vector<1x1x256xf32>
    %56 = vector.shape_cast %55 : vector<1x1x256xf32> to vector<1x256xf32>
    %cst_33 = arith.constant 0.000000e+00 : f32
    %57 = vector.broadcast %cst_33 : f32 to vector<1x1x1xf32>
    %58 = arith.subf %54, %41 : vector<4x256xf32>
    %59 = math.absf %58 : vector<4x256xf32>
    %60 = vector.broadcast %56 : vector<1x256xf32> to vector<4x256xf32>
    %61 = arith.mulf %60, %59 : vector<4x256xf32>
    %62 = vector.shape_cast %61 : vector<4x256xf32> to vector<1x4x256xf32>
    %cst_34 = arith.constant dense<0.000000e+00> : vector<1xf32>
    %63 = vector.multi_reduction <add>, %62, %cst_34 [1, 2] : vector<1x4x256xf32> to vector<1xf32>
    %64 = vector.shape_cast %63 : vector<1xf32> to vector<1x1x1xf32>
    %65 = vector.extract %64[0, 0, 0] : f32 from vector<1x1x1xf32>
    %66 = vector.broadcast %65 : f32 to vector<1x1x1xf32>
    %67 = arith.addf %57, %66 : vector<1x1x1xf32>
    %c0_35 = arith.constant 0 : index
    %c0_36 = arith.constant 0 : index
    %c0_37 = arith.constant 0 : index
    %68 = vector.load %arg8[%c0_35, %c0_36, %c0_37] : memref<1x1x1xf32, #tpu.memory_space<vmem>>, vector<1x1x1xf32>
    tpu.vector_store %arg8[%c0_35, %c0_36, %c0_37], %67 {strides = array<i32>} : memref<1x1x1xf32, #tpu.memory_space<vmem>>, vector<1x1x1xf32>,
    %cst_38 = arith.constant 0.000000e+00 : f32
    %69 = vector.broadcast %cst_38 : f32 to vector<1x1x1xf32>
    %70 = vector.shape_cast %56 : vector<1x256xf32> to vector<1x1x256xf32>
    %cst_39 = arith.constant dense<0.000000e+00> : vector<1xf32>
    %71 = vector.multi_reduction <add>, %70, %cst_39 [1, 2] : vector<1x1x256xf32> to vector<1xf32>
    %72 = vector.shape_cast %71 : vector<1xf32> to vector<1x1x1xf32>
    %73 = vector.extract %72[0, 0, 0] : f32 from vector<1x1x1xf32>
    %74 = vector.broadcast %73 : f32 to vector<1x1x1xf32>
    %75 = arith.addf %69, %74 : vector<1x1x1xf32>
    %c0_40 = arith.constant 0 : index
    %c0_41 = arith.constant 0 : index
    %c0_42 = arith.constant 0 : index
    %76 = vector.load %arg9[%c0_40, %c0_41, %c0_42] : memref<1x1x1xf32, #tpu.memory_space<vmem>>, vector<1x1x1xf32>
    tpu.vector_store %arg9[%c0_40, %c0_41, %c0_42], %75 {strides = array<i32>} : memref<1x1x1xf32, #tpu.memory_space<vmem>>, vector<1x1x1xf32>,
    return
  }
  func.func @transform_0(%arg0: i32) -> (i32, i32, i32) {
    %c0_i32 = arith.constant 0 : i32
    %c0_i32_0 = arith.constant 0 : i32
    %c0_i32_1 = arith.constant 0 : i32
    return %arg0, %c0_i32, %c0_i32_0 : i32, i32, i32
  }
  func.func @transform_1(%arg0: i32) -> (i32, i32, i32) {
    %c0_i32 = arith.constant 0 : i32
    %c0_i32_0 = arith.constant 0 : i32
    %c0_i32_1 = arith.constant 0 : i32
    return %arg0, %c0_i32, %c0_i32_0 : i32, i32, i32
  }
  func.func @transform_2(%arg0: i32) -> (i32, i32, i32) {
    %c0_i32 = arith.constant 0 : i32
    %c0_i32_0 = arith.constant 0 : i32
    %c0_i32_1 = arith.constant 0 : i32
    return %arg0, %c0_i32, %c0_i32_0 : i32, i32, i32
  }
  func.func @transform_3(%arg0: i32) -> (i32, i32, i32) {
    %c0_i32 = arith.constant 0 : i32
    %c0_i32_0 = arith.constant 0 : i32
    %c0_i32_1 = arith.constant 0 : i32
    return %arg0, %c0_i32, %c0_i32_0 : i32, i32, i32
  }
  func.func @transform_4(%arg0: i32) -> (i32, i32, i32) {
    %c0_i32 = arith.constant 0 : i32
    %c0_i32_0 = arith.constant 0 : i32
    %c0_i32_1 = arith.constant 0 : i32
    return %arg0, %c0_i32, %c0_i32_0 : i32, i32, i32
  }
  func.func @transform_5(%arg0: i32) -> (i32, i32, i32) {
    %c0_i32 = arith.constant 0 : i32
    %c0_i32_0 = arith.constant 0 : i32
    %c0_i32_1 = arith.constant 0 : i32
    return %arg0, %c0_i32, %c0_i32_0 : i32, i32, i32
  }
  func.func @transform_6(%arg0: i32) -> (i32, i32, i32) {
    %c0_i32 = arith.constant 0 : i32
    %c0_i32_0 = arith.constant 0 : i32
    %c0_i32_1 = arith.constant 0 : i32
    return %arg0, %c0_i32, %c0_i32_0 : i32, i32, i32
  }
  func.func @transform_7(%arg0: i32) -> (i32, i32, i32) {
    %c0_i32 = arith.constant 0 : i32
    %c0_i32_0 = arith.constant 0 : i32
    %c0_i32_1 = arith.constant 0 : i32
    return %arg0, %c0_i32, %c0_i32_0 : i32, i32, i32
  }
  func.func @transform_8(%arg0: i32) -> (i32, i32, i32) {
    %c0_i32 = arith.constant 0 : i32
    %c0_i32_0 = arith.constant 0 : i32
    %c0_i32_1 = arith.constant 0 : i32
    return %arg0, %c0_i32, %c0_i32_0 : i32, i32, i32
  }
}

</mosaic_0001>

<llo_original>
// kernel: custom-call.30
$region0: #{custom-call.30}
  %s0 = inlined_call_operand.vmem [shape: s32[2,256], index: 0, kind: output, shape index: {}]

// kernel: tree_energy_loss.2
$region0: #{tree_energy_loss.2}
  #allocation0 [shape = 'u32[]', space=smem, size = 0x4, offset = 0x4, fixed_abs, tag = 'smem constant byte address 0x4 - core index']
  #allocation1 [shape = 'u32[144,128]{1,0:T(1,128)}', space=vmem, size = 0x12000, scoped, tag = 'internal scratch']
  #allocation2 [shape = 'f32[256,256]{1,0:T(8,128)}', space=vmem, size = 0x40000, scoped, tag = 'scratch operand']
  %s0 = inlined_call_operand.vmem [shape: s32[2,256,1], index: 0, kind: input, shape index: {}]
  %s1 = inlined_call_operand.vmem [shape: f32[2,256,1], index: 1, kind: input, shape index: {}]
  %s2 = inlined_call_operand.vmem [shape: s32[2,1,256], index: 2, kind: input, shape index: {}]
  %s3 = inlined_call_operand.vmem [shape: f32[2,1,256], index: 3, kind: input, shape index: {}]
  %s4 = inlined_call_operand.vmem [shape: f32[2,4,256], index: 4, kind: input, shape index: {}]
  %s5 = inlined_call_operand.vmem [shape: f32[2,4,256], index: 5, kind: output, shape index: {}]
  %s6 = sld [smem:[#allocation0]]
  $region60: #{tree_energy_loss.2} parent=0
    _
  %s8 = ssub.s32 1, %s6
  %s9 = scalar_select 0, %s8, %s6
  loop: start=0, step=1, limit=4
  $region2: #{tree_energy_loss.2} parent=0 // loop_pre_header
    _
  $region3: #{tree_energy_loss.2} parent=0 // loop_header
    %s11 = sphi 0, %s15
    %p12 = scmp.ge.s32.totalorder %s11, 4
    %s21 = sphi 0, %s23
    %s24 = sphi 0, %s21
    %s25 = sphi 0, %s24
    %s41 = sphi 0, %s25
    %s47 = sphi 0, %s49
    %s50 = sphi 0, %s47
    %s51 = sphi 0, %s50
    %s67 = sphi 0, %s51
    %s73 = sphi 0, %s75
    %s76 = sphi 0, %s73
    %s77 = sphi 0, %s76
    %s93 = sphi 0, %s77
    %s99 = sphi 0, %s101
    %s102 = sphi 0, %s99
    %s103 = sphi 0, %s102
    %s119 = sphi 0, %s103
    %s125 = sphi 0, %s127
    %s128 = sphi 0, %s125
    %s129 = sphi 0, %s128
    %s145 = sphi 0, %s129
    %s151 = sphi 0, %s153
    %s154 = sphi 0, %s151
    %s155 = sphi 0, %s154
    %s171 = sphi 0, %s155
  $region4: #{tree_energy_loss.2} parent=0 // loop_header_branch
    %14 = sbr.rel (%p12) target = $region8
  $region5: #{tree_energy_loss.2} parent=0 // loop_body
    %s16 = ssub.s32 %s11, 1
    %s17 = ssub.s32 %s11, 2
    %s18 = sadd.s32 %s11, 1
    %s19 = ssub.s32 %s11, %s18
    %p20 = scmp.eq.s32.totalorder %s19, 0
    %s22 = sadd.s32 %s21, 1
    %s23 = scalar_select %p20, %s21, %s22
    %p26 = pneg %p20
    %p27 = scmp.eq.s32.totalorder %s11, 1
    %p28 = por %p26, %p27
    %p29 = scmp.ne.s32.totalorder %s21, %s24
    %p30 = scmp.eq.s32.totalorder %s11, 0
    %p31 = por %p29, %p30
    %p32 = scmp.ne.s32.totalorder %s21, %s24
    %p33 = scmp.eq.s32.totalorder %s16, 1
    %p34 = por %p32, %p33
    %p35 = scmp.ne.s32.totalorder %s24, %s25
    %p36 = scmp.eq.s32.totalorder %s16, 0
    %p37 = por %p35, %p36
    %p38 = scmp.ne.s32.totalorder %s24, %s25
    %p39 = scmp.eq.s32.totalorder %s17, 1
    %p40 = por %p38, %p39
    %p42 = scmp.ne.s32.totalorder %s25, %s41
    %p43 = scmp.eq.s32.totalorder %s17, 0
    %p44 = por %p42, %p43
    %s45 = ssub.s32 %s11, %s18
    %p46 = scmp.eq.s32.totalorder %s45, 0
    %s48 = sadd.s32 %s47, 1
    %s49 = scalar_select %p46, %s47, %s48
    %p52 = pneg %p46
    %p53 = scmp.eq.s32.totalorder %s11, 1
    %p54 = por %p52, %p53
    %p55 = scmp.ne.s32.totalorder %s47, %s50
    %p56 = scmp.eq.s32.totalorder %s11, 0
    %p57 = por %p55, %p56
    %p58 = scmp.ne.s32.totalorder %s47, %s50
    %p59 = scmp.eq.s32.totalorder %s16, 1
    %p60 = por %p58, %p59
    %p61 = scmp.ne.s32.totalorder %s50, %s51
    %p62 = scmp.eq.s32.totalorder %s16, 0
    %p63 = por %p61, %p62
    %p64 = scmp.ne.s32.totalorder %s50, %s51
    %p65 = scmp.eq.s32.totalorder %s17, 1
    %p66 = por %p64, %p65
    %p68 = scmp.ne.s32.totalorder %s51, %s67
    %p69 = scmp.eq.s32.totalorder %s17, 0
    %p70 = por %p68, %p69
    %s71 = ssub.s32 %s11, %s18
    %p72 = scmp.eq.s32.totalorder %s71, 0
    %s74 = sadd.s32 %s73, 1
    %s75 = scalar_select %p72, %s73, %s74
    %p78 = pneg %p72
    %p79 = scmp.eq.s32.totalorder %s11, 1
    %p80 = por %p78, %p79
    %p81 = scmp.ne.s32.totalorder %s73, %s76
    %p82 = scmp.eq.s32.totalorder %s11, 0
    %p83 = por %p81, %p82
    %p84 = scmp.ne.s32.totalorder %s73, %s76
    %p85 = scmp.eq.s32.totalorder %s16, 1
    %p86 = por %p84, %p85
    %p87 = scmp.ne.s32.totalorder %s76, %s77
    %p88 = scmp.eq.s32.totalorder %s16, 0
    %p89 = por %p87, %p88
    %p90 = scmp.ne.s32.totalorder %s76, %s77
    %p91 = scmp.eq.s32.totalorder %s17, 1
    %p92 = por %p90, %p91
    %p94 = scmp.ne.s32.totalorder %s77, %s93
    %p95 = scmp.eq.s32.totalorder %s17, 0
    %p96 = por %p94, %p95
    %s97 = ssub.s32 %s11, %s18
    %p98 = scmp.eq.s32.totalorder %s97, 0
    %s100 = sadd.s32 %s99, 1
    %s101 = scalar_select %p98, %s99, %s100
    %p104 = pneg %p98
    %p105 = scmp.eq.s32.totalorder %s11, 1
    %p106 = por %p104, %p105
    %p107 = scmp.ne.s32.totalorder %s99, %s102
    %p108 = scmp.eq.s32.totalorder %s11, 0
    %p109 = por %p107, %p108
    %p110 = scmp.ne.s32.totalorder %s99, %s102
    %p111 = scmp.eq.s32.totalorder %s16, 1
    %p112 = por %p110, %p111
    %p113 = scmp.ne.s32.totalorder %s102, %s103
    %p114 = scmp.eq.s32.totalorder %s16, 0
    %p115 = por %p113, %p114
    %p116 = scmp.ne.s32.totalorder %s102, %s103
    %p117 = scmp.eq.s32.totalorder %s17, 1
    %p118 = por %p116, %p117
    %p120 = scmp.ne.s32.totalorder %s103, %s119
    %p121 = scmp.eq.s32.totalorder %s17, 0
    %p122 = por %p120, %p121
    %s123 = ssub.s32 %s11, %s18
    %p124 = scmp.eq.s32.totalorder %s123, 0
    %s126 = sadd.s32 %s125, 1
    %s127 = scalar_select %p124, %s125, %s126
    %p130 = pneg %p124
    %p131 = scmp.eq.s32.totalorder %s11, 1
    %p132 = por %p130, %p131
    %p133 = scmp.ne.s32.totalorder %s125, %s128
    %p134 = scmp.eq.s32.totalorder %s11, 0
    %p135 = por %p133, %p134
    %p136 = scmp.ne.s32.totalorder %s125, %s128
    %p137 = scmp.eq.s32.totalorder %s16, 1
    %p138 = por %p136, %p137
    %p139 = scmp.ne.s32.totalorder %s128, %s129
    %p140 = scmp.eq.s32.totalorder %s16, 0
    %p141 = por %p139, %p140
    %p142 = scmp.ne.s32.totalorder %s128, %s129
    %p143 = scmp.eq.s32.totalorder %s17, 1
    %p144 = por %p142, %p143
    %p146 = scmp.ne.s32.totalorder %s129, %s145
    %p147 = scmp.eq.s32.totalorder %s17, 0
    %p148 = por %p146, %p147
    %s149 = ssub.s32 %s11, %s18
    %p150 = scmp.eq.s32.totalorder %s149, 0
    %s152 = sadd.s32 %s151, 1
    %s153 = scalar_select %p150, %s151, %s152
    %p156 = pneg %p150
    %p157 = scmp.eq.s32.totalorder %s11, 1
    %p158 = por %p156, %p157
    %p159 = scmp.ne.s32.totalorder %s151, %s154
    %p160 = scmp.eq.s32.totalorder %s11, 0
    %p161 = por %p159, %p160
    %p162 = scmp.ne.s32.totalorder %s151, %s154
    %p163 = scmp.eq.s32.totalorder %s16, 1
    %p164 = por %p162, %p163
    %p165 = scmp.ne.s32.totalorder %s154, %s155
    %p166 = scmp.eq.s32.totalorder %s16, 0
    %p167 = por %p165, %p166
    %p168 = scmp.ne.s32.totalorder %s154, %s155
    %p169 = scmp.eq.s32.totalorder %s17, 1
    %p170 = por %p168, %p169
    %p172 = scmp.ne.s32.totalorder %s155, %s171
    %p173 = scmp.eq.s32.totalorder %s17, 0
    %p174 = por %p172, %p173
    %p175 = scmp.le.s32.totalorder 1, %s11
    %p176 = scmp.lt.s32.totalorder %s11, 3
    %p177 = pnand %p175, %p176
    %p178 = pneg %p177
    // Predicated region
    $region9: #{tree_energy_loss.2} parent=5 // pred_check
      _
    $region10: #{tree_energy_loss.2} parent=5 // pred_check_branch
      %180 = sbr.rel (%p177) target = $region12
    $region11: #{tree_energy_loss.2} parent=5 // pred_region
      %s181 = ssub.s32 %s11, 1
    $region12: #{tree_energy_loss.2} parent=5 // pred_fallthru
      _
    %p182 = scmp.lt.s32.totalorder %s11, 2
    // Predicated region
    $region13: #{tree_energy_loss.2} parent=5 // pred_check
      %p183 = pneg %p182
    $region14: #{tree_energy_loss.2} parent=5 // pred_check_branch
      %185 = sbr.rel (%p183) target = $region16
    $region15: #{tree_energy_loss.2} parent=5 // pred_region
      // Predicated region
      $region17: #{tree_energy_loss.2} parent=15 // pred_check
        %p186 = pneg %p31
      $region18: #{tree_energy_loss.2} parent=15 // pred_check_branch
        %188 = sbr.rel (%p186) target = $region20
      $region19: #{tree_energy_loss.2} parent=15 // pred_region
        %p189 = scmp.lt.s32.totalorder %s11, 1
        %s190 = scalar_select %p189, %s11, 1
        %s191 = smul.addr %s190, 32
        %s192 = smul.addr %s191, 8
        %s193 = scalar_lea.vmem %s0, %s192
      $region20: #{tree_energy_loss.2} parent=15 // pred_fallthru
        _
      // Predicated region
      $region21: #{tree_energy_loss.2} parent=15 // pred_check
        %p194 = pneg %p57
      $region22: #{tree_energy_loss.2} parent=15 // pred_check_branch
        %196 = sbr.rel (%p194) target = $region24
      $region23: #{tree_energy_loss.2} parent=15 // pred_region
        %p197 = scmp.lt.s32.totalorder %s11, 1
        %s198 = scalar_select %p197, %s11, 1
        %s199 = smul.addr %s198, 32
        %s200 = smul.addr %s199, 8
        %s201 = scalar_lea.vmem %s1, %s200
      $region24: #{tree_energy_loss.2} parent=15 // pred_fallthru
        _
      // Predicated region
      $region25: #{tree_energy_loss.2} parent=15 // pred_check
        %p202 = pneg %p83
      $region26: #{tree_energy_loss.2} parent=15 // pred_check_branch
        %204 = sbr.rel (%p202) target = $region28
      $region27: #{tree_energy_loss.2} parent=15 // pred_region
        %p205 = scmp.lt.s32.totalorder %s11, 1
        %s206 = scalar_select %p205, %s11, 1
        %s207 = smul.addr %s206, 2
        %s208 = scalar_lea.vmem %s2, %s207
      $region28: #{tree_energy_loss.2} parent=15 // pred_fallthru
        _
      // Predicated region
      $region29: #{tree_energy_loss.2} parent=15 // pred_check
        %p209 = pneg %p109
      $region30: #{tree_energy_loss.2} parent=15 // pred_check_branch
        %211 = sbr.rel (%p209) target = $region32
      $region31: #{tree_energy_loss.2} parent=15 // pred_region
        %p212 = scmp.lt.s32.totalorder %s11, 1
        %s213 = scalar_select %p212, %s11, 1
        %s214 = smul.addr %s213, 2
        %s215 = scalar_lea.vmem %s3, %s214
      $region32: #{tree_energy_loss.2} parent=15 // pred_fallthru
        _
      // Predicated region
      $region33: #{tree_energy_loss.2} parent=15 // pred_check
        %p216 = pneg %p135
      $region34: #{tree_energy_loss.2} parent=15 // pred_check_branch
        %218 = sbr.rel (%p216) target = $region36
      $region35: #{tree_energy_loss.2} parent=15 // pred_region
        %p219 = scmp.lt.s32.totalorder %s11, 1
        %s220 = scalar_select %p219, %s11, 1
        %s221 = smul.addr %s220, 2
        %s222 = smul.addr %s221, 4
        %s223 = scalar_lea.vmem %s4, %s222
      $region36: #{tree_energy_loss.2} parent=15 // pred_fallthru
        _
    $region16: #{tree_energy_loss.2} parent=5 // pred_fallthru
      _
    %p224 = scmp.le.s32.totalorder 1, %s11
    %p225 = scmp.lt.s32.totalorder %s11, 3
    %p226 = pnand %p224, %p225
    %p227 = pneg %p226
    // Predicated region
    $region37: #{tree_energy_loss.2} parent=5 // pred_check
      _
    $region38: #{tree_energy_loss.2} parent=5 // pred_check_branch
      %229 = sbr.rel (%p226) target = $region40
    $region39: #{tree_energy_loss.2} parent=5 // pred_region
      %s230 = ssub.s32 %s11, 1
      %p231 = scmp.lt.s32.totalorder %s16, 1
      %s232 = scalar_select %p231, %s16, 1
      %s233 = smul.addr %s232, 32
      %s234 = smul.addr %s233, 8
      %s235 = scalar_lea.vmem %s0, %s234
      %p236 = pneg %p37
      %p237 = pneg %p34
      %p238 = scmp.lt.s32.totalorder %s16, 1
      %s239 = scalar_select %p238, %s16, 1
      %s240 = smul.addr %s239, 32
      %s241 = smul.addr %s240, 8
      %s242 = scalar_lea.vmem %s1, %s241
      %p243 = pneg %p63
      %p244 = pneg %p60
      %p245 = scmp.lt.s32.totalorder %s16, 1
      %s246 = scalar_select %p245, %s16, 1
      %s247 = smul.addr %s246, 2
      %s248 = scalar_lea.vmem %s2, %s247
      %p249 = pneg %p89
      %p250 = pneg %p86
      %p251 = scmp.lt.s32.totalorder %s16, 1
      %s252 = scalar_select %p251, %s16, 1
      %s253 = smul.addr %s252, 2
      %s254 = scalar_lea.vmem %s3, %s253
      %p255 = pneg %p115
      %p256 = pneg %p112
      %p257 = scmp.lt.s32.totalorder %s16, 1
      %s258 = scalar_select %p257, %s16, 1
      %s259 = smul.addr %s258, 2
      %s260 = smul.addr %s259, 4
      %s261 = scalar_lea.vmem %s4, %s260
      %p262 = pneg %p141
      %p263 = pneg %p138
      %p264 = pneg %p167
      %p265 = pneg %p164
      %p266 = scmp.lt.s32.totalorder %s16, 1
      %s267 = scalar_select %p266, %s16, 1
      %s268 = smul.addr %s267, 2
      %s269 = smul.addr %s268, 4
      %s270 = scalar_lea.vmem %s5, %s269
      %p271 = scmp.lt.s32.totalorder %s16, 1
      %s272 = scalar_select %p271, %s16, 1
      %s273 = smul.addr %s272, 32
      %s274 = smul.addr %s273, 8
      %s275 = scalar_lea.vmem %s0, %s274
      %p276 = scmp.lt.s32.totalorder %s16, 1
      %s277 = scalar_select %p276, %s16, 1
      %s278 = smul.addr %s277, 32
      %s279 = smul.addr %s278, 8
      %s280 = scalar_lea.vmem %s1, %s279
      %p281 = scmp.lt.s32.totalorder %s16, 1
      %s282 = scalar_select %p281, %s16, 1
      %s283 = smul.addr %s282, 2
      %s284 = scalar_lea.vmem %s2, %s283
      %p285 = scmp.lt.s32.totalorder %s16, 1
      %s286 = scalar_select %p285, %s16, 1
      %s287 = smul.addr %s286, 2
      %s288 = scalar_lea.vmem %s3, %s287
      %p289 = scmp.lt.s32.totalorder %s16, 1
      %s290 = scalar_select %p289, %s16, 1
      %s291 = smul.addr %s290, 2
      %s292 = smul.addr %s291, 4
      %s293 = scalar_lea.vmem %s4, %s292
      %p294 = scmp.lt.s32.totalorder %s16, 1
      %s295 = scalar_select %p294, %s16, 1
      %s296 = smul.addr %s295, 2
      %s297 = smul.addr %s296, 4
      %s298 = scalar_lea.vmem %s5, %s297
      %v300 = vld [vmem:[%s275] sm:$0xff]
      %v301 = vld [vmem:[%s275 + $0x8] sm:$0xff]
      %v302 = vld [vmem:[%s275 + $0x10] sm:$0xff]
      %v303 = vld [vmem:[%s275 + $0x18] sm:$0xff]
      %v304 = vld [vmem:[%s275 + $0x20] sm:$0xff]
      %v305 = vld [vmem:[%s275 + $0x28] sm:$0xff]
      %v306 = vld [vmem:[%s275 + $0x30] sm:$0xff]
      %v307 = vld [vmem:[%s275 + $0x38] sm:$0xff]
      %v308 = vld [vmem:[%s275 + $0x40] sm:$0xff]
      %v309 = vld [vmem:[%s275 + $0x48] sm:$0xff]
      %v310 = vld [vmem:[%s275 + $0x50] sm:$0xff]
      %v311 = vld [vmem:[%s275 + $0x58] sm:$0xff]
      %v312 = vld [vmem:[%s275 + $0x60] sm:$0xff]
      %v313 = vld [vmem:[%s275 + $0x68] sm:$0xff]
      %v314 = vld [vmem:[%s275 + $0x70] sm:$0xff]
      %v315 = vld [vmem:[%s275 + $0x78] sm:$0xff]
      %v316 = vld [vmem:[%s275 + $0x80] sm:$0xff]
      %v317 = vld [vmem:[%s275 + $0x88] sm:$0xff]
      %v318 = vld [vmem:[%s275 + $0x90] sm:$0xff]
      %v319 = vld [vmem:[%s275 + $0x98] sm:$0xff]
      %v320 = vld [vmem:[%s275 + $0xa0] sm:$0xff]
      %v321 = vld [vmem:[%s275 + $0xa8] sm:$0xff]
      %v322 = vld [vmem:[%s275 + $0xb0] sm:$0xff]
      %v323 = vld [vmem:[%s275 + $0xb8] sm:$0xff]
      %v324 = vld [vmem:[%s275 + $0xc0] sm:$0xff]
      %v325 = vld [vmem:[%s275 + $0xc8] sm:$0xff]
      %v326 = vld [vmem:[%s275 + $0xd0] sm:$0xff]
      %v327 = vld [vmem:[%s275 + $0xd8] sm:$0xff]
      %v328 = vld [vmem:[%s275 + $0xe0] sm:$0xff]
      %v329 = vld [vmem:[%s275 + $0xe8] sm:$0xff]
      %v330 = vld [vmem:[%s275 + $0xf0] sm:$0xff]
      %v331 = vld [vmem:[%s275 + $0xf8] sm:$0xff]
      %v332 = vld [vmem:[%s280] sm:$0xff]
      %v333 = vld [vmem:[%s280 + $0x8] sm:$0xff]
      %v334 = vld [vmem:[%s280 + $0x10] sm:$0xff]
      %v335 = vld [vmem:[%s280 + $0x18] sm:$0xff]
      %v336 = vld [vmem:[%s280 + $0x20] sm:$0xff]
      %v337 = vld [vmem:[%s280 + $0x28] sm:$0xff]
      %v338 = vld [vmem:[%s280 + $0x30] sm:$0xff]
      %v339 = vld [vmem:[%s280 + $0x38] sm:$0xff]
      %v340 = vld [vmem:[%s280 + $0x40] sm:$0xff]
      %v341 = vld [vmem:[%s280 + $0x48] sm:$0xff]
      %v342 = vld [vmem:[%s280 + $0x50] sm:$0xff]
      %v343 = vld [vmem:[%s280 + $0x58] sm:$0xff]
      %v344 = vld [vmem:[%s280 + $0x60] sm:$0xff]
      %v345 = vld [vmem:[%s280 + $0x68] sm:$0xff]
      %v346 = vld [vmem:[%s280 + $0x70] sm:$0xff]
      %v347 = vld [vmem:[%s280 + $0x78] sm:$0xff]
      %v348 = vld [vmem:[%s280 + $0x80] sm:$0xff]
      %v349 = vld [vmem:[%s280 + $0x88] sm:$0xff]
      %v350 = vld [vmem:[%s280 + $0x90] sm:$0xff]
      %v351 = vld [vmem:[%s280 + $0x98] sm:$0xff]
      %v352 = vld [vmem:[%s280 + $0xa0] sm:$0xff]
      %v353 = vld [vmem:[%s280 + $0xa8] sm:$0xff]
      %v354 = vld [vmem:[%s280 + $0xb0] sm:$0xff]
      %v355 = vld [vmem:[%s280 + $0xb8] sm:$0xff]
      %v356 = vld [vmem:[%s280 + $0xc0] sm:$0xff]
      %v357 = vld [vmem:[%s280 + $0xc8] sm:$0xff]
      %v358 = vld [vmem:[%s280 + $0xd0] sm:$0xff]
      %v359 = vld [vmem:[%s280 + $0xd8] sm:$0xff]
      %v360 = vld [vmem:[%s280 + $0xe0] sm:$0xff]
      %v361 = vld [vmem:[%s280 + $0xe8] sm:$0xff]
      %v362 = vld [vmem:[%s280 + $0xf0] sm:$0xff]
      %v363 = vld [vmem:[%s280 + $0xf8] sm:$0xff]
      %v364 = vld [vmem:[%s284] sm:$0x3]
      %v365 = vld [vmem:[%s288] sm:$0x3]
      %v366 = vlaneseq
      %v367 = vshrl.u32 %v366, 7
      %v368 = vadd.s32 %v367, 8
      %v369 = vadd.s32 %v367, 16
      %v370 = vadd.s32 %v367, 24
      %v371 = vadd.s32 %v367, 32
      %v372 = vadd.s32 %v367, 40
      %v373 = vadd.s32 %v367, 48
      %v374 = vadd.s32 %v367, 56
      %v375 = vadd.s32 %v367, 64
      %v376 = vadd.s32 %v367, 72
      %v377 = vadd.s32 %v367, 80
      %v378 = vadd.s32 %v367, 88
      %v379 = vadd.s32 %v367, 96
      %v380 = vadd.s32 %v367, 104
      %v381 = vadd.s32 %v367, 112
      %v382 = vadd.s32 %v367, 120
      %v383 = vadd.s32 %v367, 128
      %v384 = vadd.s32 %v367, 136
      %v385 = vadd.s32 %v367, 144
      %v386 = vadd.s32 %v367, 152
      %v387 = vadd.s32 %v367, 160
      %v388 = vadd.s32 %v367, 168
      %v389 = vadd.s32 %v367, 176
      %v390 = vadd.s32 %v367, 184
      %v391 = vadd.s32 %v367, 192
      %v392 = vadd.s32 %v367, 200
      %v393 = vadd.s32 %v367, 208
      %v394 = vadd.s32 %v367, 216
      %v395 = vadd.s32 %v367, 224
      %v396 = vadd.s32 %v367, 232
      %v397 = vadd.s32 %v367, 240
      %v398 = vadd.s32 %v367, 248
      %v399 = vlaneseq
      %v400 = vand.u32 %v399, 127
      %v401 = vadd.s32 %v400, 128
      %vm402 = vcmp.eq.s32.totalorder %v367, %v400
      %vm403 = vcmp.eq.s32.totalorder %v367, %v401
      %vm404 = vcmp.eq.s32.totalorder %v368, %v400
      %vm405 = vcmp.eq.s32.totalorder %v368, %v401
      %vm406 = vcmp.eq.s32.totalorder %v369, %v400
      %vm407 = vcmp.eq.s32.totalorder %v369, %v401
      %vm408 = vcmp.eq.s32.totalorder %v370, %v400
      %vm409 = vcmp.eq.s32.totalorder %v370, %v401
      %vm410 = vcmp.eq.s32.totalorder %v371, %v400
      %vm411 = vcmp.eq.s32.totalorder %v371, %v401
      %vm412 = vcmp.eq.s32.totalorder %v372, %v400
      %vm413 = vcmp.eq.s32.totalorder %v372, %v401
      %vm414 = vcmp.eq.s32.totalorder %v373, %v400
      %vm415 = vcmp.eq.s32.totalorder %v373, %v401
      %vm416 = vcmp.eq.s32.totalorder %v374, %v400
      %vm417 = vcmp.eq.s32.totalorder %v374, %v401
      %vm418 = vcmp.eq.s32.totalorder %v375, %v400
      %vm419 = vcmp.eq.s32.totalorder %v375, %v401
      %vm420 = vcmp.eq.s32.totalorder %v376, %v400
      %vm421 = vcmp.eq.s32.totalorder %v376, %v401
      %vm422 = vcmp.eq.s32.totalorder %v377, %v400
      %vm423 = vcmp.eq.s32.totalorder %v377, %v401
      %vm424 = vcmp.eq.s32.totalorder %v378, %v400
      %vm425 = vcmp.eq.s32.totalorder %v378, %v401
      %vm426 = vcmp.eq.s32.totalorder %v379, %v400
      %vm427 = vcmp.eq.s32.totalorder %v379, %v401
      %vm428 = vcmp.eq.s32.totalorder %v380, %v400
      %vm429 = vcmp.eq.s32.totalorder %v380, %v401
      %vm430 = vcmp.eq.s32.totalorder %v381, %v400
      %vm431 = vcmp.eq.s32.totalorder %v381, %v401
      %vm432 = vcmp.eq.s32.totalorder %v382, %v400
      %vm433 = vcmp.eq.s32.totalorder %v382, %v401
      %vm434 = vcmp.eq.s32.totalorder %v383, %v400
      %vm435 = vcmp.eq.s32.totalorder %v383, %v401
      %vm436 = vcmp.eq.s32.totalorder %v384, %v400
      %vm437 = vcmp.eq.s32.totalorder %v384, %v401
      %vm438 = vcmp.eq.s32.totalorder %v385, %v400
      %vm439 = vcmp.eq.s32.totalorder %v385, %v401
      %vm440 = vcmp.eq.s32.totalorder %v386, %v400
      %vm441 = vcmp.eq.s32.totalorder %v386, %v401
      %vm442 = vcmp.eq.s32.totalorder %v387, %v400
      %vm443 = vcmp.eq.s32.totalorder %v387, %v401
      %vm444 = vcmp.eq.s32.totalorder %v388, %v400
      %vm445 = vcmp.eq.s32.totalorder %v388, %v401
      %vm446 = vcmp.eq.s32.totalorder %v389, %v400
      %vm447 = vcmp.eq.s32.totalorder %v389, %v401
      %vm448 = vcmp.eq.s32.totalorder %v390, %v400
      %vm449 = vcmp.eq.s32.totalorder %v390, %v401
      %vm450 = vcmp.eq.s32.totalorder %v391, %v400
      %vm451 = vcmp.eq.s32.totalorder %v391, %v401
      %vm452 = vcmp.eq.s32.totalorder %v392, %v400
      %vm453 = vcmp.eq.s32.totalorder %v392, %v401
      %vm454 = vcmp.eq.s32.totalorder %v393, %v400
      %vm455 = vcmp.eq.s32.totalorder %v393, %v401
      %vm456 = vcmp.eq.s32.totalorder %v394, %v400
      %vm457 = vcmp.eq.s32.totalorder %v394, %v401
      %vm458 = vcmp.eq.s32.totalorder %v395, %v400
      %vm459 = vcmp.eq.s32.totalorder %v395, %v401
      %vm460 = vcmp.eq.s32.totalorder %v396, %v400
      %vm461 = vcmp.eq.s32.totalorder %v396, %v401
      %vm462 = vcmp.eq.s32.totalorder %v397, %v400
      %vm463 = vcmp.eq.s32.totalorder %v397, %v401
      %vm464 = vcmp.eq.s32.totalorder %v398, %v400
      %vm465 = vcmp.eq.s32.totalorder %v398, %v401
      %466 = vset.pattern.permute.xlu0 0
      %467 = vperm.xlu0 %466, %v300
      %v468 = vpop.permute.xlu0 %467
      %469 = vset.pattern.permute.xlu0 0
      %470 = vperm.xlu0 %469, %v301
      %v471 = vpop.permute.xlu0 %470
      %472 = vset.pattern.permute.xlu0 0
      %473 = vperm.xlu0 %472, %v302
      %v474 = vpop.permute.xlu0 %473
      %475 = vset.pattern.permute.xlu0 0
      %476 = vperm.xlu0 %475, %v303
      %v477 = vpop.permute.xlu0 %476
      %478 = vset.pattern.permute.xlu0 0
      %479 = vperm.xlu0 %478, %v304
      %v480 = vpop.permute.xlu0 %479
      %481 = vset.pattern.permute.xlu0 0
      %482 = vperm.xlu0 %481, %v305
      %v483 = vpop.permute.xlu0 %482
      %484 = vset.pattern.permute.xlu0 0
      %485 = vperm.xlu0 %484, %v306
      %v486 = vpop.permute.xlu0 %485
      %487 = vset.pattern.permute.xlu0 0
      %488 = vperm.xlu0 %487, %v307
      %v489 = vpop.permute.xlu0 %488
      %490 = vset.pattern.permute.xlu0 0
      %491 = vperm.xlu0 %490, %v308
      %v492 = vpop.permute.xlu0 %491
      %493 = vset.pattern.permute.xlu0 0
      %494 = vperm.xlu0 %493, %v309
      %v495 = vpop.permute.xlu0 %494
      %496 = vset.pattern.permute.xlu0 0
      %497 = vperm.xlu0 %496, %v310
      %v498 = vpop.permute.xlu0 %497
      %499 = vset.pattern.permute.xlu0 0
      %500 = vperm.xlu0 %499, %v311
      %v501 = vpop.permute.xlu0 %500
      %502 = vset.pattern.permute.xlu0 0
      %503 = vperm.xlu0 %502, %v312
      %v504 = vpop.permute.xlu0 %503
      %505 = vset.pattern.permute.xlu0 0
      %506 = vperm.xlu0 %505, %v313
      %v507 = vpop.permute.xlu0 %506
      %508 = vset.pattern.permute.xlu0 0
      %509 = vperm.xlu0 %508, %v314
      %v510 = vpop.permute.xlu0 %509
      %511 = vset.pattern.permute.xlu0 0
      %512 = vperm.xlu0 %511, %v315
      %v513 = vpop.permute.xlu0 %512
      %514 = vset.pattern.permute.xlu0 0
      %515 = vperm.xlu0 %514, %v316
      %v516 = vpop.permute.xlu0 %515
      %517 = vset.pattern.permute.xlu0 0
      %518 = vperm.xlu0 %517, %v317
      %v519 = vpop.permute.xlu0 %518
      %520 = vset.pattern.permute.xlu0 0
      %521 = vperm.xlu0 %520, %v318
      %v522 = vpop.permute.xlu0 %521
      %523 = vset.pattern.permute.xlu0 0
      %524 = vperm.xlu0 %523, %v319
      %v525 = vpop.permute.xlu0 %524
      %526 = vset.pattern.permute.xlu0 0
      %527 = vperm.xlu0 %526, %v320
      %v528 = vpop.permute.xlu0 %527
      %529 = vset.pattern.permute.xlu0 0
      %530 = vperm.xlu0 %529, %v321
      %v531 = vpop.permute.xlu0 %530
      %532 = vset.pattern.permute.xlu0 0
      %533 = vperm.xlu0 %532, %v322
      %v534 = vpop.permute.xlu0 %533
      %535 = vset.pattern.permute.xlu0 0
      %536 = vperm.xlu0 %535, %v323
      %v537 = vpop.permute.xlu0 %536
      %538 = vset.pattern.permute.xlu0 0
      %539 = vperm.xlu0 %538, %v324
      %v540 = vpop.permute.xlu0 %539
      %541 = vset.pattern.permute.xlu0 0
      %542 = vperm.xlu0 %541, %v325
      %v543 = vpop.permute.xlu0 %542
      %544 = vset.pattern.permute.xlu0 0
      %545 = vperm.xlu0 %544, %v326
      %v546 = vpop.permute.xlu0 %545
      %547 = vset.pattern.permute.xlu0 0
      %548 = vperm.xlu0 %547, %v327
      %v549 = vpop.permute.xlu0 %548
      %550 = vset.pattern.permute.xlu0 0
      %551 = vperm.xlu0 %550, %v328
      %v552 = vpop.permute.xlu0 %551
      %553 = vset.pattern.permute.xlu0 0
      %554 = vperm.xlu0 %553, %v329
      %v555 = vpop.permute.xlu0 %554
      %556 = vset.pattern.permute.xlu0 0
      %557 = vperm.xlu0 %556, %v330
      %v558 = vpop.permute.xlu0 %557
      %559 = vset.pattern.permute.xlu0 0
      %560 = vperm.xlu0 %559, %v331
      %v561 = vpop.permute.xlu0 %560
      %vm562 = vcmp.eq.s32.totalorder %v468, %v400
      %vm563 = vcmp.eq.s32.totalorder %v468, %v401
      %vm564 = vcmp.eq.s32.totalorder %v471, %v400
      %vm565 = vcmp.eq.s32.totalorder %v471, %v401
      %vm566 = vcmp.eq.s32.totalorder %v474, %v400
      %vm567 = vcmp.eq.s32.totalorder %v474, %v401
      %vm568 = vcmp.eq.s32.totalorder %v477, %v400
      %vm569 = vcmp.eq.s32.totalorder %v477, %v401
      %vm570 = vcmp.eq.s32.totalorder %v480, %v400
      %vm571 = vcmp.eq.s32.totalorder %v480, %v401
      %vm572 = vcmp.eq.s32.totalorder %v483, %v400
      %vm573 = vcmp.eq.s32.totalorder %v483, %v401
      %vm574 = vcmp.eq.s32.totalorder %v486, %v400
      %vm575 = vcmp.eq.s32.totalorder %v486, %v401
      %vm576 = vcmp.eq.s32.totalorder %v489, %v400
      %vm577 = vcmp.eq.s32.totalorder %v489, %v401
      %vm578 = vcmp.eq.s32.totalorder %v492, %v400
      %vm579 = vcmp.eq.s32.totalorder %v492, %v401
      %vm580 = vcmp.eq.s32.totalorder %v495, %v400
      %vm581 = vcmp.eq.s32.totalorder %v495, %v401
      %vm582 = vcmp.eq.s32.totalorder %v498, %v400
      %vm583 = vcmp.eq.s32.totalorder %v498, %v401
      %vm584 = vcmp.eq.s32.totalorder %v501, %v400
      %vm585 = vcmp.eq.s32.totalorder %v501, %v401
      %vm586 = vcmp.eq.s32.totalorder %v504, %v400
      %vm587 = vcmp.eq.s32.totalorder %v504, %v401
      %vm588 = vcmp.eq.s32.totalorder %v507, %v400
      %vm589 = vcmp.eq.s32.totalorder %v507, %v401
      %vm590 = vcmp.eq.s32.totalorder %v510, %v400
      %vm591 = vcmp.eq.s32.totalorder %v510, %v401
      %vm592 = vcmp.eq.s32.totalorder %v513, %v400
      %vm593 = vcmp.eq.s32.totalorder %v513, %v401
      %vm594 = vcmp.eq.s32.totalorder %v516, %v400
      %vm595 = vcmp.eq.s32.totalorder %v516, %v401
      %vm596 = vcmp.eq.s32.totalorder %v519, %v400
      %vm597 = vcmp.eq.s32.totalorder %v519, %v401
      %vm598 = vcmp.eq.s32.totalorder %v522, %v400
      %vm599 = vcmp.eq.s32.totalorder %v522, %v401
      %vm600 = vcmp.eq.s32.totalorder %v525, %v400
      %vm601 = vcmp.eq.s32.totalorder %v525, %v401
      %vm602 = vcmp.eq.s32.totalorder %v528, %v400
      %vm603 = vcmp.eq.s32.totalorder %v528, %v401
      %vm604 = vcmp.eq.s32.totalorder %v531, %v400
      %vm605 = vcmp.eq.s32.totalorder %v531, %v401
      %vm606 = vcmp.eq.s32.totalorder %v534, %v400
      %vm607 = vcmp.eq.s32.totalorder %v534, %v401
      %vm608 = vcmp.eq.s32.totalorder %v537, %v400
      %vm609 = vcmp.eq.s32.totalorder %v537, %v401
      %vm610 = vcmp.eq.s32.totalorder %v540, %v400
      %vm611 = vcmp.eq.s32.totalorder %v540, %v401
      %vm612 = vcmp.eq.s32.totalorder %v543, %v400
      %vm613 = vcmp.eq.s32.totalorder %v543, %v401
      %vm614 = vcmp.eq.s32.totalorder %v546, %v400
      %vm615 = vcmp.eq.s32.totalorder %v546, %v401
      %vm616 = vcmp.eq.s32.totalorder %v549, %v400
      %vm617 = vcmp.eq.s32.totalorder %v549, %v401
      %vm618 = vcmp.eq.s32.totalorder %v552, %v400
      %vm619 = vcmp.eq.s32.totalorder %v552, %v401
      %vm620 = vcmp.eq.s32.totalorder %v555, %v400
      %vm621 = vcmp.eq.s32.totalorder %v555, %v401
      %vm622 = vcmp.eq.s32.totalorder %v558, %v400
      %vm623 = vcmp.eq.s32.totalorder %v558, %v401
      %vm624 = vcmp.eq.s32.totalorder %v561, %v400
      %vm625 = vcmp.eq.s32.totalorder %v561, %v401
      %v626 = vlaneseq
      %v627 = vshrl.u32 %v626, 7
      %v628 = vsub.s32 0, %v627
      %v629 = vrot.slane %v364, %v628
      %v630 = vlaneseq
      %v631 = vshrl.u32 %v630, 7
      %v632 = vsub.s32 1, %v631
      %v633 = vrot.slane %v364, %v632
      %vm634 = vcmp.eq.s32.totalorder %v629, %v367
      %vm635 = vcmp.eq.s32.totalorder %v633, %v367
      %vm636 = vcmp.eq.s32.totalorder %v629, %v368
      %vm637 = vcmp.eq.s32.totalorder %v633, %v368
      %vm638 = vcmp.eq.s32.totalorder %v629, %v369
      %vm639 = vcmp.eq.s32.totalorder %v633, %v369
      %vm640 = vcmp.eq.s32.totalorder %v629, %v370
      %vm641 = vcmp.eq.s32.totalorder %v633, %v370
      %vm642 = vcmp.eq.s32.totalorder %v629, %v371
      %vm643 = vcmp.eq.s32.totalorder %v633, %v371
      %vm644 = vcmp.eq.s32.totalorder %v629, %v372
      %vm645 = vcmp.eq.s32.totalorder %v633, %v372
      %vm646 = vcmp.eq.s32.totalorder %v629, %v373
      %vm647 = vcmp.eq.s32.totalorder %v633, %v373
      %vm648 = vcmp.eq.s32.totalorder %v629, %v374
      %vm649 = vcmp.eq.s32.totalorder %v633, %v374
      %vm650 = vcmp.eq.s32.totalorder %v629, %v375
      %vm651 = vcmp.eq.s32.totalorder %v633, %v375
      %vm652 = vcmp.eq.s32.totalorder %v629, %v376
      %vm653 = vcmp.eq.s32.totalorder %v633, %v376
      %vm654 = vcmp.eq.s32.totalorder %v629, %v377
      %vm655 = vcmp.eq.s32.totalorder %v633, %v377
      %vm656 = vcmp.eq.s32.totalorder %v629, %v378
      %vm657 = vcmp.eq.s32.totalorder %v633, %v378
      %vm658 = vcmp.eq.s32.totalorder %v629, %v379
      %vm659 = vcmp.eq.s32.totalorder %v633, %v379
      %vm660 = vcmp.eq.s32.totalorder %v629, %v380
      %vm661 = vcmp.eq.s32.totalorder %v633, %v380
      %vm662 = vcmp.eq.s32.totalorder %v629, %v381
      %vm663 = vcmp.eq.s32.totalorder %v633, %v381
      %vm664 = vcmp.eq.s32.totalorder %v629, %v382
      %vm665 = vcmp.eq.s32.totalorder %v633, %v382
      %vm666 = vcmp.eq.s32.totalorder %v629, %v383
      %vm667 = vcmp.eq.s32.totalorder %v633, %v383
      %vm668 = vcmp.eq.s32.totalorder %v629, %v384
      %vm669 = vcmp.eq.s32.totalorder %v633, %v384
      %vm670 = vcmp.eq.s32.totalorder %v629, %v385
      %vm671 = vcmp.eq.s32.totalorder %v633, %v385
      %vm672 = vcmp.eq.s32.totalorder %v629, %v386
      %vm673 = vcmp.eq.s32.totalorder %v633, %v386
      %vm674 = vcmp.eq.s32.totalorder %v629, %v387
      %vm675 = vcmp.eq.s32.totalorder %v633, %v387
      %vm676 = vcmp.eq.s32.totalorder %v629, %v388
      %vm677 = vcmp.eq.s32.totalorder %v633, %v388
      %vm678 = vcmp.eq.s32.totalorder %v629, %v389
      %vm679 = vcmp.eq.s32.totalorder %v633, %v389
      %vm680 = vcmp.eq.s32.totalorder %v629, %v390
      %vm681 = vcmp.eq.s32.totalorder %v633, %v390
      %vm682 = vcmp.eq.s32.totalorder %v629, %v391
      %vm683 = vcmp.eq.s32.totalorder %v633, %v391
      %vm684 = vcmp.eq.s32.totalorder %v629, %v392
      %vm685 = vcmp.eq.s32.totalorder %v633, %v392
      %vm686 = vcmp.eq.s32.totalorder %v629, %v393
      %vm687 = vcmp.eq.s32.totalorder %v633, %v393
      %vm688 = vcmp.eq.s32.totalorder %v629, %v394
      %vm689 = vcmp.eq.s32.totalorder %v633, %v394
      %vm690 = vcmp.eq.s32.totalorder %v629, %v395
      %vm691 = vcmp.eq.s32.totalorder %v633, %v395
      %vm692 = vcmp.eq.s32.totalorder %v629, %v396
      %vm693 = vcmp.eq.s32.totalorder %v633, %v396
      %vm694 = vcmp.eq.s32.totalorder %v629, %v397
      %vm695 = vcmp.eq.s32.totalorder %v633, %v397
      %vm696 = vcmp.eq.s32.totalorder %v629, %v398
      %vm697 = vcmp.eq.s32.totalorder %v633, %v398
      %v699 = vlaneseq
      %v700 = vshrl.u32 %v699, 7
      %v701 = vsub.s32 0, %v700
      %v702 = vrot.slane %v365, %v701
      %v703 = vlaneseq
      %v704 = vshrl.u32 %v703, 7
      %v705 = vsub.s32 1, %v704
      %v706 = vrot.slane %v365, %v705
      %v709 = vsel %vm634, %v702, 1e+30
      %v710 = vsel %vm635, %v706, 1e+30
      %v711 = vsel %vm636, %v702, 1e+30
      %v712 = vsel %vm637, %v706, 1e+30
      %v713 = vsel %vm638, %v702, 1e+30
      %v714 = vsel %vm639, %v706, 1e+30
      %v715 = vsel %vm640, %v702, 1e+30
      %v716 = vsel %vm641, %v706, 1e+30
      %v717 = vsel %vm642, %v702, 1e+30
      %v718 = vsel %vm643, %v706, 1e+30
      %v719 = vsel %vm644, %v702, 1e+30
      %v720 = vsel %vm645, %v706, 1e+30
      %v721 = vsel %vm646, %v702, 1e+30
      %v722 = vsel %vm647, %v706, 1e+30
      %v723 = vsel %vm648, %v702, 1e+30
      %v724 = vsel %vm649, %v706, 1e+30
      %v725 = vsel %vm650, %v702, 1e+30
      %v726 = vsel %vm651, %v706, 1e+30
      %v727 = vsel %vm652, %v702, 1e+30
      %v728 = vsel %vm653, %v706, 1e+30
      %v729 = vsel %vm654, %v702, 1e+30
      %v730 = vsel %vm655, %v706, 1e+30
      %v731 = vsel %vm656, %v702, 1e+30
      %v732 = vsel %vm657, %v706, 1e+30
      %v733 = vsel %vm658, %v702, 1e+30
      %v734 = vsel %vm659, %v706, 1e+30
      %v735 = vsel %vm660, %v702, 1e+30
      %v736 = vsel %vm661, %v706, 1e+30
      %v737 = vsel %vm662, %v702, 1e+30
      %v738 = vsel %vm663, %v706, 1e+30
      %v739 = vsel %vm664, %v702, 1e+30
      %v740 = vsel %vm665, %v706, 1e+30
      %v741 = vsel %vm666, %v702, 1e+30
      %v742 = vsel %vm667, %v706, 1e+30
      %v743 = vsel %vm668, %v702, 1e+30
      %v744 = vsel %vm669, %v706, 1e+30
      %v745 = vsel %vm670, %v702, 1e+30
      %v746 = vsel %vm671, %v706, 1e+30
      %v747 = vsel %vm672, %v702, 1e+30
      %v748 = vsel %vm673, %v706, 1e+30
      %v749 = vsel %vm674, %v702, 1e+30
      %v750 = vsel %vm675, %v706, 1e+30
      %v751 = vsel %vm676, %v702, 1e+30
      %v752 = vsel %vm677, %v706, 1e+30
      %v753 = vsel %vm678, %v702, 1e+30
      %v754 = vsel %vm679, %v706, 1e+30
      %v755 = vsel %vm680, %v702, 1e+30
      %v756 = vsel %vm681, %v706, 1e+30
      %v757 = vsel %vm682, %v702, 1e+30
      %v758 = vsel %vm683, %v706, 1e+30
      %v759 = vsel %vm684, %v702, 1e+30
      %v760 = vsel %vm685, %v706, 1e+30
      %v761 = vsel %vm686, %v702, 1e+30
      %v762 = vsel %vm687, %v706, 1e+30
      %v763 = vsel %vm688, %v702, 1e+30
      %v764 = vsel %vm689, %v706, 1e+30
      %v765 = vsel %vm690, %v702, 1e+30
      %v766 = vsel %vm691, %v706, 1e+30
      %v767 = vsel %vm692, %v702, 1e+30
      %v768 = vsel %vm693, %v706, 1e+30
      %v769 = vsel %vm694, %v702, 1e+30
      %v770 = vsel %vm695, %v706, 1e+30
      %v771 = vsel %vm696, %v702, 1e+30
      %v772 = vsel %vm697, %v706, 1e+30
      %774 = vset.pattern.permute.xlu0 0
      %775 = vperm.xlu0 %774, %v332
      %v776 = vpop.permute.xlu0 %775
      %779 = vset.pattern.permute.xlu0 0
      %780 = vperm.xlu0 %779, %v333
      %v781 = vpop.permute.xlu0 %780
      %784 = vset.pattern.permute.xlu0 0
      %785 = vperm.xlu0 %784, %v334
      %v786 = vpop.permute.xlu0 %785
      %789 = vset.pattern.permute.xlu0 0
      %790 = vperm.xlu0 %789, %v335
      %v791 = vpop.permute.xlu0 %790
      %794 = vset.pattern.permute.xlu0 0
      %795 = vperm.xlu0 %794, %v336
      %v796 = vpop.permute.xlu0 %795
      %799 = vset.pattern.permute.xlu0 0
      %800 = vperm.xlu0 %799, %v337
      %v801 = vpop.permute.xlu0 %800
      %804 = vset.pattern.permute.xlu0 0
      %805 = vperm.xlu0 %804, %v338
      %v806 = vpop.permute.xlu0 %805
      %809 = vset.pattern.permute.xlu0 0
      %810 = vperm.xlu0 %809, %v339
      %v811 = vpop.permute.xlu0 %810
      %814 = vset.pattern.permute.xlu0 0
      %815 = vperm.xlu0 %814, %v340
      %v816 = vpop.permute.xlu0 %815
      %819 = vset.pattern.permute.xlu0 0
      %820 = vperm.xlu0 %819, %v341
      %v821 = vpop.permute.xlu0 %820
      %824 = vset.pattern.permute.xlu0 0
      %825 = vperm.xlu0 %824, %v342
      %v826 = vpop.permute.xlu0 %825
      %829 = vset.pattern.permute.xlu0 0
      %830 = vperm.xlu0 %829, %v343
      %v831 = vpop.permute.xlu0 %830
      %834 = vset.pattern.permute.xlu0 0
      %835 = vperm.xlu0 %834, %v344
      %v836 = vpop.permute.xlu0 %835
      %839 = vset.pattern.permute.xlu0 0
      %840 = vperm.xlu0 %839, %v345
      %v841 = vpop.permute.xlu0 %840
      %844 = vset.pattern.permute.xlu0 0
      %845 = vperm.xlu0 %844, %v346
      %v846 = vpop.permute.xlu0 %845
      %849 = vset.pattern.permute.xlu0 0
      %850 = vperm.xlu0 %849, %v347
      %v851 = vpop.permute.xlu0 %850
      %854 = vset.pattern.permute.xlu0 0
      %855 = vperm.xlu0 %854, %v348
      %v856 = vpop.permute.xlu0 %855
      %859 = vset.pattern.permute.xlu0 0
      %860 = vperm.xlu0 %859, %v349
      %v861 = vpop.permute.xlu0 %860
      %864 = vset.pattern.permute.xlu0 0
      %865 = vperm.xlu0 %864, %v350
      %v866 = vpop.permute.xlu0 %865
      %869 = vset.pattern.permute.xlu0 0
      %870 = vperm.xlu0 %869, %v351
      %v871 = vpop.permute.xlu0 %870
      %874 = vset.pattern.permute.xlu0 0
      %875 = vperm.xlu0 %874, %v352
      %v876 = vpop.permute.xlu0 %875
      %879 = vset.pattern.permute.xlu0 0
      %880 = vperm.xlu0 %879, %v353
      %v881 = vpop.permute.xlu0 %880
      %884 = vset.pattern.permute.xlu0 0
      %885 = vperm.xlu0 %884, %v354
      %v886 = vpop.permute.xlu0 %885
      %889 = vset.pattern.permute.xlu0 0
      %890 = vperm.xlu0 %889, %v355
      %v891 = vpop.permute.xlu0 %890
      %894 = vset.pattern.permute.xlu0 0
      %895 = vperm.xlu0 %894, %v356
      %v896 = vpop.permute.xlu0 %895
      %899 = vset.pattern.permute.xlu0 0
      %900 = vperm.xlu0 %899, %v357
      %v901 = vpop.permute.xlu0 %900
      %904 = vset.pattern.permute.xlu0 0
      %905 = vperm.xlu0 %904, %v358
      %v906 = vpop.permute.xlu0 %905
      %909 = vset.pattern.permute.xlu0 0
      %910 = vperm.xlu0 %909, %v359
      %v911 = vpop.permute.xlu0 %910
      %914 = vset.pattern.permute.xlu0 0
      %915 = vperm.xlu0 %914, %v360
      %v916 = vpop.permute.xlu0 %915
      %919 = vset.pattern.permute.xlu0 0
      %920 = vperm.xlu0 %919, %v361
      %v921 = vpop.permute.xlu0 %920
      %924 = vset.pattern.permute.xlu0 0
      %925 = vperm.xlu0 %924, %v362
      %v926 = vpop.permute.xlu0 %925
      %929 = vset.pattern.permute.xlu0 0
      %930 = vperm.xlu0 %929, %v363
      %v931 = vpop.permute.xlu0 %930
      %v933 = vsel %vm562, %v776, %v709
      %v934 = vsel %vm563, %v776, %v710
      %v935 = vsel %vm564, %v781, %v711
      %v936 = vsel %vm565, %v781, %v712
      %v937 = vsel %vm566, %v786, %v713
      %v938 = vsel %vm567, %v786, %v714
      %v939 = vsel %vm568, %v791, %v715
      %v940 = vsel %vm569, %v791, %v716
      %v941 = vsel %vm570, %v796, %v717
      %v942 = vsel %vm571, %v796, %v718
      %v943 = vsel %vm572, %v801, %v719
      %v944 = vsel %vm573, %v801, %v720
      %v945 = vsel %vm574, %v806, %v721
      %v946 = vsel %vm575, %v806, %v722
      %v947 = vsel %vm576, %v811, %v723
      %v948 = vsel %vm577, %v811, %v724
      %v949 = vsel %vm578, %v816, %v725
      %v950 = vsel %vm579, %v816, %v726
      %v951 = vsel %vm580, %v821, %v727
      %v952 = vsel %vm581, %v821, %v728
      %v953 = vsel %vm582, %v826, %v729
      %v954 = vsel %vm583, %v826, %v730
      %v955 = vsel %vm584, %v831, %v731
      %v956 = vsel %vm585, %v831, %v732
      %v957 = vsel %vm586, %v836, %v733
      %v958 = vsel %vm587, %v836, %v734
      %v959 = vsel %vm588, %v841, %v735
      %v960 = vsel %vm589, %v841, %v736
      %v961 = vsel %vm590, %v846, %v737
      %v962 = vsel %vm591, %v846, %v738
      %v963 = vsel %vm592, %v851, %v739
      %v964 = vsel %vm593, %v851, %v740
      %v965 = vsel %vm594, %v856, %v741
      %v966 = vsel %vm595, %v856, %v742
      %v967 = vsel %vm596, %v861, %v743
      %v968 = vsel %vm597, %v861, %v744
      %v969 = vsel %vm598, %v866, %v745
      %v970 = vsel %vm599, %v866, %v746
      %v971 = vsel %vm600, %v871, %v747
      %v972 = vsel %vm601, %v871, %v748
      %v973 = vsel %vm602, %v876, %v749
      %v974 = vsel %vm603, %v876, %v750
      %v975 = vsel %vm604, %v881, %v751
      %v976 = vsel %vm605, %v881, %v752
      %v977 = vsel %vm606, %v886, %v753
      %v978 = vsel %vm607, %v886, %v754
      %v979 = vsel %vm608, %v891, %v755
      %v980 = vsel %vm609, %v891, %v756
      %v981 = vsel %vm610, %v896, %v757
      %v982 = vsel %vm611, %v896, %v758
      %v983 = vsel %vm612, %v901, %v759
      %v984 = vsel %vm613, %v901, %v760
      %v985 = vsel %vm614, %v906, %v761
      %v986 = vsel %vm615, %v906, %v762
      %v987 = vsel %vm616, %v911, %v763
      %v988 = vsel %vm617, %v911, %v764
      %v989 = vsel %vm618, %v916, %v765
      %v990 = vsel %vm619, %v916, %v766
      %v991 = vsel %vm620, %v921, %v767
      %v992 = vsel %vm621, %v921, %v768
      %v993 = vsel %vm622, %v926, %v769
      %v994 = vsel %vm623, %v926, %v770
      %v995 = vsel %vm624, %v931, %v771
      %v996 = vsel %vm625, %v931, %v772
      %v997 = vsel %vm402, 0.0, %v933
      %v998 = vsel %vm403, 0.0, %v934
      %v999 = vsel %vm404, 0.0, %v935
      %v1000 = vsel %vm405, 0.0, %v936
      %v1001 = vsel %vm406, 0.0, %v937
      %v1002 = vsel %vm407, 0.0, %v938
      %v1003 = vsel %vm408, 0.0, %v939
      %v1004 = vsel %vm409, 0.0, %v940
      %v1005 = vsel %vm410, 0.0, %v941
      %v1006 = vsel %vm411, 0.0, %v942
      %v1007 = vsel %vm412, 0.0, %v943
      %v1008 = vsel %vm413, 0.0, %v944
      %v1009 = vsel %vm414, 0.0, %v945
      %v1010 = vsel %vm415, 0.0, %v946
      %v1011 = vsel %vm416, 0.0, %v947
      %v1012 = vsel %vm417, 0.0, %v948
      %v1013 = vsel %vm418, 0.0, %v949
      %v1014 = vsel %vm419, 0.0, %v950
      %v1015 = vsel %vm420, 0.0, %v951
      %v1016 = vsel %vm421, 0.0, %v952
      %v1017 = vsel %vm422, 0.0, %v953
      %v1018 = vsel %vm423, 0.0, %v954
      %v1019 = vsel %vm424, 0.0, %v955
      %v1020 = vsel %vm425, 0.0, %v956
      %v1021 = vsel %vm426, 0.0, %v957
      %v1022 = vsel %vm427, 0.0, %v958
      %v1023 = vsel %vm428, 0.0, %v959
      %v1024 = vsel %vm429, 0.0, %v960
      %v1025 = vsel %vm430, 0.0, %v961
      %v1026 = vsel %vm431, 0.0, %v962
      %v1027 = vsel %vm432, 0.0, %v963
      %v1028 = vsel %vm433, 0.0, %v964
      %v1029 = vsel %vm434, 0.0, %v965
      %v1030 = vsel %vm435, 0.0, %v966
      %v1031 = vsel %vm436, 0.0, %v967
      %v1032 = vsel %vm437, 0.0, %v968
      %v1033 = vsel %vm438, 0.0, %v969
      %v1034 = vsel %vm439, 0.0, %v970
      %v1035 = vsel %vm440, 0.0, %v971
      %v1036 = vsel %vm441, 0.0, %v972
      %v1037 = vsel %vm442, 0.0, %v973
      %v1038 = vsel %vm443, 0.0, %v974
      %v1039 = vsel %vm444, 0.0, %v975
      %v1040 = vsel %vm445, 0.0, %v976
      %v1041 = vsel %vm446, 0.0, %v977
      %v1042 = vsel %vm447, 0.0, %v978
      %v1043 = vsel %vm448, 0.0, %v979
      %v1044 = vsel %vm449, 0.0, %v980
      %v1045 = vsel %vm450, 0.0, %v981
      %v1046 = vsel %vm451, 0.0, %v982
      %v1047 = vsel %vm452, 0.0, %v983
      %v1048 = vsel %vm453, 0.0, %v984
      %v1049 = vsel %vm454, 0.0, %v985
      %v1050 = vsel %vm455, 0.0, %v986
      %v1051 = vsel %vm456, 0.0, %v987
      %v1052 = vsel %vm457, 0.0, %v988
      %v1053 = vsel %vm458, 0.0, %v989
      %v1054 = vsel %vm459, 0.0, %v990
      %v1055 = vsel %vm460, 0.0, %v991
      %v1056 = vsel %vm461, 0.0, %v992
      %v1057 = vsel %vm462, 0.0, %v993
      %v1058 = vsel %vm463, 0.0, %v994
      %v1059 = vsel %vm464, 0.0, %v995
      %v1060 = vsel %vm465, 0.0, %v996
      %1061 = vst [vmem:[#allocation2] sm:$0xff] %v997
      %1062 = vst [vmem:[#allocation2 + $0x8] sm:$0xff] %v998
      %1063 = vst [vmem:[#allocation2 + $0x10] sm:$0xff] %v999
      %1064 = vst [vmem:[#allocation2 + $0x18] sm:$0xff] %v1000
      %1065 = vst [vmem:[#allocation2 + $0x20] sm:$0xff] %v1001
      %1066 = vst [vmem:[#allocation2 + $0x28] sm:$0xff] %v1002
      %1067 = vst [vmem:[#allocation2 + $0x30] sm:$0xff] %v1003
      %1068 = vst [vmem:[#allocation2 + $0x38] sm:$0xff] %v1004
      %1069 = vst [vmem:[#allocation2 + $0x40] sm:$0xff] %v1005
      %1070 = vst [vmem:[#allocation2 + $0x48] sm:$0xff] %v1006
      %1071 = vst [vmem:[#allocation2 + $0x50] sm:$0xff] %v1007
      %1072 = vst [vmem:[#allocation2 + $0x58] sm:$0xff] %v1008
      %1073 = vst [vmem:[#allocation2 + $0x60] sm:$0xff] %v1009
      %1074 = vst [vmem:[#allocation2 + $0x68] sm:$0xff] %v1010
      %1075 = vst [vmem:[#allocation2 + $0x70] sm:$0xff] %v1011
      %1076 = vst [vmem:[#allocation2 + $0x78] sm:$0xff] %v1012
      %1077 = vst [vmem:[#allocation2 + $0x80] sm:$0xff] %v1013
      %1078 = vst [vmem:[#allocation2 + $0x88] sm:$0xff] %v1014
      %1079 = vst [vmem:[#allocation2 + $0x90] sm:$0xff] %v1015
      %1080 = vst [vmem:[#allocation2 + $0x98] sm:$0xff] %v1016
      %1081 = vst [vmem:[#allocation2 + $0xa0] sm:$0xff] %v1017
      %1082 = vst [vmem:[#allocation2 + $0xa8] sm:$0xff] %v1018
      %1083 = vst [vmem:[#allocation2 + $0xb0] sm:$0xff] %v1019
      %1084 = vst [vmem:[#allocation2 + $0xb8] sm:$0xff] %v1020
      %1085 = vst [vmem:[#allocation2 + $0xc0] sm:$0xff] %v1021
      %1086 = vst [vmem:[#allocation2 + $0xc8] sm:$0xff] %v1022
      %1087 = vst [vmem:[#allocation2 + $0xd0] sm:$0xff] %v1023
      %1088 = vst [vmem:[#allocation2 + $0xd8] sm:$0xff] %v1024
      %1089 = vst [vmem:[#allocation2 + $0xe0] sm:$0xff] %v1025
      %1090 = vst [vmem:[#allocation2 + $0xe8] sm:$0xff] %v1026
      %1091 = vst [vmem:[#allocation2 + $0xf0] sm:$0xff] %v1027
      %1092 = vst [vmem:[#allocation2 + $0xf8] sm:$0xff] %v1028
      %1093 = vst [vmem:[#allocation2 + $0x100] sm:$0xff] %v1029
      %1094 = vst [vmem:[#allocation2 + $0x108] sm:$0xff] %v1030
      %1095 = vst [vmem:[#allocation2 + $0x110] sm:$0xff] %v1031
      %1096 = vst [vmem:[#allocation2 + $0x118] sm:$0xff] %v1032
      %1097 = vst [vmem:[#allocation2 + $0x120] sm:$0xff] %v1033
      %1098 = vst [vmem:[#allocation2 + $0x128] sm:$0xff] %v1034
      %1099 = vst [vmem:[#allocation2 + $0x130] sm:$0xff] %v1035
      %1100 = vst [vmem:[#allocation2 + $0x138] sm:$0xff] %v1036
      %1101 = vst [vmem:[#allocation2 + $0x140] sm:$0xff] %v1037
      %1102 = vst [vmem:[#allocation2 + $0x148] sm:$0xff] %v1038
      %1103 = vst [vmem:[#allocation2 + $0x150] sm:$0xff] %v1039
      %1104 = vst [vmem:[#allocation2 + $0x158] sm:$0xff] %v1040
      %1105 = vst [vmem:[#allocation2 + $0x160] sm:$0xff] %v1041
      %1106 = vst [vmem:[#allocation2 + $0x168] sm:$0xff] %v1042
      %1107 = vst [vmem:[#allocation2 + $0x170] sm:$0xff] %v1043
      %1108 = vst [vmem:[#allocation2 + $0x178] sm:$0xff] %v1044
      %1109 = vst [vmem:[#allocation2 + $0x180] sm:$0xff] %v1045
      %1110 = vst [vmem:[#allocation2 + $0x188] sm:$0xff] %v1046
      %1111 = vst [vmem:[#allocation2 + $0x190] sm:$0xff] %v1047
      %1112 = vst [vmem:[#allocation2 + $0x198] sm:$0xff] %v1048
      %1113 = vst [vmem:[#allocation2 + $0x1a0] sm:$0xff] %v1049
      %1114 = vst [vmem:[#allocation2 + $0x1a8] sm:$0xff] %v1050
      %1115 = vst [vmem:[#allocation2 + $0x1b0] sm:$0xff] %v1051
      %1116 = vst [vmem:[#allocation2 + $0x1b8] sm:$0xff] %v1052
      %1117 = vst [vmem:[#allocation2 + $0x1c0] sm:$0xff] %v1053
      %1118 = vst [vmem:[#allocation2 + $0x1c8] sm:$0xff] %v1054
      %1119 = vst [vmem:[#allocation2 + $0x1d0] sm:$0xff] %v1055
      %1120 = vst [vmem:[#allocation2 + $0x1d8] sm:$0xff] %v1056
      %1121 = vst [vmem:[#allocation2 + $0x1e0] sm:$0xff] %v1057
      %1122 = vst [vmem:[#allocation2 + $0x1e8] sm:$0xff] %v1058
      %1123 = vst [vmem:[#allocation2 + $0x1f0] sm:$0xff] %v1059
      %1124 = vst [vmem:[#allocation2 + $0x1f8] sm:$0xff] %v1060
      loop: start=0, step=1, limit=256
      $region41: #{tree_energy_loss.2} parent=39 // loop_pre_header
        _
      $region42: #{tree_energy_loss.2} parent=39 // loop_header
        %s1126 = sphi 0, %s1130
        %p1127 = scmp.ge.s32.totalorder %s1126, 256
      $region43: #{tree_energy_loss.2} parent=39 // loop_header_branch
        %1129 = sbr.rel (%p1127) target = $region47
      $region44: #{tree_energy_loss.2} parent=39 // loop_body
        %v1131 = vld [vmem:[#allocation2] sm:$0xff]
        %v1132 = vld [vmem:[#allocation2 + $0x8] sm:$0xff]
        %v1133 = vld [vmem:[#allocation2 + $0x10] sm:$0xff]
        %v1134 = vld [vmem:[#allocation2 + $0x18] sm:$0xff]
        %v1135 = vld [vmem:[#allocation2 + $0x20] sm:$0xff]
        %v1136 = vld [vmem:[#allocation2 + $0x28] sm:$0xff]
        %v1137 = vld [vmem:[#allocation2 + $0x30] sm:$0xff]
        %v1138 = vld [vmem:[#allocation2 + $0x38] sm:$0xff]
        %v1139 = vld [vmem:[#allocation2 + $0x40] sm:$0xff]
        %v1140 = vld [vmem:[#allocation2 + $0x48] sm:$0xff]
        %v1141 = vld [vmem:[#allocation2 + $0x50] sm:$0xff]
        %v1142 = vld [vmem:[#allocation2 + $0x58] sm:$0xff]
        %v1143 = vld [vmem:[#allocation2 + $0x60] sm:$0xff]
        %v1144 = vld [vmem:[#allocation2 + $0x68] sm:$0xff]
        %v1145 = vld [vmem:[#allocation2 + $0x70] sm:$0xff]
        %v1146 = vld [vmem:[#allocation2 + $0x78] sm:$0xff]
        %v1147 = vld [vmem:[#allocation2 + $0x80] sm:$0xff]
        %v1148 = vld [vmem:[#allocation2 + $0x88] sm:$0xff]
        %v1149 = vld [vmem:[#allocation2 + $0x90] sm:$0xff]
        %v1150 = vld [vmem:[#allocation2 + $0x98] sm:$0xff]
        %v1151 = vld [vmem:[#allocation2 + $0xa0] sm:$0xff]
        %v1152 = vld [vmem:[#allocation2 + $0xa8] sm:$0xff]
        %v1153 = vld [vmem:[#allocation2 + $0xb0] sm:$0xff]
        %v1154 = vld [vmem:[#allocation2 + $0xb8] sm:$0xff]
        %v1155 = vld [vmem:[#allocation2 + $0xc0] sm:$0xff]
        %v1156 = vld [vmem:[#allocation2 + $0xc8] sm:$0xff]
        %v1157 = vld [vmem:[#allocation2 + $0xd0] sm:$0xff]
        %v1158 = vld [vmem:[#allocation2 + $0xd8] sm:$0xff]
        %v1159 = vld [vmem:[#allocation2 + $0xe0] sm:$0xff]
        %v1160 = vld [vmem:[#allocation2 + $0xe8] sm:$0xff]
        %v1161 = vld [vmem:[#allocation2 + $0xf0] sm:$0xff]
        %v1162 = vld [vmem:[#allocation2 + $0xf8] sm:$0xff]
        %v1163 = vld [vmem:[#allocation2 + $0x100] sm:$0xff]
        %v1164 = vld [vmem:[#allocation2 + $0x108] sm:$0xff]
        %v1165 = vld [vmem:[#allocation2 + $0x110] sm:$0xff]
        %v1166 = vld [vmem:[#allocation2 + $0x118] sm:$0xff]
        %v1167 = vld [vmem:[#allocation2 + $0x120] sm:$0xff]
        %v1168 = vld [vmem:[#allocation2 + $0x128] sm:$0xff]
        %v1169 = vld [vmem:[#allocation2 + $0x130] sm:$0xff]
        %v1170 = vld [vmem:[#allocation2 + $0x138] sm:$0xff]
        %v1171 = vld [vmem:[#allocation2 + $0x140] sm:$0xff]
        %v1172 = vld [vmem:[#allocation2 + $0x148] sm:$0xff]
        %v1173 = vld [vmem:[#allocation2 + $0x150] sm:$0xff]
        %v1174 = vld [vmem:[#allocation2 + $0x158] sm:$0xff]
        %v1175 = vld [vmem:[#allocation2 + $0x160] sm:$0xff]
        %v1176 = vld [vmem:[#allocation2 + $0x168] sm:$0xff]
        %v1177 = vld [vmem:[#allocation2 + $0x170] sm:$0xff]
        %v1178 = vld [vmem:[#allocation2 + $0x178] sm:$0xff]
        %v1179 = vld [vmem:[#allocation2 + $0x180] sm:$0xff]
        %v1180 = vld [vmem:[#allocation2 + $0x188] sm:$0xff]
        %v1181 = vld [vmem:[#allocation2 + $0x190] sm:$0xff]
        %v1182 = vld [vmem:[#allocation2 + $0x198] sm:$0xff]
        %v1183 = vld [vmem:[#allocation2 + $0x1a0] sm:$0xff]
        %v1184 = vld [vmem:[#allocation2 + $0x1a8] sm:$0xff]
        %v1185 = vld [vmem:[#allocation2 + $0x1b0] sm:$0xff]
        %v1186 = vld [vmem:[#allocation2 + $0x1b8] sm:$0xff]
        %v1187 = vld [vmem:[#allocation2 + $0x1c0] sm:$0xff]
        %v1188 = vld [vmem:[#allocation2 + $0x1c8] sm:$0xff]
        %v1189 = vld [vmem:[#allocation2 + $0x1d0] sm:$0xff]
        %v1190 = vld [vmem:[#allocation2 + $0x1d8] sm:$0xff]
        %v1191 = vld [vmem:[#allocation2 + $0x1e0] sm:$0xff]
        %v1192 = vld [vmem:[#allocation2 + $0x1e8] sm:$0xff]
        %v1193 = vld [vmem:[#allocation2 + $0x1f0] sm:$0xff]
        %v1194 = vld [vmem:[#allocation2 + $0x1f8] sm:$0xff]
        %v1195 = vstv %s1126
        %vm1196 = vcmp.eq.s32.totalorder %v400, %v1195
        %vm1197 = vcmp.eq.s32.totalorder %v401, %v1195
        %v1198 = vsel %vm1196, 1, 0
        %v1199 = vsel %vm1197, 1, 0
        %vm1200 = vcmp.eq.s32.totalorder %v1198, 1
        %vm1201 = vcmp.eq.s32.totalorder %v1199, 1
        %v1202 = vsel %vm1200, %v1131, 0.0
        %v1203 = vsel %vm1201, %v1132, 0.0
        %v1204 = vsel %vm1200, %v1133, 0.0
        %v1205 = vsel %vm1201, %v1134, 0.0
        %v1206 = vsel %vm1200, %v1135, 0.0
        %v1207 = vsel %vm1201, %v1136, 0.0
        %v1208 = vsel %vm1200, %v1137, 0.0
        %v1209 = vsel %vm1201, %v1138, 0.0
        %v1210 = vsel %vm1200, %v1139, 0.0
        %v1211 = vsel %vm1201, %v1140, 0.0
        %v1212 = vsel %vm1200, %v1141, 0.0
        %v1213 = vsel %vm1201, %v1142, 0.0
        %v1214 = vsel %vm1200, %v1143, 0.0
        %v1215 = vsel %vm1201, %v1144, 0.0
        %v1216 = vsel %vm1200, %v1145, 0.0
        %v1217 = vsel %vm1201, %v1146, 0.0
        %v1218 = vsel %vm1200, %v1147, 0.0
        %v1219 = vsel %vm1201, %v1148, 0.0
        %v1220 = vsel %vm1200, %v1149, 0.0
        %v1221 = vsel %vm1201, %v1150, 0.0
        %v1222 = vsel %vm1200, %v1151, 0.0
        %v1223 = vsel %vm1201, %v1152, 0.0
        %v1224 = vsel %vm1200, %v1153, 0.0
        %v1225 = vsel %vm1201, %v1154, 0.0
        %v1226 = vsel %vm1200, %v1155, 0.0
        %v1227 = vsel %vm1201, %v1156, 0.0
        %v1228 = vsel %vm1200, %v1157, 0.0
        %v1229 = vsel %vm1201, %v1158, 0.0
        %v1230 = vsel %vm1200, %v1159, 0.0
        %v1231 = vsel %vm1201, %v1160, 0.0
        %v1232 = vsel %vm1200, %v1161, 0.0
        %v1233 = vsel %vm1201, %v1162, 0.0
        %v1234 = vsel %vm1200, %v1163, 0.0
        %v1235 = vsel %vm1201, %v1164, 0.0
        %v1236 = vsel %vm1200, %v1165, 0.0
        %v1237 = vsel %vm1201, %v1166, 0.0
        %v1238 = vsel %vm1200, %v1167, 0.0
        %v1239 = vsel %vm1201, %v1168, 0.0
        %v1240 = vsel %vm1200, %v1169, 0.0
        %v1241 = vsel %vm1201, %v1170, 0.0
        %v1242 = vsel %vm1200, %v1171, 0.0
        %v1243 = vsel %vm1201, %v1172, 0.0
        %v1244 = vsel %vm1200, %v1173, 0.0
        %v1245 = vsel %vm1201, %v1174, 0.0
        %v1246 = vsel %vm1200, %v1175, 0.0
        %v1247 = vsel %vm1201, %v1176, 0.0
        %v1248 = vsel %vm1200, %v1177, 0.0
        %v1249 = vsel %vm1201, %v1178, 0.0
        %v1250 = vsel %vm1200, %v1179, 0.0
        %v1251 = vsel %vm1201, %v1180, 0.0
        %v1252 = vsel %vm1200, %v1181, 0.0
        %v1253 = vsel %vm1201, %v1182, 0.0
        %v1254 = vsel %vm1200, %v1183, 0.0
        %v1255 = vsel %vm1201, %v1184, 0.0
        %v1256 = vsel %vm1200, %v1185, 0.0
        %v1257 = vsel %vm1201, %v1186, 0.0
        %v1258 = vsel %vm1200, %v1187, 0.0
        %v1259 = vsel %vm1201, %v1188, 0.0
        %v1260 = vsel %vm1200, %v1189, 0.0
        %v1261 = vsel %vm1201, %v1190, 0.0
        %v1262 = vsel %vm1200, %v1191, 0.0
        %v1263 = vsel %vm1201, %v1192, 0.0
        %v1264 = vsel %vm1200, %v1193, 0.0
        %v1265 = vsel %vm1201, %v1194, 0.0
        %v1266 = vadd.f32 %v1202, %v1203
        %1267 = vadd.xlane.f32.xlu0 %v1266
        %v1268 = vpop.xlane.xlu0 %1267
        %v1269 = vadd.f32 %v1204, %v1205
        %1270 = vadd.xlane.f32.xlu0 %v1269
        %v1271 = vpop.xlane.xlu0 %1270
        %v1272 = vadd.f32 %v1206, %v1207
        %1273 = vadd.xlane.f32.xlu0 %v1272
        %v1274 = vpop.xlane.xlu0 %1273
        %v1275 = vadd.f32 %v1208, %v1209
        %1276 = vadd.xlane.f32.xlu0 %v1275
        %v1277 = vpop.xlane.xlu0 %1276
        %v1278 = vadd.f32 %v1210, %v1211
        %1279 = vadd.xlane.f32.xlu0 %v1278
        %v1280 = vpop.xlane.xlu0 %1279
        %v1281 = vadd.f32 %v1212, %v1213
        %1282 = vadd.xlane.f32.xlu0 %v1281
        %v1283 = vpop.xlane.xlu0 %1282
        %v1284 = vadd.f32 %v1214, %v1215
        %1285 = vadd.xlane.f32.xlu0 %v1284
        %v1286 = vpop.xlane.xlu0 %1285
        %v1287 = vadd.f32 %v1216, %v1217
        %1288 = vadd.xlane.f32.xlu0 %v1287
        %v1289 = vpop.xlane.xlu0 %1288
        %v1290 = vadd.f32 %v1218, %v1219
        %1291 = vadd.xlane.f32.xlu0 %v1290
        %v1292 = vpop.xlane.xlu0 %1291
        %v1293 = vadd.f32 %v1220, %v1221
        %1294 = vadd.xlane.f32.xlu0 %v1293
        %v1295 = vpop.xlane.xlu0 %1294
        %v1296 = vadd.f32 %v1222, %v1223
        %1297 = vadd.xlane.f32.xlu0 %v1296
        %v1298 = vpop.xlane.xlu0 %1297
        %v1299 = vadd.f32 %v1224, %v1225
        %1300 = vadd.xlane.f32.xlu0 %v1299
        %v1301 = vpop.xlane.xlu0 %1300
        %v1302 = vadd.f32 %v1226, %v1227
        %1303 = vadd.xlane.f32.xlu0 %v1302
        %v1304 = vpop.xlane.xlu0 %1303
        %v1305 = vadd.f32 %v1228, %v1229
        %1306 = vadd.xlane.f32.xlu0 %v1305
        %v1307 = vpop.xlane.xlu0 %1306
        %v1308 = vadd.f32 %v1230, %v1231
        %1309 = vadd.xlane.f32.xlu0 %v1308
        %v1310 = vpop.xlane.xlu0 %1309
        %v1311 = vadd.f32 %v1232, %v1233
        %1312 = vadd.xlane.f32.xlu0 %v1311
        %v1313 = vpop.xlane.xlu0 %1312
        %v1314 = vadd.f32 %v1234, %v1235
        %1315 = vadd.xlane.f32.xlu0 %v1314
        %v1316 = vpop.xlane.xlu0 %1315
        %v1317 = vadd.f32 %v1236, %v1237
        %1318 = vadd.xlane.f32.xlu0 %v1317
        %v1319 = vpop.xlane.xlu0 %1318
        %v1320 = vadd.f32 %v1238, %v1239
        %1321 = vadd.xlane.f32.xlu0 %v1320
        %v1322 = vpop.xlane.xlu0 %1321
        %v1323 = vadd.f32 %v1240, %v1241
        %1324 = vadd.xlane.f32.xlu0 %v1323
        %v1325 = vpop.xlane.xlu0 %1324
        %v1326 = vadd.f32 %v1242, %v1243
        %1327 = vadd.xlane.f32.xlu0 %v1326
        %v1328 = vpop.xlane.xlu0 %1327
        %v1329 = vadd.f32 %v1244, %v1245
        %1330 = vadd.xlane.f32.xlu0 %v1329
        %v1331 = vpop.xlane.xlu0 %1330
        %v1332 = vadd.f32 %v1246, %v1247
        %1333 = vadd.xlane.f32.xlu0 %v1332
        %v1334 = vpop.xlane.xlu0 %1333
        %v1335 = vadd.f32 %v1248, %v1249
        %1336 = vadd.xlane.f32.xlu0 %v1335
        %v1337 = vpop.xlane.xlu0 %1336
        %v1338 = vadd.f32 %v1250, %v1251
        %1339 = vadd.xlane.f32.xlu0 %v1338
        %v1340 = vpop.xlane.xlu0 %1339
        %v1341 = vadd.f32 %v1252, %v1253
        %1342 = vadd.xlane.f32.xlu0 %v1341
        %v1343 = vpop.xlane.xlu0 %1342
        %v1344 = vadd.f32 %v1254, %v1255
        %1345 = vadd.xlane.f32.xlu0 %v1344
        %v1346 = vpop.xlane.xlu0 %1345
        %v1347 = vadd.f32 %v1256, %v1257
        %1348 = vadd.xlane.f32.xlu0 %v1347
        %v1349 = vpop.xlane.xlu0 %1348
        %v1350 = vadd.f32 %v1258, %v1259
        %1351 = vadd.xlane.f32.xlu0 %v1350
        %v1352 = vpop.xlane.xlu0 %1351
        %v1353 = vadd.f32 %v1260, %v1261
        %1354 = vadd.xlane.f32.xlu0 %v1353
        %v1355 = vpop.xlane.xlu0 %1354
        %v1356 = vadd.f32 %v1262, %v1263
        %1357 = vadd.xlane.f32.xlu0 %v1356
        %v1358 = vpop.xlane.xlu0 %1357
        %v1359 = vadd.f32 %v1264, %v1265
        %1360 = vadd.xlane.f32.xlu0 %v1359
        %v1361 = vpop.xlane.xlu0 %1360
        %vm1362 = vcmp.eq.s32.totalorder %v367, %v1195
        %vm1363 = vcmp.eq.s32.totalorder %v368, %v1195
        %vm1364 = vcmp.eq.s32.totalorder %v369, %v1195
        %vm1365 = vcmp.eq.s32.totalorder %v370, %v1195
        %vm1366 = vcmp.eq.s32.totalorder %v371, %v1195
        %vm1367 = vcmp.eq.s32.totalorder %v372, %v1195
        %vm1368 = vcmp.eq.s32.totalorder %v373, %v1195
        %vm1369 = vcmp.eq.s32.totalorder %v374, %v1195
        %vm1370 = vcmp.eq.s32.totalorder %v375, %v1195
        %vm1371 = vcmp.eq.s32.totalorder %v376, %v1195
        %vm1372 = vcmp.eq.s32.totalorder %v377, %v1195
        %vm1373 = vcmp.eq.s32.totalorder %v378, %v1195
        %vm1374 = vcmp.eq.s32.totalorder %v379, %v1195
        %vm1375 = vcmp.eq.s32.totalorder %v380, %v1195
        %vm1376 = vcmp.eq.s32.totalorder %v381, %v1195
        %vm1377 = vcmp.eq.s32.totalorder %v382, %v1195
        %vm1378 = vcmp.eq.s32.totalorder %v383, %v1195
        %vm1379 = vcmp.eq.s32.totalorder %v384, %v1195
        %vm1380 = vcmp.eq.s32.totalorder %v385, %v1195
        %vm1381 = vcmp.eq.s32.totalorder %v386, %v1195
        %vm1382 = vcmp.eq.s32.totalorder %v387, %v1195
        %vm1383 = vcmp.eq.s32.totalorder %v388, %v1195
        %vm1384 = vcmp.eq.s32.totalorder %v389, %v1195
        %vm1385 = vcmp.eq.s32.totalorder %v390, %v1195
        %vm1386 = vcmp.eq.s32.totalorder %v391, %v1195
        %vm1387 = vcmp.eq.s32.totalorder %v392, %v1195
        %vm1388 = vcmp.eq.s32.totalorder %v393, %v1195
        %vm1389 = vcmp.eq.s32.totalorder %v394, %v1195
        %vm1390 = vcmp.eq.s32.totalorder %v395, %v1195
        %vm1391 = vcmp.eq.s32.totalorder %v396, %v1195
        %vm1392 = vcmp.eq.s32.totalorder %v397, %v1195
        %vm1393 = vcmp.eq.s32.totalorder %v398, %v1195
        %v1394 = vsel %vm1362, 1, 0
        %v1395 = vsel %vm1363, 1, 0
        %v1396 = vsel %vm1364, 1, 0
        %v1397 = vsel %vm1365, 1, 0
        %v1398 = vsel %vm1366, 1, 0
        %v1399 = vsel %vm1367, 1, 0
        %v1400 = vsel %vm1368, 1, 0
        %v1401 = vsel %vm1369, 1, 0
        %v1402 = vsel %vm1370, 1, 0
        %v1403 = vsel %vm1371, 1, 0
        %v1404 = vsel %vm1372, 1, 0
        %v1405 = vsel %vm1373, 1, 0
        %v1406 = vsel %vm1374, 1, 0
        %v1407 = vsel %vm1375, 1, 0
        %v1408 = vsel %vm1376, 1, 0
        %v1409 = vsel %vm1377, 1, 0
        %v1410 = vsel %vm1378, 1, 0
        %v1411 = vsel %vm1379, 1, 0
        %v1412 = vsel %vm1380, 1, 0
        %v1413 = vsel %vm1381, 1, 0
        %v1414 = vsel %vm1382, 1, 0
        %v1415 = vsel %vm1383, 1, 0
        %v1416 = vsel %vm1384, 1, 0
        %v1417 = vsel %vm1385, 1, 0
        %v1418 = vsel %vm1386, 1, 0
        %v1419 = vsel %vm1387, 1, 0
        %v1420 = vsel %vm1388, 1, 0
        %v1421 = vsel %vm1389, 1, 0
        %v1422 = vsel %vm1390, 1, 0
        %v1423 = vsel %vm1391, 1, 0
        %v1424 = vsel %vm1392, 1, 0
        %v1425 = vsel %vm1393, 1, 0
        %vm1426 = vcmp.eq.s32.totalorder %v1394, 1
        %vm1427 = vcmp.eq.s32.totalorder %v1395, 1
        %vm1428 = vcmp.eq.s32.totalorder %v1396, 1
        %vm1429 = vcmp.eq.s32.totalorder %v1397, 1
        %vm1430 = vcmp.eq.s32.totalorder %v1398, 1
        %vm1431 = vcmp.eq.s32.totalorder %v1399, 1
        %vm1432 = vcmp.eq.s32.totalorder %v1400, 1
        %vm1433 = vcmp.eq.s32.totalorder %v1401, 1
        %vm1434 = vcmp.eq.s32.totalorder %v1402, 1
        %vm1435 = vcmp.eq.s32.totalorder %v1403, 1
        %vm1436 = vcmp.eq.s32.totalorder %v1404, 1
        %vm1437 = vcmp.eq.s32.totalorder %v1405, 1
        %vm1438 = vcmp.eq.s32.totalorder %v1406, 1
        %vm1439 = vcmp.eq.s32.totalorder %v1407, 1
        %vm1440 = vcmp.eq.s32.totalorder %v1408, 1
        %vm1441 = vcmp.eq.s32.totalorder %v1409, 1
        %vm1442 = vcmp.eq.s32.totalorder %v1410, 1
        %vm1443 = vcmp.eq.s32.totalorder %v1411, 1
        %vm1444 = vcmp.eq.s32.totalorder %v1412, 1
        %vm1445 = vcmp.eq.s32.totalorder %v1413, 1
        %vm1446 = vcmp.eq.s32.totalorder %v1414, 1
        %vm1447 = vcmp.eq.s32.totalorder %v1415, 1
        %vm1448 = vcmp.eq.s32.totalorder %v1416, 1
        %vm1449 = vcmp.eq.s32.totalorder %v1417, 1
        %vm1450 = vcmp.eq.s32.totalorder %v1418, 1
        %vm1451 = vcmp.eq.s32.totalorder %v1419, 1
        %vm1452 = vcmp.eq.s32.totalorder %v1420, 1
        %vm1453 = vcmp.eq.s32.totalorder %v1421, 1
        %vm1454 = vcmp.eq.s32.totalorder %v1422, 1
        %vm1455 = vcmp.eq.s32.totalorder %v1423, 1
        %vm1456 = vcmp.eq.s32.totalorder %v1424, 1
        %vm1457 = vcmp.eq.s32.totalorder %v1425, 1
        %v1458 = vsel %vm1426, %v1131, 0.0
        %v1459 = vsel %vm1426, %v1132, 0.0
        %v1460 = vsel %vm1427, %v1133, 0.0
        %v1461 = vsel %vm1427, %v1134, 0.0
        %v1462 = vsel %vm1428, %v1135, 0.0
        %v1463 = vsel %vm1428, %v1136, 0.0
        %v1464 = vsel %vm1429, %v1137, 0.0
        %v1465 = vsel %vm1429, %v1138, 0.0
        %v1466 = vsel %vm1430, %v1139, 0.0
        %v1467 = vsel %vm1430, %v1140, 0.0
        %v1468 = vsel %vm1431, %v1141, 0.0
        %v1469 = vsel %vm1431, %v1142, 0.0
        %v1470 = vsel %vm1432, %v1143, 0.0
        %v1471 = vsel %vm1432, %v1144, 0.0
        %v1472 = vsel %vm1433, %v1145, 0.0
        %v1473 = vsel %vm1433, %v1146, 0.0
        %v1474 = vsel %vm1434, %v1147, 0.0
        %v1475 = vsel %vm1434, %v1148, 0.0
        %v1476 = vsel %vm1435, %v1149, 0.0
        %v1477 = vsel %vm1435, %v1150, 0.0
        %v1478 = vsel %vm1436, %v1151, 0.0
        %v1479 = vsel %vm1436, %v1152, 0.0
        %v1480 = vsel %vm1437, %v1153, 0.0
        %v1481 = vsel %vm1437, %v1154, 0.0
        %v1482 = vsel %vm1438, %v1155, 0.0
        %v1483 = vsel %vm1438, %v1156, 0.0
        %v1484 = vsel %vm1439, %v1157, 0.0
        %v1485 = vsel %vm1439, %v1158, 0.0
        %v1486 = vsel %vm1440, %v1159, 0.0
        %v1487 = vsel %vm1440, %v1160, 0.0
        %v1488 = vsel %vm1441, %v1161, 0.0
        %v1489 = vsel %vm1441, %v1162, 0.0
        %v1490 = vsel %vm1442, %v1163, 0.0
        %v1491 = vsel %vm1442, %v1164, 0.0
        %v1492 = vsel %vm1443, %v1165, 0.0
        %v1493 = vsel %vm1443, %v1166, 0.0
        %v1494 = vsel %vm1444, %v1167, 0.0
        %v1495 = vsel %vm1444, %v1168, 0.0
        %v1496 = vsel %vm1445, %v1169, 0.0
        %v1497 = vsel %vm1445, %v1170, 0.0
        %v1498 = vsel %vm1446, %v1171, 0.0
        %v1499 = vsel %vm1446, %v1172, 0.0
        %v1500 = vsel %vm1447, %v1173, 0.0
        %v1501 = vsel %vm1447, %v1174, 0.0
        %v1502 = vsel %vm1448, %v1175, 0.0
        %v1503 = vsel %vm1448, %v1176, 0.0
        %v1504 = vsel %vm1449, %v1177, 0.0
        %v1505 = vsel %vm1449, %v1178, 0.0
        %v1506 = vsel %vm1450, %v1179, 0.0
        %v1507 = vsel %vm1450, %v1180, 0.0
        %v1508 = vsel %vm1451, %v1181, 0.0
        %v1509 = vsel %vm1451, %v1182, 0.0
        %v1510 = vsel %vm1452, %v1183, 0.0
        %v1511 = vsel %vm1452, %v1184, 0.0
        %v1512 = vsel %vm1453, %v1185, 0.0
        %v1513 = vsel %vm1453, %v1186, 0.0
        %v1514 = vsel %vm1454, %v1187, 0.0
        %v1515 = vsel %vm1454, %v1188, 0.0
        %v1516 = vsel %vm1455, %v1189, 0.0
        %v1517 = vsel %vm1455, %v1190, 0.0
        %v1518 = vsel %vm1456, %v1191, 0.0
        %v1519 = vsel %vm1456, %v1192, 0.0
        %v1520 = vsel %vm1457, %v1193, 0.0
        %v1521 = vsel %vm1457, %v1194, 0.0
        %v1522 = vadd.f32 %v1458, %v1460
        %v1523 = vadd.f32 %v1522, %v1462
        %v1524 = vadd.f32 %v1523, %v1464
        %v1525 = vadd.f32 %v1524, %v1466
        %v1526 = vadd.f32 %v1525, %v1468
        %v1527 = vadd.f32 %v1526, %v1470
        %v1528 = vadd.f32 %v1527, %v1472
        %v1529 = vadd.f32 %v1528, %v1474
        %v1530 = vadd.f32 %v1529, %v1476
        %v1531 = vadd.f32 %v1530, %v1478
        %v1532 = vadd.f32 %v1531, %v1480
        %v1533 = vadd.f32 %v1532, %v1482
        %v1534 = vadd.f32 %v1533, %v1484
        %v1535 = vadd.f32 %v1534, %v1486
        %v1536 = vadd.f32 %v1535, %v1488
        %v1537 = vadd.f32 %v1536, %v1490
        %v1538 = vadd.f32 %v1537, %v1492
        %v1539 = vadd.f32 %v1538, %v1494
        %v1540 = vadd.f32 %v1539, %v1496
        %v1541 = vadd.f32 %v1540, %v1498
        %v1542 = vadd.f32 %v1541, %v1500
        %v1543 = vadd.f32 %v1542, %v1502
        %v1544 = vadd.f32 %v1543, %v1504
        %v1545 = vadd.f32 %v1544, %v1506
        %v1546 = vadd.f32 %v1545, %v1508
        %v1547 = vadd.f32 %v1546, %v1510
        %v1548 = vadd.f32 %v1547, %v1512
        %v1549 = vadd.f32 %v1548, %v1514
        %v1550 = vadd.f32 %v1549, %v1516
        %v1551 = vadd.f32 %v1550, %v1518
        %v1552 = vadd.f32 %v1551, %v1520
        %v1553 = vrot.slane %v1552, 4
        %v1554 = vadd.f32 %v1552, %v1553
        %v1555 = vrot.slane %v1554, 2
        %v1556 = vadd.f32 %v1554, %v1555
        %v1557 = vrot.slane %v1556, 1
        %v1558 = vadd.f32 %v1556, %v1557
        %v1559 = vadd.f32 %v1459, %v1461
        %v1560 = vadd.f32 %v1559, %v1463
        %v1561 = vadd.f32 %v1560, %v1465
        %v1562 = vadd.f32 %v1561, %v1467
        %v1563 = vadd.f32 %v1562, %v1469
        %v1564 = vadd.f32 %v1563, %v1471
        %v1565 = vadd.f32 %v1564, %v1473
        %v1566 = vadd.f32 %v1565, %v1475
        %v1567 = vadd.f32 %v1566, %v1477
        %v1568 = vadd.f32 %v1567, %v1479
        %v1569 = vadd.f32 %v1568, %v1481
        %v1570 = vadd.f32 %v1569, %v1483
        %v1571 = vadd.f32 %v1570, %v1485
        %v1572 = vadd.f32 %v1571, %v1487
        %v1573 = vadd.f32 %v1572, %v1489
        %v1574 = vadd.f32 %v1573, %v1491
        %v1575 = vadd.f32 %v1574, %v1493
        %v1576 = vadd.f32 %v1575, %v1495
        %v1577 = vadd.f32 %v1576, %v1497
        %v1578 = vadd.f32 %v1577, %v1499
        %v1579 = vadd.f32 %v1578, %v1501
        %v1580 = vadd.f32 %v1579, %v1503
        %v1581 = vadd.f32 %v1580, %v1505
        %v1582 = vadd.f32 %v1581, %v1507
        %v1583 = vadd.f32 %v1582, %v1509
        %v1584 = vadd.f32 %v1583, %v1511
        %v1585 = vadd.f32 %v1584, %v1513
        %v1586 = vadd.f32 %v1585, %v1515
        %v1587 = vadd.f32 %v1586, %v1517
        %v1588 = vadd.f32 %v1587, %v1519
        %v1589 = vadd.f32 %v1588, %v1521
        %v1590 = vrot.slane %v1589, 4
        %v1591 = vadd.f32 %v1589, %v1590
        %v1592 = vrot.slane %v1591, 2
        %v1593 = vadd.f32 %v1591, %v1592
        %v1594 = vrot.slane %v1593, 1
        %v1595 = vadd.f32 %v1593, %v1594
        %v1596 = vadd.f32 %v1268, %v1558
        %v1597 = vadd.f32 %v1268, %v1595
        %v1598 = vadd.f32 %v1271, %v1558
        %v1599 = vadd.f32 %v1271, %v1595
        %v1600 = vadd.f32 %v1274, %v1558
        %v1601 = vadd.f32 %v1274, %v1595
        %v1602 = vadd.f32 %v1277, %v1558
        %v1603 = vadd.f32 %v1277, %v1595
        %v1604 = vadd.f32 %v1280, %v1558
        %v1605 = vadd.f32 %v1280, %v1595
        %v1606 = vadd.f32 %v1283, %v1558
        %v1607 = vadd.f32 %v1283, %v1595
        %v1608 = vadd.f32 %v1286, %v1558
        %v1609 = vadd.f32 %v1286, %v1595
        %v1610 = vadd.f32 %v1289, %v1558
        %v1611 = vadd.f32 %v1289, %v1595
        %v1612 = vadd.f32 %v1292, %v1558
        %v1613 = vadd.f32 %v1292, %v1595
        %v1614 = vadd.f32 %v1295, %v1558
        %v1615 = vadd.f32 %v1295, %v1595
        %v1616 = vadd.f32 %v1298, %v1558
        %v1617 = vadd.f32 %v1298, %v1595
        %v1618 = vadd.f32 %v1301, %v1558
        %v1619 = vadd.f32 %v1301, %v1595
        %v1620 = vadd.f32 %v1304, %v1558
        %v1621 = vadd.f32 %v1304, %v1595
        %v1622 = vadd.f32 %v1307, %v1558
        %v1623 = vadd.f32 %v1307, %v1595
        %v1624 = vadd.f32 %v1310, %v1558
        %v1625 = vadd.f32 %v1310, %v1595
        %v1626 = vadd.f32 %v1313, %v1558
        %v1627 = vadd.f32 %v1313, %v1595
        %v1628 = vadd.f32 %v1316, %v1558
        %v1629 = vadd.f32 %v1316, %v1595
        %v1630 = vadd.f32 %v1319, %v1558
        %v1631 = vadd.f32 %v1319, %v1595
        %v1632 = vadd.f32 %v1322, %v1558
        %v1633 = vadd.f32 %v1322, %v1595
        %v1634 = vadd.f32 %v1325, %v1558
        %v1635 = vadd.f32 %v1325, %v1595
        %v1636 = vadd.f32 %v1328, %v1558
        %v1637 = vadd.f32 %v1328, %v1595
        %v1638 = vadd.f32 %v1331, %v1558
        %v1639 = vadd.f32 %v1331, %v1595
        %v1640 = vadd.f32 %v1334, %v1558
        %v1641 = vadd.f32 %v1334, %v1595
        %v1642 = vadd.f32 %v1337, %v1558
        %v1643 = vadd.f32 %v1337, %v1595
        %v1644 = vadd.f32 %v1340, %v1558
        %v1645 = vadd.f32 %v1340, %v1595
        %v1646 = vadd.f32 %v1343, %v1558
        %v1647 = vadd.f32 %v1343, %v1595
        %v1648 = vadd.f32 %v1346, %v1558
        %v1649 = vadd.f32 %v1346, %v1595
        %v1650 = vadd.f32 %v1349, %v1558
        %v1651 = vadd.f32 %v1349, %v1595
        %v1652 = vadd.f32 %v1352, %v1558
        %v1653 = vadd.f32 %v1352, %v1595
        %v1654 = vadd.f32 %v1355, %v1558
        %v1655 = vadd.f32 %v1355, %v1595
        %v1656 = vadd.f32 %v1358, %v1558
        %v1657 = vadd.f32 %v1358, %v1595
        %v1658 = vadd.f32 %v1361, %v1558
        %v1659 = vadd.f32 %v1361, %v1595
        %v1660 = vmin.f32 %v1131, %v1596
        %v1661 = vmin.f32 %v1132, %v1597
        %v1662 = vmin.f32 %v1133, %v1598
        %v1663 = vmin.f32 %v1134, %v1599
        %v1664 = vmin.f32 %v1135, %v1600
        %v1665 = vmin.f32 %v1136, %v1601
        %v1666 = vmin.f32 %v1137, %v1602
        %v1667 = vmin.f32 %v1138, %v1603
        %v1668 = vmin.f32 %v1139, %v1604
        %v1669 = vmin.f32 %v1140, %v1605
        %v1670 = vmin.f32 %v1141, %v1606
        %v1671 = vmin.f32 %v1142, %v1607
        %v1672 = vmin.f32 %v1143, %v1608
        %v1673 = vmin.f32 %v1144, %v1609
        %v1674 = vmin.f32 %v1145, %v1610
        %v1675 = vmin.f32 %v1146, %v1611
        %v1676 = vmin.f32 %v1147, %v1612
        %v1677 = vmin.f32 %v1148, %v1613
        %v1678 = vmin.f32 %v1149, %v1614
        %v1679 = vmin.f32 %v1150, %v1615
        %v1680 = vmin.f32 %v1151, %v1616
        %v1681 = vmin.f32 %v1152, %v1617
        %v1682 = vmin.f32 %v1153, %v1618
        %v1683 = vmin.f32 %v1154, %v1619
        %v1684 = vmin.f32 %v1155, %v1620
        %v1685 = vmin.f32 %v1156, %v1621
        %v1686 = vmin.f32 %v1157, %v1622
        %v1687 = vmin.f32 %v1158, %v1623
        %v1688 = vmin.f32 %v1159, %v1624
        %v1689 = vmin.f32 %v1160, %v1625
        %v1690 = vmin.f32 %v1161, %v1626
        %v1691 = vmin.f32 %v1162, %v1627
        %v1692 = vmin.f32 %v1163, %v1628
        %v1693 = vmin.f32 %v1164, %v1629
        %v1694 = vmin.f32 %v1165, %v1630
        %v1695 = vmin.f32 %v1166, %v1631
        %v1696 = vmin.f32 %v1167, %v1632
        %v1697 = vmin.f32 %v1168, %v1633
        %v1698 = vmin.f32 %v1169, %v1634
        %v1699 = vmin.f32 %v1170, %v1635
        %v1700 = vmin.f32 %v1171, %v1636
        %v1701 = vmin.f32 %v1172, %v1637
        %v1702 = vmin.f32 %v1173, %v1638
        %v1703 = vmin.f32 %v1174, %v1639
        %v1704 = vmin.f32 %v1175, %v1640
        %v1705 = vmin.f32 %v1176, %v1641
        %v1706 = vmin.f32 %v1177, %v1642
        %v1707 = vmin.f32 %v1178, %v1643
        %v1708 = vmin.f32 %v1179, %v1644
        %v1709 = vmin.f32 %v1180, %v1645
        %v1710 = vmin.f32 %v1181, %v1646
        %v1711 = vmin.f32 %v1182, %v1647
        %v1712 = vmin.f32 %v1183, %v1648
        %v1713 = vmin.f32 %v1184, %v1649
        %v1714 = vmin.f32 %v1185, %v1650
        %v1715 = vmin.f32 %v1186, %v1651
        %v1716 = vmin.f32 %v1187, %v1652
        %v1717 = vmin.f32 %v1188, %v1653
        %v1718 = vmin.f32 %v1189, %v1654
        %v1719 = vmin.f32 %v1190, %v1655
        %v1720 = vmin.f32 %v1191, %v1656
        %v1721 = vmin.f32 %v1192, %v1657
        %v1722 = vmin.f32 %v1193, %v1658
        %v1723 = vmin.f32 %v1194, %v1659
        %1724 = vst [vmem:[#allocation2] sm:$0xff] %v1660
        %1725 = vst [vmem:[#allocation2 + $0x8] sm:$0xff] %v1661
        %1726 = vst [vmem:[#allocation2 + $0x10] sm:$0xff] %v1662
        %1727 = vst [vmem:[#allocation2 + $0x18] sm:$0xff] %v1663
        %1728 = vst [vmem:[#allocation2 + $0x20] sm:$0xff] %v1664
        %1729 = vst [vmem:[#allocation2 + $0x28] sm:$0xff] %v1665
        %1730 = vst [vmem:[#allocation2 + $0x30] sm:$0xff] %v1666
        %1731 = vst [vmem:[#allocation2 + $0x38] sm:$0xff] %v1667
        %1732 = vst [vmem:[#allocation2 + $0x40] sm:$0xff] %v1668
        %1733 = vst [vmem:[#allocation2 + $0x48] sm:$0xff] %v1669
        %1734 = vst [vmem:[#allocation2 + $0x50] sm:$0xff] %v1670
        %1735 = vst [vmem:[#allocation2 + $0x58] sm:$0xff] %v1671
        %1736 = vst [vmem:[#allocation2 + $0x60] sm:$0xff] %v1672
        %1737 = vst [vmem:[#allocation2 + $0x68] sm:$0xff] %v1673
        %1738 = vst [vmem:[#allocation2 + $0x70] sm:$0xff] %v1674
        %1739 = vst [vmem:[#allocation2 + $0x78] sm:$0xff] %v1675
        %1740 = vst [vmem:[#allocation2 + $0x80] sm:$0xff] %v1676
        %1741 = vst [vmem:[#allocation2 + $0x88] sm:$0xff] %v1677
        %1742 = vst [vmem:[#allocation2 + $0x90] sm:$0xff] %v1678
        %1743 = vst [vmem:[#allocation2 + $0x98] sm:$0xff] %v1679
        %1744 = vst [vmem:[#allocation2 + $0xa0] sm:$0xff] %v1680
        %1745 = vst [vmem:[#allocation2 + $0xa8] sm:$0xff] %v1681
        %1746 = vst [vmem:[#allocation2 + $0xb0] sm:$0xff] %v1682
        %1747 = vst [vmem:[#allocation2 + $0xb8] sm:$0xff] %v1683
        %1748 = vst [vmem:[#allocation2 + $0xc0] sm:$0xff] %v1684
        %1749 = vst [vmem:[#allocation2 + $0xc8] sm:$0xff] %v1685
        %1750 = vst [vmem:[#allocation2 + $0xd0] sm:$0xff] %v1686
        %1751 = vst [vmem:[#allocation2 + $0xd8] sm:$0xff] %v1687
        %1752 = vst [vmem:[#allocation2 + $0xe0] sm:$0xff] %v1688
        %1753 = vst [vmem:[#allocation2 + $0xe8] sm:$0xff] %v1689
        %1754 = vst [vmem:[#allocation2 + $0xf0] sm:$0xff] %v1690
        %1755 = vst [vmem:[#allocation2 + $0xf8] sm:$0xff] %v1691
        %1756 = vst [vmem:[#allocation2 + $0x100] sm:$0xff] %v1692
        %1757 = vst [vmem:[#allocation2 + $0x108] sm:$0xff] %v1693
        %1758 = vst [vmem:[#allocation2 + $0x110] sm:$0xff] %v1694
        %1759 = vst [vmem:[#allocation2 + $0x118] sm:$0xff] %v1695
        %1760 = vst [vmem:[#allocation2 + $0x120] sm:$0xff] %v1696
        %1761 = vst [vmem:[#allocation2 + $0x128] sm:$0xff] %v1697
        %1762 = vst [vmem:[#allocation2 + $0x130] sm:$0xff] %v1698
        %1763 = vst [vmem:[#allocation2 + $0x138] sm:$0xff] %v1699
        %1764 = vst [vmem:[#allocation2 + $0x140] sm:$0xff] %v1700
        %1765 = vst [vmem:[#allocation2 + $0x148] sm:$0xff] %v1701
        %1766 = vst [vmem:[#allocation2 + $0x150] sm:$0xff] %v1702
        %1767 = vst [vmem:[#allocation2 + $0x158] sm:$0xff] %v1703
        %1768 = vst [vmem:[#allocation2 + $0x160] sm:$0xff] %v1704
        %1769 = vst [vmem:[#allocation2 + $0x168] sm:$0xff] %v1705
        %1770 = vst [vmem:[#allocation2 + $0x170] sm:$0xff] %v1706
        %1771 = vst [vmem:[#allocation2 + $0x178] sm:$0xff] %v1707
        %1772 = vst [vmem:[#allocation2 + $0x180] sm:$0xff] %v1708
        %1773 = vst [vmem:[#allocation2 + $0x188] sm:$0xff] %v1709
        %1774 = vst [vmem:[#allocation2 + $0x190] sm:$0xff] %v1710
        %1775 = vst [vmem:[#allocation2 + $0x198] sm:$0xff] %v1711
        %1776 = vst [vmem:[#allocation2 + $0x1a0] sm:$0xff] %v1712
        %1777 = vst [vmem:[#allocation2 + $0x1a8] sm:$0xff] %v1713
        %1778 = vst [vmem:[#allocation2 + $0x1b0] sm:$0xff] %v1714
        %1779 = vst [vmem:[#allocation2 + $0x1b8] sm:$0xff] %v1715
        %1780 = vst [vmem:[#allocation2 + $0x1c0] sm:$0xff] %v1716
        %1781 = vst [vmem:[#allocation2 + $0x1c8] sm:$0xff] %v1717
        %1782 = vst [vmem:[#allocation2 + $0x1d0] sm:$0xff] %v1718
        %1783 = vst [vmem:[#allocation2 + $0x1d8] sm:$0xff] %v1719
        %1784 = vst [vmem:[#allocation2 + $0x1e0] sm:$0xff] %v1720
        %1785 = vst [vmem:[#allocation2 + $0x1e8] sm:$0xff] %v1721
        %1786 = vst [vmem:[#allocation2 + $0x1f0] sm:$0xff] %v1722
        %1787 = vst [vmem:[#allocation2 + $0x1f8] sm:$0xff] %v1723
      $region45: #{tree_energy_loss.2} parent=39 // loop_footer
        %s1130 = sadd.s32 1, %s1126
      $region46: #{tree_energy_loss.2} parent=39 // loop_footer_branch
        %1125 = sbr.rel target = $region42
      $region47: #{tree_energy_loss.2} parent=39 // loop_exit
        _
      %v1788 = vld [vmem:[%s293] sm:$0xff]
      %v1790 = vcombine.high %v1788, %v1788
      %vm1792 = vcmask 1043456
      %v1793 = vsel %vm1792, %v1788, -inf
      %v1794 = vrot.slane %v1793, 4
      %v1795 = vmax.f32 %v1793, %v1794
      %v1796 = vrot.slane %v1795, 2
      %v1797 = vmax.f32 %v1795, %v1796
      %v1798 = vrot.slane %v1797, 1
      %v1799 = vmax.f32 %v1797, %v1798
      %v1800 = vsel %vm1792, %v1790, -inf
      %v1801 = vrot.slane %v1800, 4
      %v1802 = vmax.f32 %v1800, %v1801
      %v1803 = vrot.slane %v1802, 2
      %v1804 = vmax.f32 %v1802, %v1803
      %v1805 = vrot.slane %v1804, 1
      %v1806 = vmax.f32 %v1804, %v1805
      %v1809 = vcombine.low %v1799, %v1806
      %v1811 = vsub.f32 %v1788, %v1809
      %v1812 = vmul.f32 %v1811, 1.442695
      %v1813 = vpow.pop %v1812
      %v1815 = vcombine.high %v1813, %v1813
      %v1817 = vsel %vm1792, %v1813, 0.0
      %v1818 = vrot.slane %v1817, 4
      %v1819 = vadd.f32 %v1817, %v1818
      %v1820 = vrot.slane %v1819, 2
      %v1821 = vadd.f32 %v1819, %v1820
      %v1822 = vrot.slane %v1821, 1
      %v1823 = vadd.f32 %v1821, %v1822
      %v1824 = vsel %vm1792, %v1815, 0.0
      %v1825 = vrot.slane %v1824, 4
      %v1826 = vadd.f32 %v1824, %v1825
      %v1827 = vrot.slane %v1826, 2
      %v1828 = vadd.f32 %v1826, %v1827
      %v1829 = vrot.slane %v1828, 1
      %v1830 = vadd.f32 %v1828, %v1829
      %v1831 = vrcp.pop %v1823
      %v1832 = vmul.f32 1.0, %v1831
      %v1833 = vrcp.pop %v1830
      %v1834 = vmul.f32 1.0, %v1833
      %v1837 = vcombine.low %v1832, %v1834
      %v1839 = vmul.f32 %v1813, %v1837
      %v1840 = vld [vmem:[#allocation2] sm:$0xff]
      %v1841 = vld [vmem:[#allocation2 + $0x8] sm:$0xff]
      %v1842 = vld [vmem:[#allocation2 + $0x10] sm:$0xff]
      %v1843 = vld [vmem:[#allocation2 + $0x18] sm:$0xff]
      %v1844 = vld [vmem:[#allocation2 + $0x20] sm:$0xff]
      %v1845 = vld [vmem:[#allocation2 + $0x28] sm:$0xff]
      %v1846 = vld [vmem:[#allocation2 + $0x30] sm:$0xff]
      %v1847 = vld [vmem:[#allocation2 + $0x38] sm:$0xff]
      %v1848 = vld [vmem:[#allocation2 + $0x40] sm:$0xff]
      %v1849 = vld [vmem:[#allocation2 + $0x48] sm:$0xff]
      %v1850 = vld [vmem:[#allocation2 + $0x50] sm:$0xff]
      %v1851 = vld [vmem:[#allocation2 + $0x58] sm:$0xff]
      %v1852 = vld [vmem:[#allocation2 + $0x60] sm:$0xff]
      %v1853 = vld [vmem:[#allocation2 + $0x68] sm:$0xff]
      %v1854 = vld [vmem:[#allocation2 + $0x70] sm:$0xff]
      %v1855 = vld [vmem:[#allocation2 + $0x78] sm:$0xff]
      %v1856 = vld [vmem:[#allocation2 + $0x80] sm:$0xff]
      %v1857 = vld [vmem:[#allocation2 + $0x88] sm:$0xff]
      %v1858 = vld [vmem:[#allocation2 + $0x90] sm:$0xff]
      %v1859 = vld [vmem:[#allocation2 + $0x98] sm:$0xff]
      %v1860 = vld [vmem:[#allocation2 + $0xa0] sm:$0xff]
      %v1861 = vld [vmem:[#allocation2 + $0xa8] sm:$0xff]
      %v1862 = vld [vmem:[#allocation2 + $0xb0] sm:$0xff]
      %v1863 = vld [vmem:[#allocation2 + $0xb8] sm:$0xff]
      %v1864 = vld [vmem:[#allocation2 + $0xc0] sm:$0xff]
      %v1865 = vld [vmem:[#allocation2 + $0xc8] sm:$0xff]
      %v1866 = vld [vmem:[#allocation2 + $0xd0] sm:$0xff]
      %v1867 = vld [vmem:[#allocation2 + $0xd8] sm:$0xff]
      %v1868 = vld [vmem:[#allocation2 + $0xe0] sm:$0xff]
      %v1869 = vld [vmem:[#allocation2 + $0xe8] sm:$0xff]
      %v1870 = vld [vmem:[#allocation2 + $0xf0] sm:$0xff]
      %v1871 = vld [vmem:[#allocation2 + $0xf8] sm:$0xff]
      %v1872 = vld [vmem:[#allocation2 + $0x100] sm:$0xff]
      %v1873 = vld [vmem:[#allocation2 + $0x108] sm:$0xff]
      %v1874 = vld [vmem:[#allocation2 + $0x110] sm:$0xff]
      %v1875 = vld [vmem:[#allocation2 + $0x118] sm:$0xff]
      %v1876 = vld [vmem:[#allocation2 + $0x120] sm:$0xff]
      %v1877 = vld [vmem:[#allocation2 + $0x128] sm:$0xff]
      %v1878 = vld [vmem:[#allocation2 + $0x130] sm:$0xff]
      %v1879 = vld [vmem:[#allocation2 + $0x138] sm:$0xff]
      %v1880 = vld [vmem:[#allocation2 + $0x140] sm:$0xff]
      %v1881 = vld [vmem:[#allocation2 + $0x148] sm:$0xff]
      %v1882 = vld [vmem:[#allocation2 + $0x150] sm:$0xff]
      %v1883 = vld [vmem:[#allocation2 + $0x158] sm:$0xff]
      %v1884 = vld [vmem:[#allocation2 + $0x160] sm:$0xff]
      %v1885 = vld [vmem:[#allocation2 + $0x168] sm:$0xff]
      %v1886 = vld [vmem:[#allocation2 + $0x170] sm:$0xff]
      %v1887 = vld [vmem:[#allocation2 + $0x178] sm:$0xff]
      %v1888 = vld [vmem:[#allocation2 + $0x180] sm:$0xff]
      %v1889 = vld [vmem:[#allocation2 + $0x188] sm:$0xff]
      %v1890 = vld [vmem:[#allocation2 + $0x190] sm:$0xff]
      %v1891 = vld [vmem:[#allocation2 + $0x198] sm:$0xff]
      %v1892 = vld [vmem:[#allocation2 + $0x1a0] sm:$0xff]
      %v1893 = vld [vmem:[#allocation2 + $0x1a8] sm:$0xff]
      %v1894 = vld [vmem:[#allocation2 + $0x1b0] sm:$0xff]
      %v1895 = vld [vmem:[#allocation2 + $0x1b8] sm:$0xff]
      %v1896 = vld [vmem:[#allocation2 + $0x1c0] sm:$0xff]
      %v1897 = vld [vmem:[#allocation2 + $0x1c8] sm:$0xff]
      %v1898 = vld [vmem:[#allocation2 + $0x1d0] sm:$0xff]
      %v1899 = vld [vmem:[#allocation2 + $0x1d8] sm:$0xff]
      %v1900 = vld [vmem:[#allocation2 + $0x1e0] sm:$0xff]
      %v1901 = vld [vmem:[#allocation2 + $0x1e8] sm:$0xff]
      %v1902 = vld [vmem:[#allocation2 + $0x1f0] sm:$0xff]
      %v1903 = vld [vmem:[#allocation2 + $0x1f8] sm:$0xff]
      %v1904 = vmul.f32 %v1840, -50.0
      %v1905 = vmul.f32 %v1841, -50.0
      %v1906 = vmul.f32 %v1842, -50.0
      %v1907 = vmul.f32 %v1843, -50.0
      %v1908 = vmul.f32 %v1844, -50.0
      %v1909 = vmul.f32 %v1845, -50.0
      %v1910 = vmul.f32 %v1846, -50.0
      %v1911 = vmul.f32 %v1847, -50.0
      %v1912 = vmul.f32 %v1848, -50.0
      %v1913 = vmul.f32 %v1849, -50.0
      %v1914 = vmul.f32 %v1850, -50.0
      %v1915 = vmul.f32 %v1851, -50.0
      %v1916 = vmul.f32 %v1852, -50.0
      %v1917 = vmul.f32 %v1853, -50.0
      %v1918 = vmul.f32 %v1854, -50.0
      %v1919 = vmul.f32 %v1855, -50.0
      %v1920 = vmul.f32 %v1856, -50.0
      %v1921 = vmul.f32 %v1857, -50.0
      %v1922 = vmul.f32 %v1858, -50.0
      %v1923 = vmul.f32 %v1859, -50.0
      %v1924 = vmul.f32 %v1860, -50.0
      %v1925 = vmul.f32 %v1861, -50.0
      %v1926 = vmul.f32 %v1862, -50.0
      %v1927 = vmul.f32 %v1863, -50.0
      %v1928 = vmul.f32 %v1864, -50.0
      %v1929 = vmul.f32 %v1865, -50.0
      %v1930 = vmul.f32 %v1866, -50.0
      %v1931 = vmul.f32 %v1867, -50.0
      %v1932 = vmul.f32 %v1868, -50.0
      %v1933 = vmul.f32 %v1869, -50.0
      %v1934 = vmul.f32 %v1870, -50.0
      %v1935 = vmul.f32 %v1871, -50.0
      %v1936 = vmul.f32 %v1872, -50.0
      %v1937 = vmul.f32 %v1873, -50.0
      %v1938 = vmul.f32 %v1874, -50.0
      %v1939 = vmul.f32 %v1875, -50.0
      %v1940 = vmul.f32 %v1876, -50.0
      %v1941 = vmul.f32 %v1877, -50.0
      %v1942 = vmul.f32 %v1878, -50.0
      %v1943 = vmul.f32 %v1879, -50.0
      %v1944 = vmul.f32 %v1880, -50.0
      %v1945 = vmul.f32 %v1881, -50.0
      %v1946 = vmul.f32 %v1882, -50.0
      %v1947 = vmul.f32 %v1883, -50.0
      %v1948 = vmul.f32 %v1884, -50.0
      %v1949 = vmul.f32 %v1885, -50.0
      %v1950 = vmul.f32 %v1886, -50.0
      %v1951 = vmul.f32 %v1887, -50.0
      %v1952 = vmul.f32 %v1888, -50.0
      %v1953 = vmul.f32 %v1889, -50.0
      %v1954 = vmul.f32 %v1890, -50.0
      %v1955 = vmul.f32 %v1891, -50.0
      %v1956 = vmul.f32 %v1892, -50.0
      %v1957 = vmul.f32 %v1893, -50.0
      %v1958 = vmul.f32 %v1894, -50.0
      %v1959 = vmul.f32 %v1895, -50.0
      %v1960 = vmul.f32 %v1896, -50.0
      %v1961 = vmul.f32 %v1897, -50.0
      %v1962 = vmul.f32 %v1898, -50.0
      %v1963 = vmul.f32 %v1899, -50.0
      %v1964 = vmul.f32 %v1900, -50.0
      %v1965 = vmul.f32 %v1901, -50.0
      %v1966 = vmul.f32 %v1902, -50.0
      %v1967 = vmul.f32 %v1903, -50.0
      %v1968 = vmul.f32 %v1904, 1.442695
      %v1969 = vpow.pop %v1968
      %v1970 = vmul.f32 %v1905, 1.442695
      %v1971 = vpow.pop %v1970
      %v1972 = vmul.f32 %v1906, 1.442695
      %v1973 = vpow.pop %v1972
      %v1974 = vmul.f32 %v1907, 1.442695
      %v1975 = vpow.pop %v1974
      %v1976 = vmul.f32 %v1908, 1.442695
      %v1977 = vpow.pop %v1976
      %v1978 = vmul.f32 %v1909, 1.442695
      %v1979 = vpow.pop %v1978
      %v1980 = vmul.f32 %v1910, 1.442695
      %v1981 = vpow.pop %v1980
      %v1982 = vmul.f32 %v1911, 1.442695
      %v1983 = vpow.pop %v1982
      %v1984 = vmul.f32 %v1912, 1.442695
      %v1985 = vpow.pop %v1984
      %v1986 = vmul.f32 %v1913, 1.442695
      %v1987 = vpow.pop %v1986
      %v1988 = vmul.f32 %v1914, 1.442695
      %v1989 = vpow.pop %v1988
      %v1990 = vmul.f32 %v1915, 1.442695
      %v1991 = vpow.pop %v1990
      %v1992 = vmul.f32 %v1916, 1.442695
      %v1993 = vpow.pop %v1992
      %v1994 = vmul.f32 %v1917, 1.442695
      %v1995 = vpow.pop %v1994
      %v1996 = vmul.f32 %v1918, 1.442695
      %v1997 = vpow.pop %v1996
      %v1998 = vmul.f32 %v1919, 1.442695
      %v1999 = vpow.pop %v1998
      %v2000 = vmul.f32 %v1920, 1.442695
      %v2001 = vpow.pop %v2000
      %v2002 = vmul.f32 %v1921, 1.442695
      %v2003 = vpow.pop %v2002
      %v2004 = vmul.f32 %v1922, 1.442695
      %v2005 = vpow.pop %v2004
      %v2006 = vmul.f32 %v1923, 1.442695
      %v2007 = vpow.pop %v2006
      %v2008 = vmul.f32 %v1924, 1.442695
      %v2009 = vpow.pop %v2008
      %v2010 = vmul.f32 %v1925, 1.442695
      %v2011 = vpow.pop %v2010
      %v2012 = vmul.f32 %v1926, 1.442695
      %v2013 = vpow.pop %v2012
      %v2014 = vmul.f32 %v1927, 1.442695
      %v2015 = vpow.pop %v2014
      %v2016 = vmul.f32 %v1928, 1.442695
      %v2017 = vpow.pop %v2016
      %v2018 = vmul.f32 %v1929, 1.442695
      %v2019 = vpow.pop %v2018
      %v2020 = vmul.f32 %v1930, 1.442695
      %v2021 = vpow.pop %v2020
      %v2022 = vmul.f32 %v1931, 1.442695
      %v2023 = vpow.pop %v2022
      %v2024 = vmul.f32 %v1932, 1.442695
      %v2025 = vpow.pop %v2024
      %v2026 = vmul.f32 %v1933, 1.442695
      %v2027 = vpow.pop %v2026
      %v2028 = vmul.f32 %v1934, 1.442695
      %v2029 = vpow.pop %v2028
      %v2030 = vmul.f32 %v1935, 1.442695
      %v2031 = vpow.pop %v2030
      %v2032 = vmul.f32 %v1936, 1.442695
      %v2033 = vpow.pop %v2032
      %v2034 = vmul.f32 %v1937, 1.442695
      %v2035 = vpow.pop %v2034
      %v2036 = vmul.f32 %v1938, 1.442695
      %v2037 = vpow.pop %v2036
      %v2038 = vmul.f32 %v1939, 1.442695
      %v2039 = vpow.pop %v2038
      %v2040 = vmul.f32 %v1940, 1.442695
      %v2041 = vpow.pop %v2040
      %v2042 = vmul.f32 %v1941, 1.442695
      %v2043 = vpow.pop %v2042
      %v2044 = vmul.f32 %v1942, 1.442695
      %v2045 = vpow.pop %v2044
      %v2046 = vmul.f32 %v1943, 1.442695
      %v2047 = vpow.pop %v2046
      %v2048 = vmul.f32 %v1944, 1.442695
      %v2049 = vpow.pop %v2048
      %v2050 = vmul.f32 %v1945, 1.442695
      %v2051 = vpow.pop %v2050
      %v2052 = vmul.f32 %v1946, 1.442695
      %v2053 = vpow.pop %v2052
      %v2054 = vmul.f32 %v1947, 1.442695
      %v2055 = vpow.pop %v2054
      %v2056 = vmul.f32 %v1948, 1.442695
      %v2057 = vpow.pop %v2056
      %v2058 = vmul.f32 %v1949, 1.442695
      %v2059 = vpow.pop %v2058
      %v2060 = vmul.f32 %v1950, 1.442695
      %v2061 = vpow.pop %v2060
      %v2062 = vmul.f32 %v1951, 1.442695
      %v2063 = vpow.pop %v2062
      %v2064 = vmul.f32 %v1952, 1.442695
      %v2065 = vpow.pop %v2064
      %v2066 = vmul.f32 %v1953, 1.442695
      %v2067 = vpow.pop %v2066
      %v2068 = vmul.f32 %v1954, 1.442695
      %v2069 = vpow.pop %v2068
      %v2070 = vmul.f32 %v1955, 1.442695
      %v2071 = vpow.pop %v2070
      %v2072 = vmul.f32 %v1956, 1.442695
      %v2073 = vpow.pop %v2072
      %v2074 = vmul.f32 %v1957, 1.442695
      %v2075 = vpow.pop %v2074
      %v2076 = vmul.f32 %v1958, 1.442695
      %v2077 = vpow.pop %v2076
      %v2078 = vmul.f32 %v1959, 1.442695
      %v2079 = vpow.pop %v2078
      %v2080 = vmul.f32 %v1960, 1.442695
      %v2081 = vpow.pop %v2080
      %v2082 = vmul.f32 %v1961, 1.442695
      %v2083 = vpow.pop %v2082
      %v2084 = vmul.f32 %v1962, 1.442695
      %v2085 = vpow.pop %v2084
      %v2086 = vmul.f32 %v1963, 1.442695
      %v2087 = vpow.pop %v2086
      %v2088 = vmul.f32 %v1964, 1.442695
      %v2089 = vpow.pop %v2088
      %v2090 = vmul.f32 %v1965, 1.442695
      %v2091 = vpow.pop %v2090
      %v2092 = vmul.f32 %v1966, 1.442695
      %v2093 = vpow.pop %v2092
      %v2094 = vmul.f32 %v1967, 1.442695
      %v2095 = vpow.pop %v2094
      %v2096 = vpack.c.bf16 %v1973, %v1969
      %v2097 = vpack.c.bf16 %v1975, %v1971
      %v2098 = vpack.c.bf16 %v1981, %v1977
      %v2099 = vpack.c.bf16 %v1983, %v1979
      %v2100 = vpack.c.bf16 %v1989, %v1985
      %v2101 = vpack.c.bf16 %v1991, %v1987
      %v2102 = vpack.c.bf16 %v1997, %v1993
      %v2103 = vpack.c.bf16 %v1999, %v1995
      %v2104 = vpack.c.bf16 %v2005, %v2001
      %v2105 = vpack.c.bf16 %v2007, %v2003
      %v2106 = vpack.c.bf16 %v2013, %v2009
      %v2107 = vpack.c.bf16 %v2015, %v2011
      %v2108 = vpack.c.bf16 %v2021, %v2017
      %v2109 = vpack.c.bf16 %v2023, %v2019
      %v2110 = vpack.c.bf16 %v2029, %v2025
      %v2111 = vpack.c.bf16 %v2031, %v2027
      %v2112 = vpack.c.bf16 %v2037, %v2033
      %v2113 = vpack.c.bf16 %v2039, %v2035
      %v2114 = vpack.c.bf16 %v2045, %v2041
      %v2115 = vpack.c.bf16 %v2047, %v2043
      %v2116 = vpack.c.bf16 %v2053, %v2049
      %v2117 = vpack.c.bf16 %v2055, %v2051
      %v2118 = vpack.c.bf16 %v2061, %v2057
      %v2119 = vpack.c.bf16 %v2063, %v2059
      %v2120 = vpack.c.bf16 %v2069, %v2065
      %v2121 = vpack.c.bf16 %v2071, %v2067
      %v2122 = vpack.c.bf16 %v2077, %v2073
      %v2123 = vpack.c.bf16 %v2079, %v2075
      %v2124 = vpack.c.bf16 %v2085, %v2081
      %v2125 = vpack.c.bf16 %v2087, %v2083
      %v2126 = vpack.c.bf16 %v2093, %v2089
      %v2127 = vpack.c.bf16 %v2095, %v2091
      %v2129 = vcombine.high %v1839, %v1839
      %v2131 = vpack.c.bf16 %v1839, %v1839
      %v2132 = vpack.c.bf16 %v2129, %v2129
      %2133 = vmatprep.subr.bf16.mxu0 %v2111
      %2134 = vmatpush1.bf16.msra.mxu0 %v2110
      %2135 = vmatprep.subr.bf16.mxu0 %v2109
      %2136 = vmatpush1.bf16.msra.mxu0 %v2108
      %2137 = vmatprep.subr.bf16.mxu0 %v2107
      %2138 = vmatpush1.bf16.msra.mxu0 %v2106
      %2139 = vmatprep.subr.bf16.mxu0 %v2105
      %2140 = vmatpush1.bf16.msra.mxu0 %v2104
      %2141 = vmatprep.subr.bf16.mxu0 %v2103
      %2142 = vmatpush1.bf16.msra.mxu0 %v2102
      %2143 = vmatprep.subr.bf16.mxu0 %v2101
      %2144 = vmatpush1.bf16.msra.mxu0 %v2100
      %2145 = vmatprep.subr.bf16.mxu0 %v2099
      %2146 = vmatpush1.bf16.msra.mxu0 %v2098
      %2147 = vmatprep.subr.bf16.mxu0 %v2097
      %2148 = vmatpush1.bf16.msra.mxu0 %v2096
      %2149 = vmatprep.subr.bf16.mxu0 %v2127
      %2150 = vmatpush2.bf16.msra.mxu0 %v2126
      %2151 = vmatprep.subr.bf16.mxu0 %v2125
      %2152 = vmatpush2.bf16.msra.mxu0 %v2124
      %2153 = vmatprep.subr.bf16.mxu0 %v2123
      %2154 = vmatpush2.bf16.msra.mxu0 %v2122
      %2155 = vmatprep.subr.bf16.mxu0 %v2121
      %2156 = vmatpush2.bf16.msra.mxu0 %v2120
      %2157 = vmatprep.subr.bf16.mxu0 %v2119
      %2158 = vmatpush2.bf16.msra.mxu0 %v2118
      %2159 = vmatprep.subr.bf16.mxu0 %v2117
      %2160 = vmatpush2.bf16.msra.mxu0 %v2116
      %2161 = vmatprep.subr.bf16.mxu0 %v2115
      %2162 = vmatpush2.bf16.msra.mxu0 %v2114
      %2163 = vmatprep.subr.bf16.mxu0 %v2113
      %2164 = vmatpush2.bf16.msra.mxu0 %v2112
      %2165 = vmatprep.mubr.bf16.mxu0 %v2132
      %2166 = vmatmul.mubr.bf16.gmra.mxu0 %v2131
      %v2167 = vpop.f32.mrf.mxu0
      %v2168 = vadd.f32 0.0, %v2167
      %v2169 = vpop.f32.mrf.mxu0
      %v2170 = vadd.f32 0.0, %v2169
      %v2171 = vpop.f32.mrf.mxu0
      %v2172 = vpop.f32.mrf.mxu0
      %2173 = vdwg.mxu0
      %2174 = vmatprep.subr.bf16.mxu0 %v2111
      %2175 = vmatpush1.bf16.msra.mxu0 %v2110
      %2176 = vmatprep.subr.bf16.mxu0 %v2109
      %2177 = vmatpush1.bf16.msra.mxu0 %v2108
      %2178 = vmatprep.subr.bf16.mxu0 %v2107
      %2179 = vmatpush1.bf16.msra.mxu0 %v2106
      %2180 = vmatprep.subr.bf16.mxu0 %v2105
      %2181 = vmatpush1.bf16.msra.mxu0 %v2104
      %2182 = vmatprep.subr.bf16.mxu0 %v2103
      %2183 = vmatpush1.bf16.msra.mxu0 %v2102
      %2184 = vmatprep.subr.bf16.mxu0 %v2101
      %2185 = vmatpush1.bf16.msra.mxu0 %v2100
      %2186 = vmatprep.subr.bf16.mxu0 %v2099
      %2187 = vmatpush1.bf16.msra.mxu0 %v2098
      %2188 = vmatprep.subr.bf16.mxu0 %v2097
      %2189 = vmatpush1.bf16.msra.mxu0 %v2096
      %2190 = vmatprep.subr.bf16.mxu0 %v2127
      %2191 = vmatpush2.bf16.msra.mxu0 %v2126
      %2192 = vmatprep.subr.bf16.mxu0 %v2125
      %2193 = vmatpush2.bf16.msra.mxu0 %v2124
      %2194 = vmatprep.subr.bf16.mxu0 %v2123
      %2195 = vmatpush2.bf16.msra.mxu0 %v2122
      %2196 = vmatprep.subr.bf16.mxu0 %v2121
      %2197 = vmatpush2.bf16.msra.mxu0 %v2120
      %2198 = vmatprep.subr.bf16.mxu0 %v2119
      %2199 = vmatpush2.bf16.msra.mxu0 %v2118
      %2200 = vmatprep.subr.bf16.mxu0 %v2117
      %2201 = vmatpush2.bf16.msra.mxu0 %v2116
      %2202 = vmatprep.subr.bf16.mxu0 %v2115
      %2203 = vmatpush2.bf16.msra.mxu0 %v2114
      %2204 = vmatprep.subr.bf16.mxu0 %v2113
      %2205 = vmatpush2.bf16.msra.mxu0 %v2112
      %2206 = vmatprep.mubr.bf16.mxu0 1065369472
      %2207 = vmatmul.mubr.bf16.gmra.mxu0 1065369472
      %v2208 = vpop.f32.mrf.mxu0
      %v2209 = vadd.f32 0.0, %v2208
      %v2210 = vpop.f32.mrf.mxu0
      %v2211 = vadd.f32 0.0, %v2210
      %v2212 = vpop.f32.mrf.mxu0
      %v2213 = vpop.f32.mrf.mxu0
      %2214 = vdwg.mxu0
      %v2215 = vrcp.pop %v2209
      %v2216 = vrcp.pop %v2211
      %v2217 = vlaneseq
      %v2218 = vshrl.u32 %v2217, 7
      %v2219 = vsub.s32 0, %v2218
      %v2220 = vrot.slane %v2215, %v2219
      %v2221 = vlaneseq
      %v2222 = vshrl.u32 %v2221, 7
      %v2223 = vsub.s32 0, %v2222
      %v2224 = vrot.slane %v2216, %v2223
      %v2225 = vmul.f32 %v2168, %v2220
      %v2226 = vmul.f32 %v2170, %v2224
      %v2229 = vcombine.low %v2225, %v2226
      %2231 = vst [vmem:[%s298] sm:$0xff] %v2229
      %p2232 = scmp.lt.s32.totalorder %s16, 1
      %s2233 = scalar_select %p2232, %s16, 1
      %s2234 = smul.addr %s2233, 2
      %s2235 = smul.addr %s2234, 4
      %s2236 = scalar_lea.vmem %s5, %s2235
      // Predicated region
      $region48: #{tree_energy_loss.2} parent=39 // pred_check
        %p2237 = pneg %p164
      $region49: #{tree_energy_loss.2} parent=39 // pred_check_branch
        %2239 = sbr.rel (%p2237) target = $region51
      $region50: #{tree_energy_loss.2} parent=39 // pred_region
        _
      $region51: #{tree_energy_loss.2} parent=39 // pred_fallthru
        _
    $region40: #{tree_energy_loss.2} parent=5 // pred_fallthru
      _
    %p2240 = scmp.le.s32.totalorder 2, %s11
    // Predicated region
    $region52: #{tree_energy_loss.2} parent=5 // pred_check
      %p2241 = pneg %p2240
    $region53: #{tree_energy_loss.2} parent=5 // pred_check_branch
      %2243 = sbr.rel (%p2241) target = $region55
    $region54: #{tree_energy_loss.2} parent=5 // pred_region
      %s2244 = ssub.s32 %s11, 2
      // Predicated region
      $region56: #{tree_energy_loss.2} parent=54 // pred_check
        %p2245 = pneg %p170
      $region57: #{tree_energy_loss.2} parent=54 // pred_check_branch
        %2247 = sbr.rel (%p2245) target = $region59
      $region58: #{tree_energy_loss.2} parent=54 // pred_region
        %p2248 = scmp.lt.s32.totalorder %s17, 1
        %s2249 = scalar_select %p2248, %s17, 1
        %s2250 = smul.addr %s2249, 2
        %s2251 = smul.addr %s2250, 4
        %s2252 = scalar_lea.vmem %s5, %s2251
      $region59: #{tree_energy_loss.2} parent=54 // pred_fallthru
        _
    $region55: #{tree_energy_loss.2} parent=5 // pred_fallthru
      _
  $region6: #{tree_energy_loss.2} parent=0 // loop_footer
    %s15 = sadd.s32 1, %s11
  $region7: #{tree_energy_loss.2} parent=0 // loop_footer_branch
    %10 = sbr.rel target = $region3
  $region8: #{tree_energy_loss.2} parent=0 // loop_exit
    _

// kernel: tree_energy_loss.3
$region0: #{tree_energy_loss.3}
  #allocation0 [shape = 'u32[]', space=smem, size = 0x4, offset = 0x4, fixed_abs, tag = 'smem constant byte address 0x4 - core index']
  #allocation1 [shape = 'u32[144,128]{1,0:T(1,128)}', space=vmem, size = 0x12000, scoped, tag = 'internal scratch']
  #allocation2 [shape = 'f32[256,256]{1,0:T(8,128)}', space=vmem, size = 0x40000, scoped, tag = 'scratch operand']
  %s0 = inlined_call_operand.vmem [shape: s32[2,256,1], index: 0, kind: input, shape index: {}]
  %s1 = inlined_call_operand.vmem [shape: f32[2,256,1], index: 1, kind: input, shape index: {}]
  %s2 = inlined_call_operand.vmem [shape: s32[2,1,256], index: 2, kind: input, shape index: {}]
  %s3 = inlined_call_operand.vmem [shape: f32[2,1,256], index: 3, kind: input, shape index: {}]
  %s4 = inlined_call_operand.vmem [shape: f32[2,4,256], index: 4, kind: input, shape index: {}]
  %s5 = inlined_call_operand.vmem [shape: f32[2,4,256], index: 5, kind: input, shape index: {}]
  %s6 = inlined_call_operand.vmem [shape: f32[2,1,256], index: 6, kind: input, shape index: {}]
  %s7 = inlined_call_operand.vmem [shape: f32[2,1,1], index: 7, kind: output, shape index: {0}]
  %s8 = inlined_call_operand.vmem [shape: f32[2,1,1], index: 8, kind: output, shape index: {1}]
  %9 = xla_tuple %s7, %s8
  %s10 = sld [smem:[#allocation0]]
  $region76: #{tree_energy_loss.3} parent=0
    _
  %s12 = ssub.s32 1, %s10
  %s13 = scalar_select 0, %s12, %s10
  loop: start=0, step=1, limit=4
  $region2: #{tree_energy_loss.3} parent=0 // loop_pre_header
    _
  $region3: #{tree_energy_loss.3} parent=0 // loop_header
    %s15 = sphi 0, %s19
    %p16 = scmp.ge.s32.totalorder %s15, 4
    %s25 = sphi 0, %s27
    %s28 = sphi 0, %s25
    %s29 = sphi 0, %s28
    %s45 = sphi 0, %s29
    %s51 = sphi 0, %s53
    %s54 = sphi 0, %s51
    %s55 = sphi 0, %s54
    %s71 = sphi 0, %s55
    %s77 = sphi 0, %s79
    %s80 = sphi 0, %s77
    %s81 = sphi 0, %s80
    %s97 = sphi 0, %s81
    %s103 = sphi 0, %s105
    %s106 = sphi 0, %s103
    %s107 = sphi 0, %s106
    %s123 = sphi 0, %s107
    %s129 = sphi 0, %s131
    %s132 = sphi 0, %s129
    %s133 = sphi 0, %s132
    %s149 = sphi 0, %s133
    %s155 = sphi 0, %s157
    %s158 = sphi 0, %s155
    %s159 = sphi 0, %s158
    %s175 = sphi 0, %s159
    %s181 = sphi 0, %s183
    %s184 = sphi 0, %s181
    %s185 = sphi 0, %s184
    %s201 = sphi 0, %s185
    %s207 = sphi 0, %s209
    %s210 = sphi 0, %s207
    %s211 = sphi 0, %s210
    %s227 = sphi 0, %s211
    %s233 = sphi 0, %s235
    %s236 = sphi 0, %s233
    %s237 = sphi 0, %s236
    %s253 = sphi 0, %s237
  $region4: #{tree_energy_loss.3} parent=0 // loop_header_branch
    %18 = sbr.rel (%p16) target = $region8
  $region5: #{tree_energy_loss.3} parent=0 // loop_body
    %s20 = ssub.s32 %s15, 1
    %s21 = ssub.s32 %s15, 2
    %s22 = sadd.s32 %s15, 1
    %s23 = ssub.s32 %s15, %s22
    %p24 = scmp.eq.s32.totalorder %s23, 0
    %s26 = sadd.s32 %s25, 1
    %s27 = scalar_select %p24, %s25, %s26
    %p30 = pneg %p24
    %p31 = scmp.eq.s32.totalorder %s15, 1
    %p32 = por %p30, %p31
    %p33 = scmp.ne.s32.totalorder %s25, %s28
    %p34 = scmp.eq.s32.totalorder %s15, 0
    %p35 = por %p33, %p34
    %p36 = scmp.ne.s32.totalorder %s25, %s28
    %p37 = scmp.eq.s32.totalorder %s20, 1
    %p38 = por %p36, %p37
    %p39 = scmp.ne.s32.totalorder %s28, %s29
    %p40 = scmp.eq.s32.totalorder %s20, 0
    %p41 = por %p39, %p40
    %p42 = scmp.ne.s32.totalorder %s28, %s29
    %p43 = scmp.eq.s32.totalorder %s21, 1
    %p44 = por %p42, %p43
    %p46 = scmp.ne.s32.totalorder %s29, %s45
    %p47 = scmp.eq.s32.totalorder %s21, 0
    %p48 = por %p46, %p47
    %s49 = ssub.s32 %s15, %s22
    %p50 = scmp.eq.s32.totalorder %s49, 0
    %s52 = sadd.s32 %s51, 1
    %s53 = scalar_select %p50, %s51, %s52
    %p56 = pneg %p50
    %p57 = scmp.eq.s32.totalorder %s15, 1
    %p58 = por %p56, %p57
    %p59 = scmp.ne.s32.totalorder %s51, %s54
    %p60 = scmp.eq.s32.totalorder %s15, 0
    %p61 = por %p59, %p60
    %p62 = scmp.ne.s32.totalorder %s51, %s54
    %p63 = scmp.eq.s32.totalorder %s20, 1
    %p64 = por %p62, %p63
    %p65 = scmp.ne.s32.totalorder %s54, %s55
    %p66 = scmp.eq.s32.totalorder %s20, 0
    %p67 = por %p65, %p66
    %p68 = scmp.ne.s32.totalorder %s54, %s55
    %p69 = scmp.eq.s32.totalorder %s21, 1
    %p70 = por %p68, %p69
    %p72 = scmp.ne.s32.totalorder %s55, %s71
    %p73 = scmp.eq.s32.totalorder %s21, 0
    %p74 = por %p72, %p73
    %s75 = ssub.s32 %s15, %s22
    %p76 = scmp.eq.s32.totalorder %s75, 0
    %s78 = sadd.s32 %s77, 1
    %s79 = scalar_select %p76, %s77, %s78
    %p82 = pneg %p76
    %p83 = scmp.eq.s32.totalorder %s15, 1
    %p84 = por %p82, %p83
    %p85 = scmp.ne.s32.totalorder %s77, %s80
    %p86 = scmp.eq.s32.totalorder %s15, 0
    %p87 = por %p85, %p86
    %p88 = scmp.ne.s32.totalorder %s77, %s80
    %p89 = scmp.eq.s32.totalorder %s20, 1
    %p90 = por %p88, %p89
    %p91 = scmp.ne.s32.totalorder %s80, %s81
    %p92 = scmp.eq.s32.totalorder %s20, 0
    %p93 = por %p91, %p92
    %p94 = scmp.ne.s32.totalorder %s80, %s81
    %p95 = scmp.eq.s32.totalorder %s21, 1
    %p96 = por %p94, %p95
    %p98 = scmp.ne.s32.totalorder %s81, %s97
    %p99 = scmp.eq.s32.totalorder %s21, 0
    %p100 = por %p98, %p99
    %s101 = ssub.s32 %s15, %s22
    %p102 = scmp.eq.s32.totalorder %s101, 0
    %s104 = sadd.s32 %s103, 1
    %s105 = scalar_select %p102, %s103, %s104
    %p108 = pneg %p102
    %p109 = scmp.eq.s32.totalorder %s15, 1
    %p110 = por %p108, %p109
    %p111 = scmp.ne.s32.totalorder %s103, %s106
    %p112 = scmp.eq.s32.totalorder %s15, 0
    %p113 = por %p111, %p112
    %p114 = scmp.ne.s32.totalorder %s103, %s106
    %p115 = scmp.eq.s32.totalorder %s20, 1
    %p116 = por %p114, %p115
    %p117 = scmp.ne.s32.totalorder %s106, %s107
    %p118 = scmp.eq.s32.totalorder %s20, 0
    %p119 = por %p117, %p118
    %p120 = scmp.ne.s32.totalorder %s106, %s107
    %p121 = scmp.eq.s32.totalorder %s21, 1
    %p122 = por %p120, %p121
    %p124 = scmp.ne.s32.totalorder %s107, %s123
    %p125 = scmp.eq.s32.totalorder %s21, 0
    %p126 = por %p124, %p125
    %s127 = ssub.s32 %s15, %s22
    %p128 = scmp.eq.s32.totalorder %s127, 0
    %s130 = sadd.s32 %s129, 1
    %s131 = scalar_select %p128, %s129, %s130
    %p134 = pneg %p128
    %p135 = scmp.eq.s32.totalorder %s15, 1
    %p136 = por %p134, %p135
    %p137 = scmp.ne.s32.totalorder %s129, %s132
    %p138 = scmp.eq.s32.totalorder %s15, 0
    %p139 = por %p137, %p138
    %p140 = scmp.ne.s32.totalorder %s129, %s132
    %p141 = scmp.eq.s32.totalorder %s20, 1
    %p142 = por %p140, %p141
    %p143 = scmp.ne.s32.totalorder %s132, %s133
    %p144 = scmp.eq.s32.totalorder %s20, 0
    %p145 = por %p143, %p144
    %p146 = scmp.ne.s32.totalorder %s132, %s133
    %p147 = scmp.eq.s32.totalorder %s21, 1
    %p148 = por %p146, %p147
    %p150 = scmp.ne.s32.totalorder %s133, %s149
    %p151 = scmp.eq.s32.totalorder %s21, 0
    %p152 = por %p150, %p151
    %s153 = ssub.s32 %s15, %s22
    %p154 = scmp.eq.s32.totalorder %s153, 0
    %s156 = sadd.s32 %s155, 1
    %s157 = scalar_select %p154, %s155, %s156
    %p160 = pneg %p154
    %p161 = scmp.eq.s32.totalorder %s15, 1
    %p162 = por %p160, %p161
    %p163 = scmp.ne.s32.totalorder %s155, %s158
    %p164 = scmp.eq.s32.totalorder %s15, 0
    %p165 = por %p163, %p164
    %p166 = scmp.ne.s32.totalorder %s155, %s158
    %p167 = scmp.eq.s32.totalorder %s20, 1
    %p168 = por %p166, %p167
    %p169 = scmp.ne.s32.totalorder %s158, %s159
    %p170 = scmp.eq.s32.totalorder %s20, 0
    %p171 = por %p169, %p170
    %p172 = scmp.ne.s32.totalorder %s158, %s159
    %p173 = scmp.eq.s32.totalorder %s21, 1
    %p174 = por %p172, %p173
    %p176 = scmp.ne.s32.totalorder %s159, %s175
    %p177 = scmp.eq.s32.totalorder %s21, 0
    %p178 = por %p176, %p177
    %s179 = ssub.s32 %s15, %s22
    %p180 = scmp.eq.s32.totalorder %s179, 0
    %s182 = sadd.s32 %s181, 1
    %s183 = scalar_select %p180, %s181, %s182
    %p186 = pneg %p180
    %p187 = scmp.eq.s32.totalorder %s15, 1
    %p188 = por %p186, %p187
    %p189 = scmp.ne.s32.totalorder %s181, %s184
    %p190 = scmp.eq.s32.totalorder %s15, 0
    %p191 = por %p189, %p190
    %p192 = scmp.ne.s32.totalorder %s181, %s184
    %p193 = scmp.eq.s32.totalorder %s20, 1
    %p194 = por %p192, %p193
    %p195 = scmp.ne.s32.totalorder %s184, %s185
    %p196 = scmp.eq.s32.totalorder %s20, 0
    %p197 = por %p195, %p196
    %p198 = scmp.ne.s32.totalorder %s184, %s185
    %p199 = scmp.eq.s32.totalorder %s21, 1
    %p200 = por %p198, %p199
    %p202 = scmp.ne.s32.totalorder %s185, %s201
    %p203 = scmp.eq.s32.totalorder %s21, 0
    %p204 = por %p202, %p203
    %s205 = ssub.s32 %s15, %s22
    %p206 = scmp.eq.s32.totalorder %s205, 0
    %s208 = sadd.s32 %s207, 1
    %s209 = scalar_select %p206, %s207, %s208
    %p212 = pneg %p206
    %p213 = scmp.eq.s32.totalorder %s15, 1
    %p214 = por %p212, %p213
    %p215 = scmp.ne.s32.totalorder %s207, %s210
    %p216 = scmp.eq.s32.totalorder %s15, 0
    %p217 = por %p215, %p216
    %p218 = scmp.ne.s32.totalorder %s207, %s210
    %p219 = scmp.eq.s32.totalorder %s20, 1
    %p220 = por %p218, %p219
    %p221 = scmp.ne.s32.totalorder %s210, %s211
    %p222 = scmp.eq.s32.totalorder %s20, 0
    %p223 = por %p221, %p222
    %p224 = scmp.ne.s32.totalorder %s210, %s211
    %p225 = scmp.eq.s32.totalorder %s21, 1
    %p226 = por %p224, %p225
    %p228 = scmp.ne.s32.totalorder %s211, %s227
    %p229 = scmp.eq.s32.totalorder %s21, 0
    %p230 = por %p228, %p229
    %s231 = ssub.s32 %s15, %s22
    %p232 = scmp.eq.s32.totalorder %s231, 0
    %s234 = sadd.s32 %s233, 1
    %s235 = scalar_select %p232, %s233, %s234
    %p238 = pneg %p232
    %p239 = scmp.eq.s32.totalorder %s15, 1
    %p240 = por %p238, %p239
    %p241 = scmp.ne.s32.totalorder %s233, %s236
    %p242 = scmp.eq.s32.totalorder %s15, 0
    %p243 = por %p241, %p242
    %p244 = scmp.ne.s32.totalorder %s233, %s236
    %p245 = scmp.eq.s32.totalorder %s20, 1
    %p246 = por %p244, %p245
    %p247 = scmp.ne.s32.totalorder %s236, %s237
    %p248 = scmp.eq.s32.totalorder %s20, 0
    %p249 = por %p247, %p248
    %p250 = scmp.ne.s32.totalorder %s236, %s237
    %p251 = scmp.eq.s32.totalorder %s21, 1
    %p252 = por %p250, %p251
    %p254 = scmp.ne.s32.totalorder %s237, %s253
    %p255 = scmp.eq.s32.totalorder %s21, 0
    %p256 = por %p254, %p255
    %p257 = scmp.le.s32.totalorder 1, %s15
    %p258 = scmp.lt.s32.totalorder %s15, 3
    %p259 = pnand %p257, %p258
    %p260 = pneg %p259
    // Predicated region
    $region9: #{tree_energy_loss.3} parent=5 // pred_check
      _
    $region10: #{tree_energy_loss.3} parent=5 // pred_check_branch
      %262 = sbr.rel (%p259) target = $region12
    $region11: #{tree_energy_loss.3} parent=5 // pred_region
      %s263 = ssub.s32 %s15, 1
    $region12: #{tree_energy_loss.3} parent=5 // pred_fallthru
      _
    %p264 = scmp.lt.s32.totalorder %s15, 2
    // Predicated region
    $region13: #{tree_energy_loss.3} parent=5 // pred_check
      %p265 = pneg %p264
    $region14: #{tree_energy_loss.3} parent=5 // pred_check_branch
      %267 = sbr.rel (%p265) target = $region16
    $region15: #{tree_energy_loss.3} parent=5 // pred_region
      // Predicated region
      $region17: #{tree_energy_loss.3} parent=15 // pred_check
        %p268 = pneg %p35
      $region18: #{tree_energy_loss.3} parent=15 // pred_check_branch
        %270 = sbr.rel (%p268) target = $region20
      $region19: #{tree_energy_loss.3} parent=15 // pred_region
        %p271 = scmp.lt.s32.totalorder %s15, 1
        %s272 = scalar_select %p271, %s15, 1
        %s273 = smul.addr %s272, 32
        %s274 = smul.addr %s273, 8
        %s275 = scalar_lea.vmem %s0, %s274
      $region20: #{tree_energy_loss.3} parent=15 // pred_fallthru
        _
      // Predicated region
      $region21: #{tree_energy_loss.3} parent=15 // pred_check
        %p276 = pneg %p61
      $region22: #{tree_energy_loss.3} parent=15 // pred_check_branch
        %278 = sbr.rel (%p276) target = $region24
      $region23: #{tree_energy_loss.3} parent=15 // pred_region
        %p279 = scmp.lt.s32.totalorder %s15, 1
        %s280 = scalar_select %p279, %s15, 1
        %s281 = smul.addr %s280, 32
        %s282 = smul.addr %s281, 8
        %s283 = scalar_lea.vmem %s1, %s282
      $region24: #{tree_energy_loss.3} parent=15 // pred_fallthru
        _
      // Predicated region
      $region25: #{tree_energy_loss.3} parent=15 // pred_check
        %p284 = pneg %p87
      $region26: #{tree_energy_loss.3} parent=15 // pred_check_branch
        %286 = sbr.rel (%p284) target = $region28
      $region27: #{tree_energy_loss.3} parent=15 // pred_region
        %p287 = scmp.lt.s32.totalorder %s15, 1
        %s288 = scalar_select %p287, %s15, 1
        %s289 = smul.addr %s288, 2
        %s290 = scalar_lea.vmem %s2, %s289
      $region28: #{tree_energy_loss.3} parent=15 // pred_fallthru
        _
      // Predicated region
      $region29: #{tree_energy_loss.3} parent=15 // pred_check
        %p291 = pneg %p113
      $region30: #{tree_energy_loss.3} parent=15 // pred_check_branch
        %293 = sbr.rel (%p291) target = $region32
      $region31: #{tree_energy_loss.3} parent=15 // pred_region
        %p294 = scmp.lt.s32.totalorder %s15, 1
        %s295 = scalar_select %p294, %s15, 1
        %s296 = smul.addr %s295, 2
        %s297 = scalar_lea.vmem %s3, %s296
      $region32: #{tree_energy_loss.3} parent=15 // pred_fallthru
        _
      // Predicated region
      $region33: #{tree_energy_loss.3} parent=15 // pred_check
        %p298 = pneg %p139
      $region34: #{tree_energy_loss.3} parent=15 // pred_check_branch
        %300 = sbr.rel (%p298) target = $region36
      $region35: #{tree_energy_loss.3} parent=15 // pred_region
        %p301 = scmp.lt.s32.totalorder %s15, 1
        %s302 = scalar_select %p301, %s15, 1
        %s303 = smul.addr %s302, 2
        %s304 = smul.addr %s303, 4
        %s305 = scalar_lea.vmem %s4, %s304
      $region36: #{tree_energy_loss.3} parent=15 // pred_fallthru
        _
      // Predicated region
      $region37: #{tree_energy_loss.3} parent=15 // pred_check
        %p306 = pneg %p165
      $region38: #{tree_energy_loss.3} parent=15 // pred_check_branch
        %308 = sbr.rel (%p306) target = $region40
      $region39: #{tree_energy_loss.3} parent=15 // pred_region
        %p309 = scmp.lt.s32.totalorder %s15, 1
        %s310 = scalar_select %p309, %s15, 1
        %s311 = smul.addr %s310, 2
        %s312 = smul.addr %s311, 4
        %s313 = scalar_lea.vmem %s5, %s312
      $region40: #{tree_energy_loss.3} parent=15 // pred_fallthru
        _
      // Predicated region
      $region41: #{tree_energy_loss.3} parent=15 // pred_check
        %p314 = pneg %p191
      $region42: #{tree_energy_loss.3} parent=15 // pred_check_branch
        %316 = sbr.rel (%p314) target = $region44
      $region43: #{tree_energy_loss.3} parent=15 // pred_region
        %p317 = scmp.lt.s32.totalorder %s15, 1
        %s318 = scalar_select %p317, %s15, 1
        %s319 = smul.addr %s318, 2
        %s320 = scalar_lea.vmem %s6, %s319
      $region44: #{tree_energy_loss.3} parent=15 // pred_fallthru
        _
    $region16: #{tree_energy_loss.3} parent=5 // pred_fallthru
      _
    %p321 = scmp.le.s32.totalorder 1, %s15
    %p322 = scmp.lt.s32.totalorder %s15, 3
    %p323 = pnand %p321, %p322
    %p324 = pneg %p323
    // Predicated region
    $region45: #{tree_energy_loss.3} parent=5 // pred_check
      _
    $region46: #{tree_energy_loss.3} parent=5 // pred_check_branch
      %326 = sbr.rel (%p323) target = $region48
    $region47: #{tree_energy_loss.3} parent=5 // pred_region
      %s327 = ssub.s32 %s15, 1
      %p328 = scmp.lt.s32.totalorder %s20, 1
      %s329 = scalar_select %p328, %s20, 1
      %s330 = smul.addr %s329, 32
      %s331 = smul.addr %s330, 8
      %s332 = scalar_lea.vmem %s0, %s331
      %p333 = pneg %p41
      %p334 = pneg %p38
      %p335 = scmp.lt.s32.totalorder %s20, 1
      %s336 = scalar_select %p335, %s20, 1
      %s337 = smul.addr %s336, 32
      %s338 = smul.addr %s337, 8
      %s339 = scalar_lea.vmem %s1, %s338
      %p340 = pneg %p67
      %p341 = pneg %p64
      %p342 = scmp.lt.s32.totalorder %s20, 1
      %s343 = scalar_select %p342, %s20, 1
      %s344 = smul.addr %s343, 2
      %s345 = scalar_lea.vmem %s2, %s344
      %p346 = pneg %p93
      %p347 = pneg %p90
      %p348 = scmp.lt.s32.totalorder %s20, 1
      %s349 = scalar_select %p348, %s20, 1
      %s350 = smul.addr %s349, 2
      %s351 = scalar_lea.vmem %s3, %s350
      %p352 = pneg %p119
      %p353 = pneg %p116
      %p354 = scmp.lt.s32.totalorder %s20, 1
      %s355 = scalar_select %p354, %s20, 1
      %s356 = smul.addr %s355, 2
      %s357 = smul.addr %s356, 4
      %s358 = scalar_lea.vmem %s4, %s357
      %p359 = pneg %p145
      %p360 = pneg %p142
      %p361 = scmp.lt.s32.totalorder %s20, 1
      %s362 = scalar_select %p361, %s20, 1
      %s363 = smul.addr %s362, 2
      %s364 = smul.addr %s363, 4
      %s365 = scalar_lea.vmem %s5, %s364
      %p366 = pneg %p171
      %p367 = pneg %p168
      %p368 = scmp.lt.s32.totalorder %s20, 1
      %s369 = scalar_select %p368, %s20, 1
      %s370 = smul.addr %s369, 2
      %s371 = scalar_lea.vmem %s6, %s370
      %p372 = pneg %p197
      %p373 = pneg %p194
      %p374 = pneg %p223
      %p375 = pneg %p220
      %p376 = scmp.lt.s32.totalorder %s20, 1
      %s377 = scalar_select %p376, %s20, 1
      %s378 = scalar_lea.vmem %s7, %s377
      %p379 = pneg %p249
      %p380 = pneg %p246
      %p381 = scmp.lt.s32.totalorder %s20, 1
      %s382 = scalar_select %p381, %s20, 1
      %s383 = scalar_lea.vmem %s8, %s382
      %p384 = scmp.lt.s32.totalorder %s20, 1
      %s385 = scalar_select %p384, %s20, 1
      %s386 = smul.addr %s385, 32
      %s387 = smul.addr %s386, 8
      %s388 = scalar_lea.vmem %s0, %s387
      %p389 = scmp.lt.s32.totalorder %s20, 1
      %s390 = scalar_select %p389, %s20, 1
      %s391 = smul.addr %s390, 32
      %s392 = smul.addr %s391, 8
      %s393 = scalar_lea.vmem %s1, %s392
      %p394 = scmp.lt.s32.totalorder %s20, 1
      %s395 = scalar_select %p394, %s20, 1
      %s396 = smul.addr %s395, 2
      %s397 = scalar_lea.vmem %s2, %s396
      %p398 = scmp.lt.s32.totalorder %s20, 1
      %s399 = scalar_select %p398, %s20, 1
      %s400 = smul.addr %s399, 2
      %s401 = scalar_lea.vmem %s3, %s400
      %p402 = scmp.lt.s32.totalorder %s20, 1
      %s403 = scalar_select %p402, %s20, 1
      %s404 = smul.addr %s403, 2
      %s405 = smul.addr %s404, 4
      %s406 = scalar_lea.vmem %s4, %s405
      %p407 = scmp.lt.s32.totalorder %s20, 1
      %s408 = scalar_select %p407, %s20, 1
      %s409 = smul.addr %s408, 2
      %s410 = smul.addr %s409, 4
      %s411 = scalar_lea.vmem %s5, %s410
      %p412 = scmp.lt.s32.totalorder %s20, 1
      %s413 = scalar_select %p412, %s20, 1
      %s414 = smul.addr %s413, 2
      %s415 = scalar_lea.vmem %s6, %s414
      %p416 = scmp.lt.s32.totalorder %s20, 1
      %s417 = scalar_select %p416, %s20, 1
      %s418 = scalar_lea.vmem %s7, %s417
      %p419 = scmp.lt.s32.totalorder %s20, 1
      %s420 = scalar_select %p419, %s20, 1
      %s421 = scalar_lea.vmem %s8, %s420
      %v423 = vld [vmem:[%s388] sm:$0xff]
      %v424 = vld [vmem:[%s388 + $0x8] sm:$0xff]
      %v425 = vld [vmem:[%s388 + $0x10] sm:$0xff]
      %v426 = vld [vmem:[%s388 + $0x18] sm:$0xff]
      %v427 = vld [vmem:[%s388 + $0x20] sm:$0xff]
      %v428 = vld [vmem:[%s388 + $0x28] sm:$0xff]
      %v429 = vld [vmem:[%s388 + $0x30] sm:$0xff]
      %v430 = vld [vmem:[%s388 + $0x38] sm:$0xff]
      %v431 = vld [vmem:[%s388 + $0x40] sm:$0xff]
      %v432 = vld [vmem:[%s388 + $0x48] sm:$0xff]
      %v433 = vld [vmem:[%s388 + $0x50] sm:$0xff]
      %v434 = vld [vmem:[%s388 + $0x58] sm:$0xff]
      %v435 = vld [vmem:[%s388 + $0x60] sm:$0xff]
      %v436 = vld [vmem:[%s388 + $0x68] sm:$0xff]
      %v437 = vld [vmem:[%s388 + $0x70] sm:$0xff]
      %v438 = vld [vmem:[%s388 + $0x78] sm:$0xff]
      %v439 = vld [vmem:[%s388 + $0x80] sm:$0xff]
      %v440 = vld [vmem:[%s388 + $0x88] sm:$0xff]
      %v441 = vld [vmem:[%s388 + $0x90] sm:$0xff]
      %v442 = vld [vmem:[%s388 + $0x98] sm:$0xff]
      %v443 = vld [vmem:[%s388 + $0xa0] sm:$0xff]
      %v444 = vld [vmem:[%s388 + $0xa8] sm:$0xff]
      %v445 = vld [vmem:[%s388 + $0xb0] sm:$0xff]
      %v446 = vld [vmem:[%s388 + $0xb8] sm:$0xff]
      %v447 = vld [vmem:[%s388 + $0xc0] sm:$0xff]
      %v448 = vld [vmem:[%s388 + $0xc8] sm:$0xff]
      %v449 = vld [vmem:[%s388 + $0xd0] sm:$0xff]
      %v450 = vld [vmem:[%s388 + $0xd8] sm:$0xff]
      %v451 = vld [vmem:[%s388 + $0xe0] sm:$0xff]
      %v452 = vld [vmem:[%s388 + $0xe8] sm:$0xff]
      %v453 = vld [vmem:[%s388 + $0xf0] sm:$0xff]
      %v454 = vld [vmem:[%s388 + $0xf8] sm:$0xff]
      %v455 = vld [vmem:[%s393] sm:$0xff]
      %v456 = vld [vmem:[%s393 + $0x8] sm:$0xff]
      %v457 = vld [vmem:[%s393 + $0x10] sm:$0xff]
      %v458 = vld [vmem:[%s393 + $0x18] sm:$0xff]
      %v459 = vld [vmem:[%s393 + $0x20] sm:$0xff]
      %v460 = vld [vmem:[%s393 + $0x28] sm:$0xff]
      %v461 = vld [vmem:[%s393 + $0x30] sm:$0xff]
      %v462 = vld [vmem:[%s393 + $0x38] sm:$0xff]
      %v463 = vld [vmem:[%s393 + $0x40] sm:$0xff]
      %v464 = vld [vmem:[%s393 + $0x48] sm:$0xff]
      %v465 = vld [vmem:[%s393 + $0x50] sm:$0xff]
      %v466 = vld [vmem:[%s393 + $0x58] sm:$0xff]
      %v467 = vld [vmem:[%s393 + $0x60] sm:$0xff]
      %v468 = vld [vmem:[%s393 + $0x68] sm:$0xff]
      %v469 = vld [vmem:[%s393 + $0x70] sm:$0xff]
      %v470 = vld [vmem:[%s393 + $0x78] sm:$0xff]
      %v471 = vld [vmem:[%s393 + $0x80] sm:$0xff]
      %v472 = vld [vmem:[%s393 + $0x88] sm:$0xff]
      %v473 = vld [vmem:[%s393 + $0x90] sm:$0xff]
      %v474 = vld [vmem:[%s393 + $0x98] sm:$0xff]
      %v475 = vld [vmem:[%s393 + $0xa0] sm:$0xff]
      %v476 = vld [vmem:[%s393 + $0xa8] sm:$0xff]
      %v477 = vld [vmem:[%s393 + $0xb0] sm:$0xff]
      %v478 = vld [vmem:[%s393 + $0xb8] sm:$0xff]
      %v479 = vld [vmem:[%s393 + $0xc0] sm:$0xff]
      %v480 = vld [vmem:[%s393 + $0xc8] sm:$0xff]
      %v481 = vld [vmem:[%s393 + $0xd0] sm:$0xff]
      %v482 = vld [vmem:[%s393 + $0xd8] sm:$0xff]
      %v483 = vld [vmem:[%s393 + $0xe0] sm:$0xff]
      %v484 = vld [vmem:[%s393 + $0xe8] sm:$0xff]
      %v485 = vld [vmem:[%s393 + $0xf0] sm:$0xff]
      %v486 = vld [vmem:[%s393 + $0xf8] sm:$0xff]
      %v487 = vld [vmem:[%s397] sm:$0x3]
      %v488 = vld [vmem:[%s401] sm:$0x3]
      %v489 = vlaneseq
      %v490 = vshrl.u32 %v489, 7
      %v491 = vadd.s32 %v490, 8
      %v492 = vadd.s32 %v490, 16
      %v493 = vadd.s32 %v490, 24
      %v494 = vadd.s32 %v490, 32
      %v495 = vadd.s32 %v490, 40
      %v496 = vadd.s32 %v490, 48
      %v497 = vadd.s32 %v490, 56
      %v498 = vadd.s32 %v490, 64
      %v499 = vadd.s32 %v490, 72
      %v500 = vadd.s32 %v490, 80
      %v501 = vadd.s32 %v490, 88
      %v502 = vadd.s32 %v490, 96
      %v503 = vadd.s32 %v490, 104
      %v504 = vadd.s32 %v490, 112
      %v505 = vadd.s32 %v490, 120
      %v506 = vadd.s32 %v490, 128
      %v507 = vadd.s32 %v490, 136
      %v508 = vadd.s32 %v490, 144
      %v509 = vadd.s32 %v490, 152
      %v510 = vadd.s32 %v490, 160
      %v511 = vadd.s32 %v490, 168
      %v512 = vadd.s32 %v490, 176
      %v513 = vadd.s32 %v490, 184
      %v514 = vadd.s32 %v490, 192
      %v515 = vadd.s32 %v490, 200
      %v516 = vadd.s32 %v490, 208
      %v517 = vadd.s32 %v490, 216
      %v518 = vadd.s32 %v490, 224
      %v519 = vadd.s32 %v490, 232
      %v520 = vadd.s32 %v490, 240
      %v521 = vadd.s32 %v490, 248
      %v522 = vlaneseq
      %v523 = vand.u32 %v522, 127
      %v524 = vadd.s32 %v523, 128
      %vm525 = vcmp.eq.s32.totalorder %v490, %v523
      %vm526 = vcmp.eq.s32.totalorder %v490, %v524
      %vm527 = vcmp.eq.s32.totalorder %v491, %v523
      %vm528 = vcmp.eq.s32.totalorder %v491, %v524
      %vm529 = vcmp.eq.s32.totalorder %v492, %v523
      %vm530 = vcmp.eq.s32.totalorder %v492, %v524
      %vm531 = vcmp.eq.s32.totalorder %v493, %v523
      %vm532 = vcmp.eq.s32.totalorder %v493, %v524
      %vm533 = vcmp.eq.s32.totalorder %v494, %v523
      %vm534 = vcmp.eq.s32.totalorder %v494, %v524
      %vm535 = vcmp.eq.s32.totalorder %v495, %v523
      %vm536 = vcmp.eq.s32.totalorder %v495, %v524
      %vm537 = vcmp.eq.s32.totalorder %v496, %v523
      %vm538 = vcmp.eq.s32.totalorder %v496, %v524
      %vm539 = vcmp.eq.s32.totalorder %v497, %v523
      %vm540 = vcmp.eq.s32.totalorder %v497, %v524
      %vm541 = vcmp.eq.s32.totalorder %v498, %v523
      %vm542 = vcmp.eq.s32.totalorder %v498, %v524
      %vm543 = vcmp.eq.s32.totalorder %v499, %v523
      %vm544 = vcmp.eq.s32.totalorder %v499, %v524
      %vm545 = vcmp.eq.s32.totalorder %v500, %v523
      %vm546 = vcmp.eq.s32.totalorder %v500, %v524
      %vm547 = vcmp.eq.s32.totalorder %v501, %v523
      %vm548 = vcmp.eq.s32.totalorder %v501, %v524
      %vm549 = vcmp.eq.s32.totalorder %v502, %v523
      %vm550 = vcmp.eq.s32.totalorder %v502, %v524
      %vm551 = vcmp.eq.s32.totalorder %v503, %v523
      %vm552 = vcmp.eq.s32.totalorder %v503, %v524
      %vm553 = vcmp.eq.s32.totalorder %v504, %v523
      %vm554 = vcmp.eq.s32.totalorder %v504, %v524
      %vm555 = vcmp.eq.s32.totalorder %v505, %v523
      %vm556 = vcmp.eq.s32.totalorder %v505, %v524
      %vm557 = vcmp.eq.s32.totalorder %v506, %v523
      %vm558 = vcmp.eq.s32.totalorder %v506, %v524
      %vm559 = vcmp.eq.s32.totalorder %v507, %v523
      %vm560 = vcmp.eq.s32.totalorder %v507, %v524
      %vm561 = vcmp.eq.s32.totalorder %v508, %v523
      %vm562 = vcmp.eq.s32.totalorder %v508, %v524
      %vm563 = vcmp.eq.s32.totalorder %v509, %v523
      %vm564 = vcmp.eq.s32.totalorder %v509, %v524
      %vm565 = vcmp.eq.s32.totalorder %v510, %v523
      %vm566 = vcmp.eq.s32.totalorder %v510, %v524
      %vm567 = vcmp.eq.s32.totalorder %v511, %v523
      %vm568 = vcmp.eq.s32.totalorder %v511, %v524
      %vm569 = vcmp.eq.s32.totalorder %v512, %v523
      %vm570 = vcmp.eq.s32.totalorder %v512, %v524
      %vm571 = vcmp.eq.s32.totalorder %v513, %v523
      %vm572 = vcmp.eq.s32.totalorder %v513, %v524
      %vm573 = vcmp.eq.s32.totalorder %v514, %v523
      %vm574 = vcmp.eq.s32.totalorder %v514, %v524
      %vm575 = vcmp.eq.s32.totalorder %v515, %v523
      %vm576 = vcmp.eq.s32.totalorder %v515, %v524
      %vm577 = vcmp.eq.s32.totalorder %v516, %v523
      %vm578 = vcmp.eq.s32.totalorder %v516, %v524
      %vm579 = vcmp.eq.s32.totalorder %v517, %v523
      %vm580 = vcmp.eq.s32.totalorder %v517, %v524
      %vm581 = vcmp.eq.s32.totalorder %v518, %v523
      %vm582 = vcmp.eq.s32.totalorder %v518, %v524
      %vm583 = vcmp.eq.s32.totalorder %v519, %v523
      %vm584 = vcmp.eq.s32.totalorder %v519, %v524
      %vm585 = vcmp.eq.s32.totalorder %v520, %v523
      %vm586 = vcmp.eq.s32.totalorder %v520, %v524
      %vm587 = vcmp.eq.s32.totalorder %v521, %v523
      %vm588 = vcmp.eq.s32.totalorder %v521, %v524
      %589 = vset.pattern.permute.xlu0 0
      %590 = vperm.xlu0 %589, %v423
      %v591 = vpop.permute.xlu0 %590
      %592 = vset.pattern.permute.xlu0 0
      %593 = vperm.xlu0 %592, %v424
      %v594 = vpop.permute.xlu0 %593
      %595 = vset.pattern.permute.xlu0 0
      %596 = vperm.xlu0 %595, %v425
      %v597 = vpop.permute.xlu0 %596
      %598 = vset.pattern.permute.xlu0 0
      %599 = vperm.xlu0 %598, %v426
      %v600 = vpop.permute.xlu0 %599
      %601 = vset.pattern.permute.xlu0 0
      %602 = vperm.xlu0 %601, %v427
      %v603 = vpop.permute.xlu0 %602
      %604 = vset.pattern.permute.xlu0 0
      %605 = vperm.xlu0 %604, %v428
      %v606 = vpop.permute.xlu0 %605
      %607 = vset.pattern.permute.xlu0 0
      %608 = vperm.xlu0 %607, %v429
      %v609 = vpop.permute.xlu0 %608
      %610 = vset.pattern.permute.xlu0 0
      %611 = vperm.xlu0 %610, %v430
      %v612 = vpop.permute.xlu0 %611
      %613 = vset.pattern.permute.xlu0 0
      %614 = vperm.xlu0 %613, %v431
      %v615 = vpop.permute.xlu0 %614
      %616 = vset.pattern.permute.xlu0 0
      %617 = vperm.xlu0 %616, %v432
      %v618 = vpop.permute.xlu0 %617
      %619 = vset.pattern.permute.xlu0 0
      %620 = vperm.xlu0 %619, %v433
      %v621 = vpop.permute.xlu0 %620
      %622 = vset.pattern.permute.xlu0 0
      %623 = vperm.xlu0 %622, %v434
      %v624 = vpop.permute.xlu0 %623
      %625 = vset.pattern.permute.xlu0 0
      %626 = vperm.xlu0 %625, %v435
      %v627 = vpop.permute.xlu0 %626
      %628 = vset.pattern.permute.xlu0 0
      %629 = vperm.xlu0 %628, %v436
      %v630 = vpop.permute.xlu0 %629
      %631 = vset.pattern.permute.xlu0 0
      %632 = vperm.xlu0 %631, %v437
      %v633 = vpop.permute.xlu0 %632
      %634 = vset.pattern.permute.xlu0 0
      %635 = vperm.xlu0 %634, %v438
      %v636 = vpop.permute.xlu0 %635
      %637 = vset.pattern.permute.xlu0 0
      %638 = vperm.xlu0 %637, %v439
      %v639 = vpop.permute.xlu0 %638
      %640 = vset.pattern.permute.xlu0 0
      %641 = vperm.xlu0 %640, %v440
      %v642 = vpop.permute.xlu0 %641
      %643 = vset.pattern.permute.xlu0 0
      %644 = vperm.xlu0 %643, %v441
      %v645 = vpop.permute.xlu0 %644
      %646 = vset.pattern.permute.xlu0 0
      %647 = vperm.xlu0 %646, %v442
      %v648 = vpop.permute.xlu0 %647
      %649 = vset.pattern.permute.xlu0 0
      %650 = vperm.xlu0 %649, %v443
      %v651 = vpop.permute.xlu0 %650
      %652 = vset.pattern.permute.xlu0 0
      %653 = vperm.xlu0 %652, %v444
      %v654 = vpop.permute.xlu0 %653
      %655 = vset.pattern.permute.xlu0 0
      %656 = vperm.xlu0 %655, %v445
      %v657 = vpop.permute.xlu0 %656
      %658 = vset.pattern.permute.xlu0 0
      %659 = vperm.xlu0 %658, %v446
      %v660 = vpop.permute.xlu0 %659
      %661 = vset.pattern.permute.xlu0 0
      %662 = vperm.xlu0 %661, %v447
      %v663 = vpop.permute.xlu0 %662
      %664 = vset.pattern.permute.xlu0 0
      %665 = vperm.xlu0 %664, %v448
      %v666 = vpop.permute.xlu0 %665
      %667 = vset.pattern.permute.xlu0 0
      %668 = vperm.xlu0 %667, %v449
      %v669 = vpop.permute.xlu0 %668
      %670 = vset.pattern.permute.xlu0 0
      %671 = vperm.xlu0 %670, %v450
      %v672 = vpop.permute.xlu0 %671
      %673 = vset.pattern.permute.xlu0 0
      %674 = vperm.xlu0 %673, %v451
      %v675 = vpop.permute.xlu0 %674
      %676 = vset.pattern.permute.xlu0 0
      %677 = vperm.xlu0 %676, %v452
      %v678 = vpop.permute.xlu0 %677
      %679 = vset.pattern.permute.xlu0 0
      %680 = vperm.xlu0 %679, %v453
      %v681 = vpop.permute.xlu0 %680
      %682 = vset.pattern.permute.xlu0 0
      %683 = vperm.xlu0 %682, %v454
      %v684 = vpop.permute.xlu0 %683
      %vm685 = vcmp.eq.s32.totalorder %v591, %v523
      %vm686 = vcmp.eq.s32.totalorder %v591, %v524
      %vm687 = vcmp.eq.s32.totalorder %v594, %v523
      %vm688 = vcmp.eq.s32.totalorder %v594, %v524
      %vm689 = vcmp.eq.s32.totalorder %v597, %v523
      %vm690 = vcmp.eq.s32.totalorder %v597, %v524
      %vm691 = vcmp.eq.s32.totalorder %v600, %v523
      %vm692 = vcmp.eq.s32.totalorder %v600, %v524
      %vm693 = vcmp.eq.s32.totalorder %v603, %v523
      %vm694 = vcmp.eq.s32.totalorder %v603, %v524
      %vm695 = vcmp.eq.s32.totalorder %v606, %v523
      %vm696 = vcmp.eq.s32.totalorder %v606, %v524
      %vm697 = vcmp.eq.s32.totalorder %v609, %v523
      %vm698 = vcmp.eq.s32.totalorder %v609, %v524
      %vm699 = vcmp.eq.s32.totalorder %v612, %v523
      %vm700 = vcmp.eq.s32.totalorder %v612, %v524
      %vm701 = vcmp.eq.s32.totalorder %v615, %v523
      %vm702 = vcmp.eq.s32.totalorder %v615, %v524
      %vm703 = vcmp.eq.s32.totalorder %v618, %v523
      %vm704 = vcmp.eq.s32.totalorder %v618, %v524
      %vm705 = vcmp.eq.s32.totalorder %v621, %v523
      %vm706 = vcmp.eq.s32.totalorder %v621, %v524
      %vm707 = vcmp.eq.s32.totalorder %v624, %v523
      %vm708 = vcmp.eq.s32.totalorder %v624, %v524
      %vm709 = vcmp.eq.s32.totalorder %v627, %v523
      %vm710 = vcmp.eq.s32.totalorder %v627, %v524
      %vm711 = vcmp.eq.s32.totalorder %v630, %v523
      %vm712 = vcmp.eq.s32.totalorder %v630, %v524
      %vm713 = vcmp.eq.s32.totalorder %v633, %v523
      %vm714 = vcmp.eq.s32.totalorder %v633, %v524
      %vm715 = vcmp.eq.s32.totalorder %v636, %v523
      %vm716 = vcmp.eq.s32.totalorder %v636, %v524
      %vm717 = vcmp.eq.s32.totalorder %v639, %v523
      %vm718 = vcmp.eq.s32.totalorder %v639, %v524
      %vm719 = vcmp.eq.s32.totalorder %v642, %v523
      %vm720 = vcmp.eq.s32.totalorder %v642, %v524
      %vm721 = vcmp.eq.s32.totalorder %v645, %v523
      %vm722 = vcmp.eq.s32.totalorder %v645, %v524
      %vm723 = vcmp.eq.s32.totalorder %v648, %v523
      %vm724 = vcmp.eq.s32.totalorder %v648, %v524
      %vm725 = vcmp.eq.s32.totalorder %v651, %v523
      %vm726 = vcmp.eq.s32.totalorder %v651, %v524
      %vm727 = vcmp.eq.s32.totalorder %v654, %v523
      %vm728 = vcmp.eq.s32.totalorder %v654, %v524
      %vm729 = vcmp.eq.s32.totalorder %v657, %v523
      %vm730 = vcmp.eq.s32.totalorder %v657, %v524
      %vm731 = vcmp.eq.s32.totalorder %v660, %v523
      %vm732 = vcmp.eq.s32.totalorder %v660, %v524
      %vm733 = vcmp.eq.s32.totalorder %v663, %v523
      %vm734 = vcmp.eq.s32.totalorder %v663, %v524
      %vm735 = vcmp.eq.s32.totalorder %v666, %v523
      %vm736 = vcmp.eq.s32.totalorder %v666, %v524
      %vm737 = vcmp.eq.s32.totalorder %v669, %v523
      %vm738 = vcmp.eq.s32.totalorder %v669, %v524
      %vm739 = vcmp.eq.s32.totalorder %v672, %v523
      %vm740 = vcmp.eq.s32.totalorder %v672, %v524
      %vm741 = vcmp.eq.s32.totalorder %v675, %v523
      %vm742 = vcmp.eq.s32.totalorder %v675, %v524
      %vm743 = vcmp.eq.s32.totalorder %v678, %v523
      %vm744 = vcmp.eq.s32.totalorder %v678, %v524
      %vm745 = vcmp.eq.s32.totalorder %v681, %v523
      %vm746 = vcmp.eq.s32.totalorder %v681, %v524
      %vm747 = vcmp.eq.s32.totalorder %v684, %v523
      %vm748 = vcmp.eq.s32.totalorder %v684, %v524
      %v749 = vlaneseq
      %v750 = vshrl.u32 %v749, 7
      %v751 = vsub.s32 0, %v750
      %v752 = vrot.slane %v487, %v751
      %v753 = vlaneseq
      %v754 = vshrl.u32 %v753, 7
      %v755 = vsub.s32 1, %v754
      %v756 = vrot.slane %v487, %v755
      %vm757 = vcmp.eq.s32.totalorder %v752, %v490
      %vm758 = vcmp.eq.s32.totalorder %v756, %v490
      %vm759 = vcmp.eq.s32.totalorder %v752, %v491
      %vm760 = vcmp.eq.s32.totalorder %v756, %v491
      %vm761 = vcmp.eq.s32.totalorder %v752, %v492
      %vm762 = vcmp.eq.s32.totalorder %v756, %v492
      %vm763 = vcmp.eq.s32.totalorder %v752, %v493
      %vm764 = vcmp.eq.s32.totalorder %v756, %v493
      %vm765 = vcmp.eq.s32.totalorder %v752, %v494
      %vm766 = vcmp.eq.s32.totalorder %v756, %v494
      %vm767 = vcmp.eq.s32.totalorder %v752, %v495
      %vm768 = vcmp.eq.s32.totalorder %v756, %v495
      %vm769 = vcmp.eq.s32.totalorder %v752, %v496
      %vm770 = vcmp.eq.s32.totalorder %v756, %v496
      %vm771 = vcmp.eq.s32.totalorder %v752, %v497
      %vm772 = vcmp.eq.s32.totalorder %v756, %v497
      %vm773 = vcmp.eq.s32.totalorder %v752, %v498
      %vm774 = vcmp.eq.s32.totalorder %v756, %v498
      %vm775 = vcmp.eq.s32.totalorder %v752, %v499
      %vm776 = vcmp.eq.s32.totalorder %v756, %v499
      %vm777 = vcmp.eq.s32.totalorder %v752, %v500
      %vm778 = vcmp.eq.s32.totalorder %v756, %v500
      %vm779 = vcmp.eq.s32.totalorder %v752, %v501
      %vm780 = vcmp.eq.s32.totalorder %v756, %v501
      %vm781 = vcmp.eq.s32.totalorder %v752, %v502
      %vm782 = vcmp.eq.s32.totalorder %v756, %v502
      %vm783 = vcmp.eq.s32.totalorder %v752, %v503
      %vm784 = vcmp.eq.s32.totalorder %v756, %v503
      %vm785 = vcmp.eq.s32.totalorder %v752, %v504
      %vm786 = vcmp.eq.s32.totalorder %v756, %v504
      %vm787 = vcmp.eq.s32.totalorder %v752, %v505
      %vm788 = vcmp.eq.s32.totalorder %v756, %v505
      %vm789 = vcmp.eq.s32.totalorder %v752, %v506
      %vm790 = vcmp.eq.s32.totalorder %v756, %v506
      %vm791 = vcmp.eq.s32.totalorder %v752, %v507
      %vm792 = vcmp.eq.s32.totalorder %v756, %v507
      %vm793 = vcmp.eq.s32.totalorder %v752, %v508
      %vm794 = vcmp.eq.s32.totalorder %v756, %v508
      %vm795 = vcmp.eq.s32.totalorder %v752, %v509
      %vm796 = vcmp.eq.s32.totalorder %v756, %v509
      %vm797 = vcmp.eq.s32.totalorder %v752, %v510
      %vm798 = vcmp.eq.s32.totalorder %v756, %v510
      %vm799 = vcmp.eq.s32.totalorder %v752, %v511
      %vm800 = vcmp.eq.s32.totalorder %v756, %v511
      %vm801 = vcmp.eq.s32.totalorder %v752, %v512
      %vm802 = vcmp.eq.s32.totalorder %v756, %v512
      %vm803 = vcmp.eq.s32.totalorder %v752, %v513
      %vm804 = vcmp.eq.s32.totalorder %v756, %v513
      %vm805 = vcmp.eq.s32.totalorder %v752, %v514
      %vm806 = vcmp.eq.s32.totalorder %v756, %v514
      %vm807 = vcmp.eq.s32.totalorder %v752, %v515
      %vm808 = vcmp.eq.s32.totalorder %v756, %v515
      %vm809 = vcmp.eq.s32.totalorder %v752, %v516
      %vm810 = vcmp.eq.s32.totalorder %v756, %v516
      %vm811 = vcmp.eq.s32.totalorder %v752, %v517
      %vm812 = vcmp.eq.s32.totalorder %v756, %v517
      %vm813 = vcmp.eq.s32.totalorder %v752, %v518
      %vm814 = vcmp.eq.s32.totalorder %v756, %v518
      %vm815 = vcmp.eq.s32.totalorder %v752, %v519
      %vm816 = vcmp.eq.s32.totalorder %v756, %v519
      %vm817 = vcmp.eq.s32.totalorder %v752, %v520
      %vm818 = vcmp.eq.s32.totalorder %v756, %v520
      %vm819 = vcmp.eq.s32.totalorder %v752, %v521
      %vm820 = vcmp.eq.s32.totalorder %v756, %v521
      %v822 = vlaneseq
      %v823 = vshrl.u32 %v822, 7
      %v824 = vsub.s32 0, %v823
      %v825 = vrot.slane %v488, %v824
      %v826 = vlaneseq
      %v827 = vshrl.u32 %v826, 7
      %v828 = vsub.s32 1, %v827
      %v829 = vrot.slane %v488, %v828
      %v832 = vsel %vm757, %v825, 1e+30
      %v833 = vsel %vm758, %v829, 1e+30
      %v834 = vsel %vm759, %v825, 1e+30
      %v835 = vsel %vm760, %v829, 1e+30
      %v836 = vsel %vm761, %v825, 1e+30
      %v837 = vsel %vm762, %v829, 1e+30
      %v838 = vsel %vm763, %v825, 1e+30
      %v839 = vsel %vm764, %v829, 1e+30
      %v840 = vsel %vm765, %v825, 1e+30
      %v841 = vsel %vm766, %v829, 1e+30
      %v842 = vsel %vm767, %v825, 1e+30
      %v843 = vsel %vm768, %v829, 1e+30
      %v844 = vsel %vm769, %v825, 1e+30
      %v845 = vsel %vm770, %v829, 1e+30
      %v846 = vsel %vm771, %v825, 1e+30
      %v847 = vsel %vm772, %v829, 1e+30
      %v848 = vsel %vm773, %v825, 1e+30
      %v849 = vsel %vm774, %v829, 1e+30
      %v850 = vsel %vm775, %v825, 1e+30
      %v851 = vsel %vm776, %v829, 1e+30
      %v852 = vsel %vm777, %v825, 1e+30
      %v853 = vsel %vm778, %v829, 1e+30
      %v854 = vsel %vm779, %v825, 1e+30
      %v855 = vsel %vm780, %v829, 1e+30
      %v856 = vsel %vm781, %v825, 1e+30
      %v857 = vsel %vm782, %v829, 1e+30
      %v858 = vsel %vm783, %v825, 1e+30
      %v859 = vsel %vm784, %v829, 1e+30
      %v860 = vsel %vm785, %v825, 1e+30
      %v861 = vsel %vm786, %v829, 1e+30
      %v862 = vsel %vm787, %v825, 1e+30
      %v863 = vsel %vm788, %v829, 1e+30
      %v864 = vsel %vm789, %v825, 1e+30
      %v865 = vsel %vm790, %v829, 1e+30
      %v866 = vsel %vm791, %v825, 1e+30
      %v867 = vsel %vm792, %v829, 1e+30
      %v868 = vsel %vm793, %v825, 1e+30
      %v869 = vsel %vm794, %v829, 1e+30
      %v870 = vsel %vm795, %v825, 1e+30
      %v871 = vsel %vm796, %v829, 1e+30
      %v872 = vsel %vm797, %v825, 1e+30
      %v873 = vsel %vm798, %v829, 1e+30
      %v874 = vsel %vm799, %v825, 1e+30
      %v875 = vsel %vm800, %v829, 1e+30
      %v876 = vsel %vm801, %v825, 1e+30
      %v877 = vsel %vm802, %v829, 1e+30
      %v878 = vsel %vm803, %v825, 1e+30
      %v879 = vsel %vm804, %v829, 1e+30
      %v880 = vsel %vm805, %v825, 1e+30
      %v881 = vsel %vm806, %v829, 1e+30
      %v882 = vsel %vm807, %v825, 1e+30
      %v883 = vsel %vm808, %v829, 1e+30
      %v884 = vsel %vm809, %v825, 1e+30
      %v885 = vsel %vm810, %v829, 1e+30
      %v886 = vsel %vm811, %v825, 1e+30
      %v887 = vsel %vm812, %v829, 1e+30
      %v888 = vsel %vm813, %v825, 1e+30
      %v889 = vsel %vm814, %v829, 1e+30
      %v890 = vsel %vm815, %v825, 1e+30
      %v891 = vsel %vm816, %v829, 1e+30
      %v892 = vsel %vm817, %v825, 1e+30
      %v893 = vsel %vm818, %v829, 1e+30
      %v894 = vsel %vm819, %v825, 1e+30
      %v895 = vsel %vm820, %v829, 1e+30
      %897 = vset.pattern.permute.xlu0 0
      %898 = vperm.xlu0 %897, %v455
      %v899 = vpop.permute.xlu0 %898
      %902 = vset.pattern.permute.xlu0 0
      %903 = vperm.xlu0 %902, %v456
      %v904 = vpop.permute.xlu0 %903
      %907 = vset.pattern.permute.xlu0 0
      %908 = vperm.xlu0 %907, %v457
      %v909 = vpop.permute.xlu0 %908
      %912 = vset.pattern.permute.xlu0 0
      %913 = vperm.xlu0 %912, %v458
      %v914 = vpop.permute.xlu0 %913
      %917 = vset.pattern.permute.xlu0 0
      %918 = vperm.xlu0 %917, %v459
      %v919 = vpop.permute.xlu0 %918
      %922 = vset.pattern.permute.xlu0 0
      %923 = vperm.xlu0 %922, %v460
      %v924 = vpop.permute.xlu0 %923
      %927 = vset.pattern.permute.xlu0 0
      %928 = vperm.xlu0 %927, %v461
      %v929 = vpop.permute.xlu0 %928
      %932 = vset.pattern.permute.xlu0 0
      %933 = vperm.xlu0 %932, %v462
      %v934 = vpop.permute.xlu0 %933
      %937 = vset.pattern.permute.xlu0 0
      %938 = vperm.xlu0 %937, %v463
      %v939 = vpop.permute.xlu0 %938
      %942 = vset.pattern.permute.xlu0 0
      %943 = vperm.xlu0 %942, %v464
      %v944 = vpop.permute.xlu0 %943
      %947 = vset.pattern.permute.xlu0 0
      %948 = vperm.xlu0 %947, %v465
      %v949 = vpop.permute.xlu0 %948
      %952 = vset.pattern.permute.xlu0 0
      %953 = vperm.xlu0 %952, %v466
      %v954 = vpop.permute.xlu0 %953
      %957 = vset.pattern.permute.xlu0 0
      %958 = vperm.xlu0 %957, %v467
      %v959 = vpop.permute.xlu0 %958
      %962 = vset.pattern.permute.xlu0 0
      %963 = vperm.xlu0 %962, %v468
      %v964 = vpop.permute.xlu0 %963
      %967 = vset.pattern.permute.xlu0 0
      %968 = vperm.xlu0 %967, %v469
      %v969 = vpop.permute.xlu0 %968
      %972 = vset.pattern.permute.xlu0 0
      %973 = vperm.xlu0 %972, %v470
      %v974 = vpop.permute.xlu0 %973
      %977 = vset.pattern.permute.xlu0 0
      %978 = vperm.xlu0 %977, %v471
      %v979 = vpop.permute.xlu0 %978
      %982 = vset.pattern.permute.xlu0 0
      %983 = vperm.xlu0 %982, %v472
      %v984 = vpop.permute.xlu0 %983
      %987 = vset.pattern.permute.xlu0 0
      %988 = vperm.xlu0 %987, %v473
      %v989 = vpop.permute.xlu0 %988
      %992 = vset.pattern.permute.xlu0 0
      %993 = vperm.xlu0 %992, %v474
      %v994 = vpop.permute.xlu0 %993
      %997 = vset.pattern.permute.xlu0 0
      %998 = vperm.xlu0 %997, %v475
      %v999 = vpop.permute.xlu0 %998
      %1002 = vset.pattern.permute.xlu0 0
      %1003 = vperm.xlu0 %1002, %v476
      %v1004 = vpop.permute.xlu0 %1003
      %1007 = vset.pattern.permute.xlu0 0
      %1008 = vperm.xlu0 %1007, %v477
      %v1009 = vpop.permute.xlu0 %1008
      %1012 = vset.pattern.permute.xlu0 0
      %1013 = vperm.xlu0 %1012, %v478
      %v1014 = vpop.permute.xlu0 %1013
      %1017 = vset.pattern.permute.xlu0 0
      %1018 = vperm.xlu0 %1017, %v479
      %v1019 = vpop.permute.xlu0 %1018
      %1022 = vset.pattern.permute.xlu0 0
      %1023 = vperm.xlu0 %1022, %v480
      %v1024 = vpop.permute.xlu0 %1023
      %1027 = vset.pattern.permute.xlu0 0
      %1028 = vperm.xlu0 %1027, %v481
      %v1029 = vpop.permute.xlu0 %1028
      %1032 = vset.pattern.permute.xlu0 0
      %1033 = vperm.xlu0 %1032, %v482
      %v1034 = vpop.permute.xlu0 %1033
      %1037 = vset.pattern.permute.xlu0 0
      %1038 = vperm.xlu0 %1037, %v483
      %v1039 = vpop.permute.xlu0 %1038
      %1042 = vset.pattern.permute.xlu0 0
      %1043 = vperm.xlu0 %1042, %v484
      %v1044 = vpop.permute.xlu0 %1043
      %1047 = vset.pattern.permute.xlu0 0
      %1048 = vperm.xlu0 %1047, %v485
      %v1049 = vpop.permute.xlu0 %1048
      %1052 = vset.pattern.permute.xlu0 0
      %1053 = vperm.xlu0 %1052, %v486
      %v1054 = vpop.permute.xlu0 %1053
      %v1056 = vsel %vm685, %v899, %v832
      %v1057 = vsel %vm686, %v899, %v833
      %v1058 = vsel %vm687, %v904, %v834
      %v1059 = vsel %vm688, %v904, %v835
      %v1060 = vsel %vm689, %v909, %v836
      %v1061 = vsel %vm690, %v909, %v837
      %v1062 = vsel %vm691, %v914, %v838
      %v1063 = vsel %vm692, %v914, %v839
      %v1064 = vsel %vm693, %v919, %v840
      %v1065 = vsel %vm694, %v919, %v841
      %v1066 = vsel %vm695, %v924, %v842
      %v1067 = vsel %vm696, %v924, %v843
      %v1068 = vsel %vm697, %v929, %v844
      %v1069 = vsel %vm698, %v929, %v845
      %v1070 = vsel %vm699, %v934, %v846
      %v1071 = vsel %vm700, %v934, %v847
      %v1072 = vsel %vm701, %v939, %v848
      %v1073 = vsel %vm702, %v939, %v849
      %v1074 = vsel %vm703, %v944, %v850
      %v1075 = vsel %vm704, %v944, %v851
      %v1076 = vsel %vm705, %v949, %v852
      %v1077 = vsel %vm706, %v949, %v853
      %v1078 = vsel %vm707, %v954, %v854
      %v1079 = vsel %vm708, %v954, %v855
      %v1080 = vsel %vm709, %v959, %v856
      %v1081 = vsel %vm710, %v959, %v857
      %v1082 = vsel %vm711, %v964, %v858
      %v1083 = vsel %vm712, %v964, %v859
      %v1084 = vsel %vm713, %v969, %v860
      %v1085 = vsel %vm714, %v969, %v861
      %v1086 = vsel %vm715, %v974, %v862
      %v1087 = vsel %vm716, %v974, %v863
      %v1088 = vsel %vm717, %v979, %v864
      %v1089 = vsel %vm718, %v979, %v865
      %v1090 = vsel %vm719, %v984, %v866
      %v1091 = vsel %vm720, %v984, %v867
      %v1092 = vsel %vm721, %v989, %v868
      %v1093 = vsel %vm722, %v989, %v869
      %v1094 = vsel %vm723, %v994, %v870
      %v1095 = vsel %vm724, %v994, %v871
      %v1096 = vsel %vm725, %v999, %v872
      %v1097 = vsel %vm726, %v999, %v873
      %v1098 = vsel %vm727, %v1004, %v874
      %v1099 = vsel %vm728, %v1004, %v875
      %v1100 = vsel %vm729, %v1009, %v876
      %v1101 = vsel %vm730, %v1009, %v877
      %v1102 = vsel %vm731, %v1014, %v878
      %v1103 = vsel %vm732, %v1014, %v879
      %v1104 = vsel %vm733, %v1019, %v880
      %v1105 = vsel %vm734, %v1019, %v881
      %v1106 = vsel %vm735, %v1024, %v882
      %v1107 = vsel %vm736, %v1024, %v883
      %v1108 = vsel %vm737, %v1029, %v884
      %v1109 = vsel %vm738, %v1029, %v885
      %v1110 = vsel %vm739, %v1034, %v886
      %v1111 = vsel %vm740, %v1034, %v887
      %v1112 = vsel %vm741, %v1039, %v888
      %v1113 = vsel %vm742, %v1039, %v889
      %v1114 = vsel %vm743, %v1044, %v890
      %v1115 = vsel %vm744, %v1044, %v891
      %v1116 = vsel %vm745, %v1049, %v892
      %v1117 = vsel %vm746, %v1049, %v893
      %v1118 = vsel %vm747, %v1054, %v894
      %v1119 = vsel %vm748, %v1054, %v895
      %v1120 = vsel %vm525, 0.0, %v1056
      %v1121 = vsel %vm526, 0.0, %v1057
      %v1122 = vsel %vm527, 0.0, %v1058
      %v1123 = vsel %vm528, 0.0, %v1059
      %v1124 = vsel %vm529, 0.0, %v1060
      %v1125 = vsel %vm530, 0.0, %v1061
      %v1126 = vsel %vm531, 0.0, %v1062
      %v1127 = vsel %vm532, 0.0, %v1063
      %v1128 = vsel %vm533, 0.0, %v1064
      %v1129 = vsel %vm534, 0.0, %v1065
      %v1130 = vsel %vm535, 0.0, %v1066
      %v1131 = vsel %vm536, 0.0, %v1067
      %v1132 = vsel %vm537, 0.0, %v1068
      %v1133 = vsel %vm538, 0.0, %v1069
      %v1134 = vsel %vm539, 0.0, %v1070
      %v1135 = vsel %vm540, 0.0, %v1071
      %v1136 = vsel %vm541, 0.0, %v1072
      %v1137 = vsel %vm542, 0.0, %v1073
      %v1138 = vsel %vm543, 0.0, %v1074
      %v1139 = vsel %vm544, 0.0, %v1075
      %v1140 = vsel %vm545, 0.0, %v1076
      %v1141 = vsel %vm546, 0.0, %v1077
      %v1142 = vsel %vm547, 0.0, %v1078
      %v1143 = vsel %vm548, 0.0, %v1079
      %v1144 = vsel %vm549, 0.0, %v1080
      %v1145 = vsel %vm550, 0.0, %v1081
      %v1146 = vsel %vm551, 0.0, %v1082
      %v1147 = vsel %vm552, 0.0, %v1083
      %v1148 = vsel %vm553, 0.0, %v1084
      %v1149 = vsel %vm554, 0.0, %v1085
      %v1150 = vsel %vm555, 0.0, %v1086
      %v1151 = vsel %vm556, 0.0, %v1087
      %v1152 = vsel %vm557, 0.0, %v1088
      %v1153 = vsel %vm558, 0.0, %v1089
      %v1154 = vsel %vm559, 0.0, %v1090
      %v1155 = vsel %vm560, 0.0, %v1091
      %v1156 = vsel %vm561, 0.0, %v1092
      %v1157 = vsel %vm562, 0.0, %v1093
      %v1158 = vsel %vm563, 0.0, %v1094
      %v1159 = vsel %vm564, 0.0, %v1095
      %v1160 = vsel %vm565, 0.0, %v1096
      %v1161 = vsel %vm566, 0.0, %v1097
      %v1162 = vsel %vm567, 0.0, %v1098
      %v1163 = vsel %vm568, 0.0, %v1099
      %v1164 = vsel %vm569, 0.0, %v1100
      %v1165 = vsel %vm570, 0.0, %v1101
      %v1166 = vsel %vm571, 0.0, %v1102
      %v1167 = vsel %vm572, 0.0, %v1103
      %v1168 = vsel %vm573, 0.0, %v1104
      %v1169 = vsel %vm574, 0.0, %v1105
      %v1170 = vsel %vm575, 0.0, %v1106
      %v1171 = vsel %vm576, 0.0, %v1107
      %v1172 = vsel %vm577, 0.0, %v1108
      %v1173 = vsel %vm578, 0.0, %v1109
      %v1174 = vsel %vm579, 0.0, %v1110
      %v1175 = vsel %vm580, 0.0, %v1111
      %v1176 = vsel %vm581, 0.0, %v1112
      %v1177 = vsel %vm582, 0.0, %v1113
      %v1178 = vsel %vm583, 0.0, %v1114
      %v1179 = vsel %vm584, 0.0, %v1115
      %v1180 = vsel %vm585, 0.0, %v1116
      %v1181 = vsel %vm586, 0.0, %v1117
      %v1182 = vsel %vm587, 0.0, %v1118
      %v1183 = vsel %vm588, 0.0, %v1119
      %1184 = vst [vmem:[#allocation2] sm:$0xff] %v1120
      %1185 = vst [vmem:[#allocation2 + $0x8] sm:$0xff] %v1121
      %1186 = vst [vmem:[#allocation2 + $0x10] sm:$0xff] %v1122
      %1187 = vst [vmem:[#allocation2 + $0x18] sm:$0xff] %v1123
      %1188 = vst [vmem:[#allocation2 + $0x20] sm:$0xff] %v1124
      %1189 = vst [vmem:[#allocation2 + $0x28] sm:$0xff] %v1125
      %1190 = vst [vmem:[#allocation2 + $0x30] sm:$0xff] %v1126
      %1191 = vst [vmem:[#allocation2 + $0x38] sm:$0xff] %v1127
      %1192 = vst [vmem:[#allocation2 + $0x40] sm:$0xff] %v1128
      %1193 = vst [vmem:[#allocation2 + $0x48] sm:$0xff] %v1129
      %1194 = vst [vmem:[#allocation2 + $0x50] sm:$0xff] %v1130
      %1195 = vst [vmem:[#allocation2 + $0x58] sm:$0xff] %v1131
      %1196 = vst [vmem:[#allocation2 + $0x60] sm:$0xff] %v1132
      %1197 = vst [vmem:[#allocation2 + $0x68] sm:$0xff] %v1133
      %1198 = vst [vmem:[#allocation2 + $0x70] sm:$0xff] %v1134
      %1199 = vst [vmem:[#allocation2 + $0x78] sm:$0xff] %v1135
      %1200 = vst [vmem:[#allocation2 + $0x80] sm:$0xff] %v1136
      %1201 = vst [vmem:[#allocation2 + $0x88] sm:$0xff] %v1137
      %1202 = vst [vmem:[#allocation2 + $0x90] sm:$0xff] %v1138
      %1203 = vst [vmem:[#allocation2 + $0x98] sm:$0xff] %v1139
      %1204 = vst [vmem:[#allocation2 + $0xa0] sm:$0xff] %v1140
      %1205 = vst [vmem:[#allocation2 + $0xa8] sm:$0xff] %v1141
      %1206 = vst [vmem:[#allocation2 + $0xb0] sm:$0xff] %v1142
      %1207 = vst [vmem:[#allocation2 + $0xb8] sm:$0xff] %v1143
      %1208 = vst [vmem:[#allocation2 + $0xc0] sm:$0xff] %v1144
      %1209 = vst [vmem:[#allocation2 + $0xc8] sm:$0xff] %v1145
      %1210 = vst [vmem:[#allocation2 + $0xd0] sm:$0xff] %v1146
      %1211 = vst [vmem:[#allocation2 + $0xd8] sm:$0xff] %v1147
      %1212 = vst [vmem:[#allocation2 + $0xe0] sm:$0xff] %v1148
      %1213 = vst [vmem:[#allocation2 + $0xe8] sm:$0xff] %v1149
      %1214 = vst [vmem:[#allocation2 + $0xf0] sm:$0xff] %v1150
      %1215 = vst [vmem:[#allocation2 + $0xf8] sm:$0xff] %v1151
      %1216 = vst [vmem:[#allocation2 + $0x100] sm:$0xff] %v1152
      %1217 = vst [vmem:[#allocation2 + $0x108] sm:$0xff] %v1153
      %1218 = vst [vmem:[#allocation2 + $0x110] sm:$0xff] %v1154
      %1219 = vst [vmem:[#allocation2 + $0x118] sm:$0xff] %v1155
      %1220 = vst [vmem:[#allocation2 + $0x120] sm:$0xff] %v1156
      %1221 = vst [vmem:[#allocation2 + $0x128] sm:$0xff] %v1157
      %1222 = vst [vmem:[#allocation2 + $0x130] sm:$0xff] %v1158
      %1223 = vst [vmem:[#allocation2 + $0x138] sm:$0xff] %v1159
      %1224 = vst [vmem:[#allocation2 + $0x140] sm:$0xff] %v1160
      %1225 = vst [vmem:[#allocation2 + $0x148] sm:$0xff] %v1161
      %1226 = vst [vmem:[#allocation2 + $0x150] sm:$0xff] %v1162
      %1227 = vst [vmem:[#allocation2 + $0x158] sm:$0xff] %v1163
      %1228 = vst [vmem:[#allocation2 + $0x160] sm:$0xff] %v1164
      %1229 = vst [vmem:[#allocation2 + $0x168] sm:$0xff] %v1165
      %1230 = vst [vmem:[#allocation2 + $0x170] sm:$0xff] %v1166
      %1231 = vst [vmem:[#allocation2 + $0x178] sm:$0xff] %v1167
      %1232 = vst [vmem:[#allocation2 + $0x180] sm:$0xff] %v1168
      %1233 = vst [vmem:[#allocation2 + $0x188] sm:$0xff] %v1169
      %1234 = vst [vmem:[#allocation2 + $0x190] sm:$0xff] %v1170
      %1235 = vst [vmem:[#allocation2 + $0x198] sm:$0xff] %v1171
      %1236 = vst [vmem:[#allocation2 + $0x1a0] sm:$0xff] %v1172
      %1237 = vst [vmem:[#allocation2 + $0x1a8] sm:$0xff] %v1173
      %1238 = vst [vmem:[#allocation2 + $0x1b0] sm:$0xff] %v1174
      %1239 = vst [vmem:[#allocation2 + $0x1b8] sm:$0xff] %v1175
      %1240 = vst [vmem:[#allocation2 + $0x1c0] sm:$0xff] %v1176
      %1241 = vst [vmem:[#allocation2 + $0x1c8] sm:$0xff] %v1177
      %1242 = vst [vmem:[#allocation2 + $0x1d0] sm:$0xff] %v1178
      %1243 = vst [vmem:[#allocation2 + $0x1d8] sm:$0xff] %v1179
      %1244 = vst [vmem:[#allocation2 + $0x1e0] sm:$0xff] %v1180
      %1245 = vst [vmem:[#allocation2 + $0x1e8] sm:$0xff] %v1181
      %1246 = vst [vmem:[#allocation2 + $0x1f0] sm:$0xff] %v1182
      %1247 = vst [vmem:[#allocation2 + $0x1f8] sm:$0xff] %v1183
      loop: start=0, step=1, limit=256
      $region49: #{tree_energy_loss.3} parent=47 // loop_pre_header
        _
      $region50: #{tree_energy_loss.3} parent=47 // loop_header
        %s1249 = sphi 0, %s1253
        %p1250 = scmp.ge.s32.totalorder %s1249, 256
      $region51: #{tree_energy_loss.3} parent=47 // loop_header_branch
        %1252 = sbr.rel (%p1250) target = $region55
      $region52: #{tree_energy_loss.3} parent=47 // loop_body
        %v1254 = vld [vmem:[#allocation2] sm:$0xff]
        %v1255 = vld [vmem:[#allocation2 + $0x8] sm:$0xff]
        %v1256 = vld [vmem:[#allocation2 + $0x10] sm:$0xff]
        %v1257 = vld [vmem:[#allocation2 + $0x18] sm:$0xff]
        %v1258 = vld [vmem:[#allocation2 + $0x20] sm:$0xff]
        %v1259 = vld [vmem:[#allocation2 + $0x28] sm:$0xff]
        %v1260 = vld [vmem:[#allocation2 + $0x30] sm:$0xff]
        %v1261 = vld [vmem:[#allocation2 + $0x38] sm:$0xff]
        %v1262 = vld [vmem:[#allocation2 + $0x40] sm:$0xff]
        %v1263 = vld [vmem:[#allocation2 + $0x48] sm:$0xff]
        %v1264 = vld [vmem:[#allocation2 + $0x50] sm:$0xff]
        %v1265 = vld [vmem:[#allocation2 + $0x58] sm:$0xff]
        %v1266 = vld [vmem:[#allocation2 + $0x60] sm:$0xff]
        %v1267 = vld [vmem:[#allocation2 + $0x68] sm:$0xff]
        %v1268 = vld [vmem:[#allocation2 + $0x70] sm:$0xff]
        %v1269 = vld [vmem:[#allocation2 + $0x78] sm:$0xff]
        %v1270 = vld [vmem:[#allocation2 + $0x80] sm:$0xff]
        %v1271 = vld [vmem:[#allocation2 + $0x88] sm:$0xff]
        %v1272 = vld [vmem:[#allocation2 + $0x90] sm:$0xff]
        %v1273 = vld [vmem:[#allocation2 + $0x98] sm:$0xff]
        %v1274 = vld [vmem:[#allocation2 + $0xa0] sm:$0xff]
        %v1275 = vld [vmem:[#allocation2 + $0xa8] sm:$0xff]
        %v1276 = vld [vmem:[#allocation2 + $0xb0] sm:$0xff]
        %v1277 = vld [vmem:[#allocation2 + $0xb8] sm:$0xff]
        %v1278 = vld [vmem:[#allocation2 + $0xc0] sm:$0xff]
        %v1279 = vld [vmem:[#allocation2 + $0xc8] sm:$0xff]
        %v1280 = vld [vmem:[#allocation2 + $0xd0] sm:$0xff]
        %v1281 = vld [vmem:[#allocation2 + $0xd8] sm:$0xff]
        %v1282 = vld [vmem:[#allocation2 + $0xe0] sm:$0xff]
        %v1283 = vld [vmem:[#allocation2 + $0xe8] sm:$0xff]
        %v1284 = vld [vmem:[#allocation2 + $0xf0] sm:$0xff]
        %v1285 = vld [vmem:[#allocation2 + $0xf8] sm:$0xff]
        %v1286 = vld [vmem:[#allocation2 + $0x100] sm:$0xff]
        %v1287 = vld [vmem:[#allocation2 + $0x108] sm:$0xff]
        %v1288 = vld [vmem:[#allocation2 + $0x110] sm:$0xff]
        %v1289 = vld [vmem:[#allocation2 + $0x118] sm:$0xff]
        %v1290 = vld [vmem:[#allocation2 + $0x120] sm:$0xff]
        %v1291 = vld [vmem:[#allocation2 + $0x128] sm:$0xff]
        %v1292 = vld [vmem:[#allocation2 + $0x130] sm:$0xff]
        %v1293 = vld [vmem:[#allocation2 + $0x138] sm:$0xff]
        %v1294 = vld [vmem:[#allocation2 + $0x140] sm:$0xff]
        %v1295 = vld [vmem:[#allocation2 + $0x148] sm:$0xff]
        %v1296 = vld [vmem:[#allocation2 + $0x150] sm:$0xff]
        %v1297 = vld [vmem:[#allocation2 + $0x158] sm:$0xff]
        %v1298 = vld [vmem:[#allocation2 + $0x160] sm:$0xff]
        %v1299 = vld [vmem:[#allocation2 + $0x168] sm:$0xff]
        %v1300 = vld [vmem:[#allocation2 + $0x170] sm:$0xff]
        %v1301 = vld [vmem:[#allocation2 + $0x178] sm:$0xff]
        %v1302 = vld [vmem:[#allocation2 + $0x180] sm:$0xff]
        %v1303 = vld [vmem:[#allocation2 + $0x188] sm:$0xff]
        %v1304 = vld [vmem:[#allocation2 + $0x190] sm:$0xff]
        %v1305 = vld [vmem:[#allocation2 + $0x198] sm:$0xff]
        %v1306 = vld [vmem:[#allocation2 + $0x1a0] sm:$0xff]
        %v1307 = vld [vmem:[#allocation2 + $0x1a8] sm:$0xff]
        %v1308 = vld [vmem:[#allocation2 + $0x1b0] sm:$0xff]
        %v1309 = vld [vmem:[#allocation2 + $0x1b8] sm:$0xff]
        %v1310 = vld [vmem:[#allocation2 + $0x1c0] sm:$0xff]
        %v1311 = vld [vmem:[#allocation2 + $0x1c8] sm:$0xff]
        %v1312 = vld [vmem:[#allocation2 + $0x1d0] sm:$0xff]
        %v1313 = vld [vmem:[#allocation2 + $0x1d8] sm:$0xff]
        %v1314 = vld [vmem:[#allocation2 + $0x1e0] sm:$0xff]
        %v1315 = vld [vmem:[#allocation2 + $0x1e8] sm:$0xff]
        %v1316 = vld [vmem:[#allocation2 + $0x1f0] sm:$0xff]
        %v1317 = vld [vmem:[#allocation2 + $0x1f8] sm:$0xff]
        %v1318 = vstv %s1249
        %vm1319 = vcmp.eq.s32.totalorder %v523, %v1318
        %vm1320 = vcmp.eq.s32.totalorder %v524, %v1318
        %v1321 = vsel %vm1319, 1, 0
        %v1322 = vsel %vm1320, 1, 0
        %vm1323 = vcmp.eq.s32.totalorder %v1321, 1
        %vm1324 = vcmp.eq.s32.totalorder %v1322, 1
        %v1325 = vsel %vm1323, %v1254, 0.0
        %v1326 = vsel %vm1324, %v1255, 0.0
        %v1327 = vsel %vm1323, %v1256, 0.0
        %v1328 = vsel %vm1324, %v1257, 0.0
        %v1329 = vsel %vm1323, %v1258, 0.0
        %v1330 = vsel %vm1324, %v1259, 0.0
        %v1331 = vsel %vm1323, %v1260, 0.0
        %v1332 = vsel %vm1324, %v1261, 0.0
        %v1333 = vsel %vm1323, %v1262, 0.0
        %v1334 = vsel %vm1324, %v1263, 0.0
        %v1335 = vsel %vm1323, %v1264, 0.0
        %v1336 = vsel %vm1324, %v1265, 0.0
        %v1337 = vsel %vm1323, %v1266, 0.0
        %v1338 = vsel %vm1324, %v1267, 0.0
        %v1339 = vsel %vm1323, %v1268, 0.0
        %v1340 = vsel %vm1324, %v1269, 0.0
        %v1341 = vsel %vm1323, %v1270, 0.0
        %v1342 = vsel %vm1324, %v1271, 0.0
        %v1343 = vsel %vm1323, %v1272, 0.0
        %v1344 = vsel %vm1324, %v1273, 0.0
        %v1345 = vsel %vm1323, %v1274, 0.0
        %v1346 = vsel %vm1324, %v1275, 0.0
        %v1347 = vsel %vm1323, %v1276, 0.0
        %v1348 = vsel %vm1324, %v1277, 0.0
        %v1349 = vsel %vm1323, %v1278, 0.0
        %v1350 = vsel %vm1324, %v1279, 0.0
        %v1351 = vsel %vm1323, %v1280, 0.0
        %v1352 = vsel %vm1324, %v1281, 0.0
        %v1353 = vsel %vm1323, %v1282, 0.0
        %v1354 = vsel %vm1324, %v1283, 0.0
        %v1355 = vsel %vm1323, %v1284, 0.0
        %v1356 = vsel %vm1324, %v1285, 0.0
        %v1357 = vsel %vm1323, %v1286, 0.0
        %v1358 = vsel %vm1324, %v1287, 0.0
        %v1359 = vsel %vm1323, %v1288, 0.0
        %v1360 = vsel %vm1324, %v1289, 0.0
        %v1361 = vsel %vm1323, %v1290, 0.0
        %v1362 = vsel %vm1324, %v1291, 0.0
        %v1363 = vsel %vm1323, %v1292, 0.0
        %v1364 = vsel %vm1324, %v1293, 0.0
        %v1365 = vsel %vm1323, %v1294, 0.0
        %v1366 = vsel %vm1324, %v1295, 0.0
        %v1367 = vsel %vm1323, %v1296, 0.0
        %v1368 = vsel %vm1324, %v1297, 0.0
        %v1369 = vsel %vm1323, %v1298, 0.0
        %v1370 = vsel %vm1324, %v1299, 0.0
        %v1371 = vsel %vm1323, %v1300, 0.0
        %v1372 = vsel %vm1324, %v1301, 0.0
        %v1373 = vsel %vm1323, %v1302, 0.0
        %v1374 = vsel %vm1324, %v1303, 0.0
        %v1375 = vsel %vm1323, %v1304, 0.0
        %v1376 = vsel %vm1324, %v1305, 0.0
        %v1377 = vsel %vm1323, %v1306, 0.0
        %v1378 = vsel %vm1324, %v1307, 0.0
        %v1379 = vsel %vm1323, %v1308, 0.0
        %v1380 = vsel %vm1324, %v1309, 0.0
        %v1381 = vsel %vm1323, %v1310, 0.0
        %v1382 = vsel %vm1324, %v1311, 0.0
        %v1383 = vsel %vm1323, %v1312, 0.0
        %v1384 = vsel %vm1324, %v1313, 0.0
        %v1385 = vsel %vm1323, %v1314, 0.0
        %v1386 = vsel %vm1324, %v1315, 0.0
        %v1387 = vsel %vm1323, %v1316, 0.0
        %v1388 = vsel %vm1324, %v1317, 0.0
        %v1389 = vadd.f32 %v1325, %v1326
        %1390 = vadd.xlane.f32.xlu0 %v1389
        %v1391 = vpop.xlane.xlu0 %1390
        %v1392 = vadd.f32 %v1327, %v1328
        %1393 = vadd.xlane.f32.xlu0 %v1392
        %v1394 = vpop.xlane.xlu0 %1393
        %v1395 = vadd.f32 %v1329, %v1330
        %1396 = vadd.xlane.f32.xlu0 %v1395
        %v1397 = vpop.xlane.xlu0 %1396
        %v1398 = vadd.f32 %v1331, %v1332
        %1399 = vadd.xlane.f32.xlu0 %v1398
        %v1400 = vpop.xlane.xlu0 %1399
        %v1401 = vadd.f32 %v1333, %v1334
        %1402 = vadd.xlane.f32.xlu0 %v1401
        %v1403 = vpop.xlane.xlu0 %1402
        %v1404 = vadd.f32 %v1335, %v1336
        %1405 = vadd.xlane.f32.xlu0 %v1404
        %v1406 = vpop.xlane.xlu0 %1405
        %v1407 = vadd.f32 %v1337, %v1338
        %1408 = vadd.xlane.f32.xlu0 %v1407
        %v1409 = vpop.xlane.xlu0 %1408
        %v1410 = vadd.f32 %v1339, %v1340
        %1411 = vadd.xlane.f32.xlu0 %v1410
        %v1412 = vpop.xlane.xlu0 %1411
        %v1413 = vadd.f32 %v1341, %v1342
        %1414 = vadd.xlane.f32.xlu0 %v1413
        %v1415 = vpop.xlane.xlu0 %1414
        %v1416 = vadd.f32 %v1343, %v1344
        %1417 = vadd.xlane.f32.xlu0 %v1416
        %v1418 = vpop.xlane.xlu0 %1417
        %v1419 = vadd.f32 %v1345, %v1346
        %1420 = vadd.xlane.f32.xlu0 %v1419
        %v1421 = vpop.xlane.xlu0 %1420
        %v1422 = vadd.f32 %v1347, %v1348
        %1423 = vadd.xlane.f32.xlu0 %v1422
        %v1424 = vpop.xlane.xlu0 %1423
        %v1425 = vadd.f32 %v1349, %v1350
        %1426 = vadd.xlane.f32.xlu0 %v1425
        %v1427 = vpop.xlane.xlu0 %1426
        %v1428 = vadd.f32 %v1351, %v1352
        %1429 = vadd.xlane.f32.xlu0 %v1428
        %v1430 = vpop.xlane.xlu0 %1429
        %v1431 = vadd.f32 %v1353, %v1354
        %1432 = vadd.xlane.f32.xlu0 %v1431
        %v1433 = vpop.xlane.xlu0 %1432
        %v1434 = vadd.f32 %v1355, %v1356
        %1435 = vadd.xlane.f32.xlu0 %v1434
        %v1436 = vpop.xlane.xlu0 %1435
        %v1437 = vadd.f32 %v1357, %v1358
        %1438 = vadd.xlane.f32.xlu0 %v1437
        %v1439 = vpop.xlane.xlu0 %1438
        %v1440 = vadd.f32 %v1359, %v1360
        %1441 = vadd.xlane.f32.xlu0 %v1440
        %v1442 = vpop.xlane.xlu0 %1441
        %v1443 = vadd.f32 %v1361, %v1362
        %1444 = vadd.xlane.f32.xlu0 %v1443
        %v1445 = vpop.xlane.xlu0 %1444
        %v1446 = vadd.f32 %v1363, %v1364
        %1447 = vadd.xlane.f32.xlu0 %v1446
        %v1448 = vpop.xlane.xlu0 %1447
        %v1449 = vadd.f32 %v1365, %v1366
        %1450 = vadd.xlane.f32.xlu0 %v1449
        %v1451 = vpop.xlane.xlu0 %1450
        %v1452 = vadd.f32 %v1367, %v1368
        %1453 = vadd.xlane.f32.xlu0 %v1452
        %v1454 = vpop.xlane.xlu0 %1453
        %v1455 = vadd.f32 %v1369, %v1370
        %1456 = vadd.xlane.f32.xlu0 %v1455
        %v1457 = vpop.xlane.xlu0 %1456
        %v1458 = vadd.f32 %v1371, %v1372
        %1459 = vadd.xlane.f32.xlu0 %v1458
        %v1460 = vpop.xlane.xlu0 %1459
        %v1461 = vadd.f32 %v1373, %v1374
        %1462 = vadd.xlane.f32.xlu0 %v1461
        %v1463 = vpop.xlane.xlu0 %1462
        %v1464 = vadd.f32 %v1375, %v1376
        %1465 = vadd.xlane.f32.xlu0 %v1464
        %v1466 = vpop.xlane.xlu0 %1465
        %v1467 = vadd.f32 %v1377, %v1378
        %1468 = vadd.xlane.f32.xlu0 %v1467
        %v1469 = vpop.xlane.xlu0 %1468
        %v1470 = vadd.f32 %v1379, %v1380
        %1471 = vadd.xlane.f32.xlu0 %v1470
        %v1472 = vpop.xlane.xlu0 %1471
        %v1473 = vadd.f32 %v1381, %v1382
        %1474 = vadd.xlane.f32.xlu0 %v1473
        %v1475 = vpop.xlane.xlu0 %1474
        %v1476 = vadd.f32 %v1383, %v1384
        %1477 = vadd.xlane.f32.xlu0 %v1476
        %v1478 = vpop.xlane.xlu0 %1477
        %v1479 = vadd.f32 %v1385, %v1386
        %1480 = vadd.xlane.f32.xlu0 %v1479
        %v1481 = vpop.xlane.xlu0 %1480
        %v1482 = vadd.f32 %v1387, %v1388
        %1483 = vadd.xlane.f32.xlu0 %v1482
        %v1484 = vpop.xlane.xlu0 %1483
        %vm1485 = vcmp.eq.s32.totalorder %v490, %v1318
        %vm1486 = vcmp.eq.s32.totalorder %v491, %v1318
        %vm1487 = vcmp.eq.s32.totalorder %v492, %v1318
        %vm1488 = vcmp.eq.s32.totalorder %v493, %v1318
        %vm1489 = vcmp.eq.s32.totalorder %v494, %v1318
        %vm1490 = vcmp.eq.s32.totalorder %v495, %v1318
        %vm1491 = vcmp.eq.s32.totalorder %v496, %v1318
        %vm1492 = vcmp.eq.s32.totalorder %v497, %v1318
        %vm1493 = vcmp.eq.s32.totalorder %v498, %v1318
        %vm1494 = vcmp.eq.s32.totalorder %v499, %v1318
        %vm1495 = vcmp.eq.s32.totalorder %v500, %v1318
        %vm1496 = vcmp.eq.s32.totalorder %v501, %v1318
        %vm1497 = vcmp.eq.s32.totalorder %v502, %v1318
        %vm1498 = vcmp.eq.s32.totalorder %v503, %v1318
        %vm1499 = vcmp.eq.s32.totalorder %v504, %v1318
        %vm1500 = vcmp.eq.s32.totalorder %v505, %v1318
        %vm1501 = vcmp.eq.s32.totalorder %v506, %v1318
        %vm1502 = vcmp.eq.s32.totalorder %v507, %v1318
        %vm1503 = vcmp.eq.s32.totalorder %v508, %v1318
        %vm1504 = vcmp.eq.s32.totalorder %v509, %v1318
        %vm1505 = vcmp.eq.s32.totalorder %v510, %v1318
        %vm1506 = vcmp.eq.s32.totalorder %v511, %v1318
        %vm1507 = vcmp.eq.s32.totalorder %v512, %v1318
        %vm1508 = vcmp.eq.s32.totalorder %v513, %v1318
        %vm1509 = vcmp.eq.s32.totalorder %v514, %v1318
        %vm1510 = vcmp.eq.s32.totalorder %v515, %v1318
        %vm1511 = vcmp.eq.s32.totalorder %v516, %v1318
        %vm1512 = vcmp.eq.s32.totalorder %v517, %v1318
        %vm1513 = vcmp.eq.s32.totalorder %v518, %v1318
        %vm1514 = vcmp.eq.s32.totalorder %v519, %v1318
        %vm1515 = vcmp.eq.s32.totalorder %v520, %v1318
        %vm1516 = vcmp.eq.s32.totalorder %v521, %v1318
        %v1517 = vsel %vm1485, 1, 0
        %v1518 = vsel %vm1486, 1, 0
        %v1519 = vsel %vm1487, 1, 0
        %v1520 = vsel %vm1488, 1, 0
        %v1521 = vsel %vm1489, 1, 0
        %v1522 = vsel %vm1490, 1, 0
        %v1523 = vsel %vm1491, 1, 0
        %v1524 = vsel %vm1492, 1, 0
        %v1525 = vsel %vm1493, 1, 0
        %v1526 = vsel %vm1494, 1, 0
        %v1527 = vsel %vm1495, 1, 0
        %v1528 = vsel %vm1496, 1, 0
        %v1529 = vsel %vm1497, 1, 0
        %v1530 = vsel %vm1498, 1, 0
        %v1531 = vsel %vm1499, 1, 0
        %v1532 = vsel %vm1500, 1, 0
        %v1533 = vsel %vm1501, 1, 0
        %v1534 = vsel %vm1502, 1, 0
        %v1535 = vsel %vm1503, 1, 0
        %v1536 = vsel %vm1504, 1, 0
        %v1537 = vsel %vm1505, 1, 0
        %v1538 = vsel %vm1506, 1, 0
        %v1539 = vsel %vm1507, 1, 0
        %v1540 = vsel %vm1508, 1, 0
        %v1541 = vsel %vm1509, 1, 0
        %v1542 = vsel %vm1510, 1, 0
        %v1543 = vsel %vm1511, 1, 0
        %v1544 = vsel %vm1512, 1, 0
        %v1545 = vsel %vm1513, 1, 0
        %v1546 = vsel %vm1514, 1, 0
        %v1547 = vsel %vm1515, 1, 0
        %v1548 = vsel %vm1516, 1, 0
        %vm1549 = vcmp.eq.s32.totalorder %v1517, 1
        %vm1550 = vcmp.eq.s32.totalorder %v1518, 1
        %vm1551 = vcmp.eq.s32.totalorder %v1519, 1
        %vm1552 = vcmp.eq.s32.totalorder %v1520, 1
        %vm1553 = vcmp.eq.s32.totalorder %v1521, 1
        %vm1554 = vcmp.eq.s32.totalorder %v1522, 1
        %vm1555 = vcmp.eq.s32.totalorder %v1523, 1
        %vm1556 = vcmp.eq.s32.totalorder %v1524, 1
        %vm1557 = vcmp.eq.s32.totalorder %v1525, 1
        %vm1558 = vcmp.eq.s32.totalorder %v1526, 1
        %vm1559 = vcmp.eq.s32.totalorder %v1527, 1
        %vm1560 = vcmp.eq.s32.totalorder %v1528, 1
        %vm1561 = vcmp.eq.s32.totalorder %v1529, 1
        %vm1562 = vcmp.eq.s32.totalorder %v1530, 1
        %vm1563 = vcmp.eq.s32.totalorder %v1531, 1
        %vm1564 = vcmp.eq.s32.totalorder %v1532, 1
        %vm1565 = vcmp.eq.s32.totalorder %v1533, 1
        %vm1566 = vcmp.eq.s32.totalorder %v1534, 1
        %vm1567 = vcmp.eq.s32.totalorder %v1535, 1
        %vm1568 = vcmp.eq.s32.totalorder %v1536, 1
        %vm1569 = vcmp.eq.s32.totalorder %v1537, 1
        %vm1570 = vcmp.eq.s32.totalorder %v1538, 1
        %vm1571 = vcmp.eq.s32.totalorder %v1539, 1
        %vm1572 = vcmp.eq.s32.totalorder %v1540, 1
        %vm1573 = vcmp.eq.s32.totalorder %v1541, 1
        %vm1574 = vcmp.eq.s32.totalorder %v1542, 1
        %vm1575 = vcmp.eq.s32.totalorder %v1543, 1
        %vm1576 = vcmp.eq.s32.totalorder %v1544, 1
        %vm1577 = vcmp.eq.s32.totalorder %v1545, 1
        %vm1578 = vcmp.eq.s32.totalorder %v1546, 1
        %vm1579 = vcmp.eq.s32.totalorder %v1547, 1
        %vm1580 = vcmp.eq.s32.totalorder %v1548, 1
        %v1581 = vsel %vm1549, %v1254, 0.0
        %v1582 = vsel %vm1549, %v1255, 0.0
        %v1583 = vsel %vm1550, %v1256, 0.0
        %v1584 = vsel %vm1550, %v1257, 0.0
        %v1585 = vsel %vm1551, %v1258, 0.0
        %v1586 = vsel %vm1551, %v1259, 0.0
        %v1587 = vsel %vm1552, %v1260, 0.0
        %v1588 = vsel %vm1552, %v1261, 0.0
        %v1589 = vsel %vm1553, %v1262, 0.0
        %v1590 = vsel %vm1553, %v1263, 0.0
        %v1591 = vsel %vm1554, %v1264, 0.0
        %v1592 = vsel %vm1554, %v1265, 0.0
        %v1593 = vsel %vm1555, %v1266, 0.0
        %v1594 = vsel %vm1555, %v1267, 0.0
        %v1595 = vsel %vm1556, %v1268, 0.0
        %v1596 = vsel %vm1556, %v1269, 0.0
        %v1597 = vsel %vm1557, %v1270, 0.0
        %v1598 = vsel %vm1557, %v1271, 0.0
        %v1599 = vsel %vm1558, %v1272, 0.0
        %v1600 = vsel %vm1558, %v1273, 0.0
        %v1601 = vsel %vm1559, %v1274, 0.0
        %v1602 = vsel %vm1559, %v1275, 0.0
        %v1603 = vsel %vm1560, %v1276, 0.0
        %v1604 = vsel %vm1560, %v1277, 0.0
        %v1605 = vsel %vm1561, %v1278, 0.0
        %v1606 = vsel %vm1561, %v1279, 0.0
        %v1607 = vsel %vm1562, %v1280, 0.0
        %v1608 = vsel %vm1562, %v1281, 0.0
        %v1609 = vsel %vm1563, %v1282, 0.0
        %v1610 = vsel %vm1563, %v1283, 0.0
        %v1611 = vsel %vm1564, %v1284, 0.0
        %v1612 = vsel %vm1564, %v1285, 0.0
        %v1613 = vsel %vm1565, %v1286, 0.0
        %v1614 = vsel %vm1565, %v1287, 0.0
        %v1615 = vsel %vm1566, %v1288, 0.0
        %v1616 = vsel %vm1566, %v1289, 0.0
        %v1617 = vsel %vm1567, %v1290, 0.0
        %v1618 = vsel %vm1567, %v1291, 0.0
        %v1619 = vsel %vm1568, %v1292, 0.0
        %v1620 = vsel %vm1568, %v1293, 0.0
        %v1621 = vsel %vm1569, %v1294, 0.0
        %v1622 = vsel %vm1569, %v1295, 0.0
        %v1623 = vsel %vm1570, %v1296, 0.0
        %v1624 = vsel %vm1570, %v1297, 0.0
        %v1625 = vsel %vm1571, %v1298, 0.0
        %v1626 = vsel %vm1571, %v1299, 0.0
        %v1627 = vsel %vm1572, %v1300, 0.0
        %v1628 = vsel %vm1572, %v1301, 0.0
        %v1629 = vsel %vm1573, %v1302, 0.0
        %v1630 = vsel %vm1573, %v1303, 0.0
        %v1631 = vsel %vm1574, %v1304, 0.0
        %v1632 = vsel %vm1574, %v1305, 0.0
        %v1633 = vsel %vm1575, %v1306, 0.0
        %v1634 = vsel %vm1575, %v1307, 0.0
        %v1635 = vsel %vm1576, %v1308, 0.0
        %v1636 = vsel %vm1576, %v1309, 0.0
        %v1637 = vsel %vm1577, %v1310, 0.0
        %v1638 = vsel %vm1577, %v1311, 0.0
        %v1639 = vsel %vm1578, %v1312, 0.0
        %v1640 = vsel %vm1578, %v1313, 0.0
        %v1641 = vsel %vm1579, %v1314, 0.0
        %v1642 = vsel %vm1579, %v1315, 0.0
        %v1643 = vsel %vm1580, %v1316, 0.0
        %v1644 = vsel %vm1580, %v1317, 0.0
        %v1645 = vadd.f32 %v1581, %v1583
        %v1646 = vadd.f32 %v1645, %v1585
        %v1647 = vadd.f32 %v1646, %v1587
        %v1648 = vadd.f32 %v1647, %v1589
        %v1649 = vadd.f32 %v1648, %v1591
        %v1650 = vadd.f32 %v1649, %v1593
        %v1651 = vadd.f32 %v1650, %v1595
        %v1652 = vadd.f32 %v1651, %v1597
        %v1653 = vadd.f32 %v1652, %v1599
        %v1654 = vadd.f32 %v1653, %v1601
        %v1655 = vadd.f32 %v1654, %v1603
        %v1656 = vadd.f32 %v1655, %v1605
        %v1657 = vadd.f32 %v1656, %v1607
        %v1658 = vadd.f32 %v1657, %v1609
        %v1659 = vadd.f32 %v1658, %v1611
        %v1660 = vadd.f32 %v1659, %v1613
        %v1661 = vadd.f32 %v1660, %v1615
        %v1662 = vadd.f32 %v1661, %v1617
        %v1663 = vadd.f32 %v1662, %v1619
        %v1664 = vadd.f32 %v1663, %v1621
        %v1665 = vadd.f32 %v1664, %v1623
        %v1666 = vadd.f32 %v1665, %v1625
        %v1667 = vadd.f32 %v1666, %v1627
        %v1668 = vadd.f32 %v1667, %v1629
        %v1669 = vadd.f32 %v1668, %v1631
        %v1670 = vadd.f32 %v1669, %v1633
        %v1671 = vadd.f32 %v1670, %v1635
        %v1672 = vadd.f32 %v1671, %v1637
        %v1673 = vadd.f32 %v1672, %v1639
        %v1674 = vadd.f32 %v1673, %v1641
        %v1675 = vadd.f32 %v1674, %v1643
        %v1676 = vrot.slane %v1675, 4
        %v1677 = vadd.f32 %v1675, %v1676
        %v1678 = vrot.slane %v1677, 2
        %v1679 = vadd.f32 %v1677, %v1678
        %v1680 = vrot.slane %v1679, 1
        %v1681 = vadd.f32 %v1679, %v1680
        %v1682 = vadd.f32 %v1582, %v1584
        %v1683 = vadd.f32 %v1682, %v1586
        %v1684 = vadd.f32 %v1683, %v1588
        %v1685 = vadd.f32 %v1684, %v1590
        %v1686 = vadd.f32 %v1685, %v1592
        %v1687 = vadd.f32 %v1686, %v1594
        %v1688 = vadd.f32 %v1687, %v1596
        %v1689 = vadd.f32 %v1688, %v1598
        %v1690 = vadd.f32 %v1689, %v1600
        %v1691 = vadd.f32 %v1690, %v1602
        %v1692 = vadd.f32 %v1691, %v1604
        %v1693 = vadd.f32 %v1692, %v1606
        %v1694 = vadd.f32 %v1693, %v1608
        %v1695 = vadd.f32 %v1694, %v1610
        %v1696 = vadd.f32 %v1695, %v1612
        %v1697 = vadd.f32 %v1696, %v1614
        %v1698 = vadd.f32 %v1697, %v1616
        %v1699 = vadd.f32 %v1698, %v1618
        %v1700 = vadd.f32 %v1699, %v1620
        %v1701 = vadd.f32 %v1700, %v1622
        %v1702 = vadd.f32 %v1701, %v1624
        %v1703 = vadd.f32 %v1702, %v1626
        %v1704 = vadd.f32 %v1703, %v1628
        %v1705 = vadd.f32 %v1704, %v1630
        %v1706 = vadd.f32 %v1705, %v1632
        %v1707 = vadd.f32 %v1706, %v1634
        %v1708 = vadd.f32 %v1707, %v1636
        %v1709 = vadd.f32 %v1708, %v1638
        %v1710 = vadd.f32 %v1709, %v1640
        %v1711 = vadd.f32 %v1710, %v1642
        %v1712 = vadd.f32 %v1711, %v1644
        %v1713 = vrot.slane %v1712, 4
        %v1714 = vadd.f32 %v1712, %v1713
        %v1715 = vrot.slane %v1714, 2
        %v1716 = vadd.f32 %v1714, %v1715
        %v1717 = vrot.slane %v1716, 1
        %v1718 = vadd.f32 %v1716, %v1717
        %v1719 = vadd.f32 %v1391, %v1681
        %v1720 = vadd.f32 %v1391, %v1718
        %v1721 = vadd.f32 %v1394, %v1681
        %v1722 = vadd.f32 %v1394, %v1718
        %v1723 = vadd.f32 %v1397, %v1681
        %v1724 = vadd.f32 %v1397, %v1718
        %v1725 = vadd.f32 %v1400, %v1681
        %v1726 = vadd.f32 %v1400, %v1718
        %v1727 = vadd.f32 %v1403, %v1681
        %v1728 = vadd.f32 %v1403, %v1718
        %v1729 = vadd.f32 %v1406, %v1681
        %v1730 = vadd.f32 %v1406, %v1718
        %v1731 = vadd.f32 %v1409, %v1681
        %v1732 = vadd.f32 %v1409, %v1718
        %v1733 = vadd.f32 %v1412, %v1681
        %v1734 = vadd.f32 %v1412, %v1718
        %v1735 = vadd.f32 %v1415, %v1681
        %v1736 = vadd.f32 %v1415, %v1718
        %v1737 = vadd.f32 %v1418, %v1681
        %v1738 = vadd.f32 %v1418, %v1718
        %v1739 = vadd.f32 %v1421, %v1681
        %v1740 = vadd.f32 %v1421, %v1718
        %v1741 = vadd.f32 %v1424, %v1681
        %v1742 = vadd.f32 %v1424, %v1718
        %v1743 = vadd.f32 %v1427, %v1681
        %v1744 = vadd.f32 %v1427, %v1718
        %v1745 = vadd.f32 %v1430, %v1681
        %v1746 = vadd.f32 %v1430, %v1718
        %v1747 = vadd.f32 %v1433, %v1681
        %v1748 = vadd.f32 %v1433, %v1718
        %v1749 = vadd.f32 %v1436, %v1681
        %v1750 = vadd.f32 %v1436, %v1718
        %v1751 = vadd.f32 %v1439, %v1681
        %v1752 = vadd.f32 %v1439, %v1718
        %v1753 = vadd.f32 %v1442, %v1681
        %v1754 = vadd.f32 %v1442, %v1718
        %v1755 = vadd.f32 %v1445, %v1681
        %v1756 = vadd.f32 %v1445, %v1718
        %v1757 = vadd.f32 %v1448, %v1681
        %v1758 = vadd.f32 %v1448, %v1718
        %v1759 = vadd.f32 %v1451, %v1681
        %v1760 = vadd.f32 %v1451, %v1718
        %v1761 = vadd.f32 %v1454, %v1681
        %v1762 = vadd.f32 %v1454, %v1718
        %v1763 = vadd.f32 %v1457, %v1681
        %v1764 = vadd.f32 %v1457, %v1718
        %v1765 = vadd.f32 %v1460, %v1681
        %v1766 = vadd.f32 %v1460, %v1718
        %v1767 = vadd.f32 %v1463, %v1681
        %v1768 = vadd.f32 %v1463, %v1718
        %v1769 = vadd.f32 %v1466, %v1681
        %v1770 = vadd.f32 %v1466, %v1718
        %v1771 = vadd.f32 %v1469, %v1681
        %v1772 = vadd.f32 %v1469, %v1718
        %v1773 = vadd.f32 %v1472, %v1681
        %v1774 = vadd.f32 %v1472, %v1718
        %v1775 = vadd.f32 %v1475, %v1681
        %v1776 = vadd.f32 %v1475, %v1718
        %v1777 = vadd.f32 %v1478, %v1681
        %v1778 = vadd.f32 %v1478, %v1718
        %v1779 = vadd.f32 %v1481, %v1681
        %v1780 = vadd.f32 %v1481, %v1718
        %v1781 = vadd.f32 %v1484, %v1681
        %v1782 = vadd.f32 %v1484, %v1718
        %v1783 = vmin.f32 %v1254, %v1719
        %v1784 = vmin.f32 %v1255, %v1720
        %v1785 = vmin.f32 %v1256, %v1721
        %v1786 = vmin.f32 %v1257, %v1722
        %v1787 = vmin.f32 %v1258, %v1723
        %v1788 = vmin.f32 %v1259, %v1724
        %v1789 = vmin.f32 %v1260, %v1725
        %v1790 = vmin.f32 %v1261, %v1726
        %v1791 = vmin.f32 %v1262, %v1727
        %v1792 = vmin.f32 %v1263, %v1728
        %v1793 = vmin.f32 %v1264, %v1729
        %v1794 = vmin.f32 %v1265, %v1730
        %v1795 = vmin.f32 %v1266, %v1731
        %v1796 = vmin.f32 %v1267, %v1732
        %v1797 = vmin.f32 %v1268, %v1733
        %v1798 = vmin.f32 %v1269, %v1734
        %v1799 = vmin.f32 %v1270, %v1735
        %v1800 = vmin.f32 %v1271, %v1736
        %v1801 = vmin.f32 %v1272, %v1737
        %v1802 = vmin.f32 %v1273, %v1738
        %v1803 = vmin.f32 %v1274, %v1739
        %v1804 = vmin.f32 %v1275, %v1740
        %v1805 = vmin.f32 %v1276, %v1741
        %v1806 = vmin.f32 %v1277, %v1742
        %v1807 = vmin.f32 %v1278, %v1743
        %v1808 = vmin.f32 %v1279, %v1744
        %v1809 = vmin.f32 %v1280, %v1745
        %v1810 = vmin.f32 %v1281, %v1746
        %v1811 = vmin.f32 %v1282, %v1747
        %v1812 = vmin.f32 %v1283, %v1748
        %v1813 = vmin.f32 %v1284, %v1749
        %v1814 = vmin.f32 %v1285, %v1750
        %v1815 = vmin.f32 %v1286, %v1751
        %v1816 = vmin.f32 %v1287, %v1752
        %v1817 = vmin.f32 %v1288, %v1753
        %v1818 = vmin.f32 %v1289, %v1754
        %v1819 = vmin.f32 %v1290, %v1755
        %v1820 = vmin.f32 %v1291, %v1756
        %v1821 = vmin.f32 %v1292, %v1757
        %v1822 = vmin.f32 %v1293, %v1758
        %v1823 = vmin.f32 %v1294, %v1759
        %v1824 = vmin.f32 %v1295, %v1760
        %v1825 = vmin.f32 %v1296, %v1761
        %v1826 = vmin.f32 %v1297, %v1762
        %v1827 = vmin.f32 %v1298, %v1763
        %v1828 = vmin.f32 %v1299, %v1764
        %v1829 = vmin.f32 %v1300, %v1765
        %v1830 = vmin.f32 %v1301, %v1766
        %v1831 = vmin.f32 %v1302, %v1767
        %v1832 = vmin.f32 %v1303, %v1768
        %v1833 = vmin.f32 %v1304, %v1769
        %v1834 = vmin.f32 %v1305, %v1770
        %v1835 = vmin.f32 %v1306, %v1771
        %v1836 = vmin.f32 %v1307, %v1772
        %v1837 = vmin.f32 %v1308, %v1773
        %v1838 = vmin.f32 %v1309, %v1774
        %v1839 = vmin.f32 %v1310, %v1775
        %v1840 = vmin.f32 %v1311, %v1776
        %v1841 = vmin.f32 %v1312, %v1777
        %v1842 = vmin.f32 %v1313, %v1778
        %v1843 = vmin.f32 %v1314, %v1779
        %v1844 = vmin.f32 %v1315, %v1780
        %v1845 = vmin.f32 %v1316, %v1781
        %v1846 = vmin.f32 %v1317, %v1782
        %1847 = vst [vmem:[#allocation2] sm:$0xff] %v1783
        %1848 = vst [vmem:[#allocation2 + $0x8] sm:$0xff] %v1784
        %1849 = vst [vmem:[#allocation2 + $0x10] sm:$0xff] %v1785
        %1850 = vst [vmem:[#allocation2 + $0x18] sm:$0xff] %v1786
        %1851 = vst [vmem:[#allocation2 + $0x20] sm:$0xff] %v1787
        %1852 = vst [vmem:[#allocation2 + $0x28] sm:$0xff] %v1788
        %1853 = vst [vmem:[#allocation2 + $0x30] sm:$0xff] %v1789
        %1854 = vst [vmem:[#allocation2 + $0x38] sm:$0xff] %v1790
        %1855 = vst [vmem:[#allocation2 + $0x40] sm:$0xff] %v1791
        %1856 = vst [vmem:[#allocation2 + $0x48] sm:$0xff] %v1792
        %1857 = vst [vmem:[#allocation2 + $0x50] sm:$0xff] %v1793
        %1858 = vst [vmem:[#allocation2 + $0x58] sm:$0xff] %v1794
        %1859 = vst [vmem:[#allocation2 + $0x60] sm:$0xff] %v1795
        %1860 = vst [vmem:[#allocation2 + $0x68] sm:$0xff] %v1796
        %1861 = vst [vmem:[#allocation2 + $0x70] sm:$0xff] %v1797
        %1862 = vst [vmem:[#allocation2 + $0x78] sm:$0xff] %v1798
        %1863 = vst [vmem:[#allocation2 + $0x80] sm:$0xff] %v1799
        %1864 = vst [vmem:[#allocation2 + $0x88] sm:$0xff] %v1800
        %1865 = vst [vmem:[#allocation2 + $0x90] sm:$0xff] %v1801
        %1866 = vst [vmem:[#allocation2 + $0x98] sm:$0xff] %v1802
        %1867 = vst [vmem:[#allocation2 + $0xa0] sm:$0xff] %v1803
        %1868 = vst [vmem:[#allocation2 + $0xa8] sm:$0xff] %v1804
        %1869 = vst [vmem:[#allocation2 + $0xb0] sm:$0xff] %v1805
        %1870 = vst [vmem:[#allocation2 + $0xb8] sm:$0xff] %v1806
        %1871 = vst [vmem:[#allocation2 + $0xc0] sm:$0xff] %v1807
        %1872 = vst [vmem:[#allocation2 + $0xc8] sm:$0xff] %v1808
        %1873 = vst [vmem:[#allocation2 + $0xd0] sm:$0xff] %v1809
        %1874 = vst [vmem:[#allocation2 + $0xd8] sm:$0xff] %v1810
        %1875 = vst [vmem:[#allocation2 + $0xe0] sm:$0xff] %v1811
        %1876 = vst [vmem:[#allocation2 + $0xe8] sm:$0xff] %v1812
        %1877 = vst [vmem:[#allocation2 + $0xf0] sm:$0xff] %v1813
        %1878 = vst [vmem:[#allocation2 + $0xf8] sm:$0xff] %v1814
        %1879 = vst [vmem:[#allocation2 + $0x100] sm:$0xff] %v1815
        %1880 = vst [vmem:[#allocation2 + $0x108] sm:$0xff] %v1816
        %1881 = vst [vmem:[#allocation2 + $0x110] sm:$0xff] %v1817
        %1882 = vst [vmem:[#allocation2 + $0x118] sm:$0xff] %v1818
        %1883 = vst [vmem:[#allocation2 + $0x120] sm:$0xff] %v1819
        %1884 = vst [vmem:[#allocation2 + $0x128] sm:$0xff] %v1820
        %1885 = vst [vmem:[#allocation2 + $0x130] sm:$0xff] %v1821
        %1886 = vst [vmem:[#allocation2 + $0x138] sm:$0xff] %v1822
        %1887 = vst [vmem:[#allocation2 + $0x140] sm:$0xff] %v1823
        %1888 = vst [vmem:[#allocation2 + $0x148] sm:$0xff] %v1824
        %1889 = vst [vmem:[#allocation2 + $0x150] sm:$0xff] %v1825
        %1890 = vst [vmem:[#allocation2 + $0x158] sm:$0xff] %v1826
        %1891 = vst [vmem:[#allocation2 + $0x160] sm:$0xff] %v1827
        %1892 = vst [vmem:[#allocation2 + $0x168] sm:$0xff] %v1828
        %1893 = vst [vmem:[#allocation2 + $0x170] sm:$0xff] %v1829
        %1894 = vst [vmem:[#allocation2 + $0x178] sm:$0xff] %v1830
        %1895 = vst [vmem:[#allocation2 + $0x180] sm:$0xff] %v1831
        %1896 = vst [vmem:[#allocation2 + $0x188] sm:$0xff] %v1832
        %1897 = vst [vmem:[#allocation2 + $0x190] sm:$0xff] %v1833
        %1898 = vst [vmem:[#allocation2 + $0x198] sm:$0xff] %v1834
        %1899 = vst [vmem:[#allocation2 + $0x1a0] sm:$0xff] %v1835
        %1900 = vst [vmem:[#allocation2 + $0x1a8] sm:$0xff] %v1836
        %1901 = vst [vmem:[#allocation2 + $0x1b0] sm:$0xff] %v1837
        %1902 = vst [vmem:[#allocation2 + $0x1b8] sm:$0xff] %v1838
        %1903 = vst [vmem:[#allocation2 + $0x1c0] sm:$0xff] %v1839
        %1904 = vst [vmem:[#allocation2 + $0x1c8] sm:$0xff] %v1840
        %1905 = vst [vmem:[#allocation2 + $0x1d0] sm:$0xff] %v1841
        %1906 = vst [vmem:[#allocation2 + $0x1d8] sm:$0xff] %v1842
        %1907 = vst [vmem:[#allocation2 + $0x1e0] sm:$0xff] %v1843
        %1908 = vst [vmem:[#allocation2 + $0x1e8] sm:$0xff] %v1844
        %1909 = vst [vmem:[#allocation2 + $0x1f0] sm:$0xff] %v1845
        %1910 = vst [vmem:[#allocation2 + $0x1f8] sm:$0xff] %v1846
      $region53: #{tree_energy_loss.3} parent=47 // loop_footer
        %s1253 = sadd.s32 1, %s1249
      $region54: #{tree_energy_loss.3} parent=47 // loop_footer_branch
        %1248 = sbr.rel target = $region50
      $region55: #{tree_energy_loss.3} parent=47 // loop_exit
        _
      %v1911 = vld [vmem:[#allocation2] sm:$0xff]
      %v1912 = vld [vmem:[#allocation2 + $0x8] sm:$0xff]
      %v1913 = vld [vmem:[#allocation2 + $0x10] sm:$0xff]
      %v1914 = vld [vmem:[#allocation2 + $0x18] sm:$0xff]
      %v1915 = vld [vmem:[#allocation2 + $0x20] sm:$0xff]
      %v1916 = vld [vmem:[#allocation2 + $0x28] sm:$0xff]
      %v1917 = vld [vmem:[#allocation2 + $0x30] sm:$0xff]
      %v1918 = vld [vmem:[#allocation2 + $0x38] sm:$0xff]
      %v1919 = vld [vmem:[#allocation2 + $0x40] sm:$0xff]
      %v1920 = vld [vmem:[#allocation2 + $0x48] sm:$0xff]
      %v1921 = vld [vmem:[#allocation2 + $0x50] sm:$0xff]
      %v1922 = vld [vmem:[#allocation2 + $0x58] sm:$0xff]
      %v1923 = vld [vmem:[#allocation2 + $0x60] sm:$0xff]
      %v1924 = vld [vmem:[#allocation2 + $0x68] sm:$0xff]
      %v1925 = vld [vmem:[#allocation2 + $0x70] sm:$0xff]
      %v1926 = vld [vmem:[#allocation2 + $0x78] sm:$0xff]
      %v1927 = vld [vmem:[#allocation2 + $0x80] sm:$0xff]
      %v1928 = vld [vmem:[#allocation2 + $0x88] sm:$0xff]
      %v1929 = vld [vmem:[#allocation2 + $0x90] sm:$0xff]
      %v1930 = vld [vmem:[#allocation2 + $0x98] sm:$0xff]
      %v1931 = vld [vmem:[#allocation2 + $0xa0] sm:$0xff]
      %v1932 = vld [vmem:[#allocation2 + $0xa8] sm:$0xff]
      %v1933 = vld [vmem:[#allocation2 + $0xb0] sm:$0xff]
      %v1934 = vld [vmem:[#allocation2 + $0xb8] sm:$0xff]
      %v1935 = vld [vmem:[#allocation2 + $0xc0] sm:$0xff]
      %v1936 = vld [vmem:[#allocation2 + $0xc8] sm:$0xff]
      %v1937 = vld [vmem:[#allocation2 + $0xd0] sm:$0xff]
      %v1938 = vld [vmem:[#allocation2 + $0xd8] sm:$0xff]
      %v1939 = vld [vmem:[#allocation2 + $0xe0] sm:$0xff]
      %v1940 = vld [vmem:[#allocation2 + $0xe8] sm:$0xff]
      %v1941 = vld [vmem:[#allocation2 + $0xf0] sm:$0xff]
      %v1942 = vld [vmem:[#allocation2 + $0xf8] sm:$0xff]
      %v1943 = vld [vmem:[#allocation2 + $0x100] sm:$0xff]
      %v1944 = vld [vmem:[#allocation2 + $0x108] sm:$0xff]
      %v1945 = vld [vmem:[#allocation2 + $0x110] sm:$0xff]
      %v1946 = vld [vmem:[#allocation2 + $0x118] sm:$0xff]
      %v1947 = vld [vmem:[#allocation2 + $0x120] sm:$0xff]
      %v1948 = vld [vmem:[#allocation2 + $0x128] sm:$0xff]
      %v1949 = vld [vmem:[#allocation2 + $0x130] sm:$0xff]
      %v1950 = vld [vmem:[#allocation2 + $0x138] sm:$0xff]
      %v1951 = vld [vmem:[#allocation2 + $0x140] sm:$0xff]
      %v1952 = vld [vmem:[#allocation2 + $0x148] sm:$0xff]
      %v1953 = vld [vmem:[#allocation2 + $0x150] sm:$0xff]
      %v1954 = vld [vmem:[#allocation2 + $0x158] sm:$0xff]
      %v1955 = vld [vmem:[#allocation2 + $0x160] sm:$0xff]
      %v1956 = vld [vmem:[#allocation2 + $0x168] sm:$0xff]
      %v1957 = vld [vmem:[#allocation2 + $0x170] sm:$0xff]
      %v1958 = vld [vmem:[#allocation2 + $0x178] sm:$0xff]
      %v1959 = vld [vmem:[#allocation2 + $0x180] sm:$0xff]
      %v1960 = vld [vmem:[#allocation2 + $0x188] sm:$0xff]
      %v1961 = vld [vmem:[#allocation2 + $0x190] sm:$0xff]
      %v1962 = vld [vmem:[#allocation2 + $0x198] sm:$0xff]
      %v1963 = vld [vmem:[#allocation2 + $0x1a0] sm:$0xff]
      %v1964 = vld [vmem:[#allocation2 + $0x1a8] sm:$0xff]
      %v1965 = vld [vmem:[#allocation2 + $0x1b0] sm:$0xff]
      %v1966 = vld [vmem:[#allocation2 + $0x1b8] sm:$0xff]
      %v1967 = vld [vmem:[#allocation2 + $0x1c0] sm:$0xff]
      %v1968 = vld [vmem:[#allocation2 + $0x1c8] sm:$0xff]
      %v1969 = vld [vmem:[#allocation2 + $0x1d0] sm:$0xff]
      %v1970 = vld [vmem:[#allocation2 + $0x1d8] sm:$0xff]
      %v1971 = vld [vmem:[#allocation2 + $0x1e0] sm:$0xff]
      %v1972 = vld [vmem:[#allocation2 + $0x1e8] sm:$0xff]
      %v1973 = vld [vmem:[#allocation2 + $0x1f0] sm:$0xff]
      %v1974 = vld [vmem:[#allocation2 + $0x1f8] sm:$0xff]
      %v1975 = vsub.f32 0.0, %v1911
      %v1976 = vsub.f32 0.0, %v1912
      %v1977 = vsub.f32 0.0, %v1913
      %v1978 = vsub.f32 0.0, %v1914
      %v1979 = vsub.f32 0.0, %v1915
      %v1980 = vsub.f32 0.0, %v1916
      %v1981 = vsub.f32 0.0, %v1917
      %v1982 = vsub.f32 0.0, %v1918
      %v1983 = vsub.f32 0.0, %v1919
      %v1984 = vsub.f32 0.0, %v1920
      %v1985 = vsub.f32 0.0, %v1921
      %v1986 = vsub.f32 0.0, %v1922
      %v1987 = vsub.f32 0.0, %v1923
      %v1988 = vsub.f32 0.0, %v1924
      %v1989 = vsub.f32 0.0, %v1925
      %v1990 = vsub.f32 0.0, %v1926
      %v1991 = vsub.f32 0.0, %v1927
      %v1992 = vsub.f32 0.0, %v1928
      %v1993 = vsub.f32 0.0, %v1929
      %v1994 = vsub.f32 0.0, %v1930
      %v1995 = vsub.f32 0.0, %v1931
      %v1996 = vsub.f32 0.0, %v1932
      %v1997 = vsub.f32 0.0, %v1933
      %v1998 = vsub.f32 0.0, %v1934
      %v1999 = vsub.f32 0.0, %v1935
      %v2000 = vsub.f32 0.0, %v1936
      %v2001 = vsub.f32 0.0, %v1937
      %v2002 = vsub.f32 0.0, %v1938
      %v2003 = vsub.f32 0.0, %v1939
      %v2004 = vsub.f32 0.0, %v1940
      %v2005 = vsub.f32 0.0, %v1941
      %v2006 = vsub.f32 0.0, %v1942
      %v2007 = vsub.f32 0.0, %v1943
      %v2008 = vsub.f32 0.0, %v1944
      %v2009 = vsub.f32 0.0, %v1945
      %v2010 = vsub.f32 0.0, %v1946
      %v2011 = vsub.f32 0.0, %v1947
      %v2012 = vsub.f32 0.0, %v1948
      %v2013 = vsub.f32 0.0, %v1949
      %v2014 = vsub.f32 0.0, %v1950
      %v2015 = vsub.f32 0.0, %v1951
      %v2016 = vsub.f32 0.0, %v1952
      %v2017 = vsub.f32 0.0, %v1953
      %v2018 = vsub.f32 0.0, %v1954
      %v2019 = vsub.f32 0.0, %v1955
      %v2020 = vsub.f32 0.0, %v1956
      %v2021 = vsub.f32 0.0, %v1957
      %v2022 = vsub.f32 0.0, %v1958
      %v2023 = vsub.f32 0.0, %v1959
      %v2024 = vsub.f32 0.0, %v1960
      %v2025 = vsub.f32 0.0, %v1961
      %v2026 = vsub.f32 0.0, %v1962
      %v2027 = vsub.f32 0.0, %v1963
      %v2028 = vsub.f32 0.0, %v1964
      %v2029 = vsub.f32 0.0, %v1965
      %v2030 = vsub.f32 0.0, %v1966
      %v2031 = vsub.f32 0.0, %v1967
      %v2032 = vsub.f32 0.0, %v1968
      %v2033 = vsub.f32 0.0, %v1969
      %v2034 = vsub.f32 0.0, %v1970
      %v2035 = vsub.f32 0.0, %v1971
      %v2036 = vsub.f32 0.0, %v1972
      %v2037 = vsub.f32 0.0, %v1973
      %v2038 = vsub.f32 0.0, %v1974
      %v2039 = vmul.f32 %v1975, 1.442695
      %v2040 = vpow.pop %v2039
      %v2041 = vmul.f32 %v1976, 1.442695
      %v2042 = vpow.pop %v2041
      %v2043 = vmul.f32 %v1977, 1.442695
      %v2044 = vpow.pop %v2043
      %v2045 = vmul.f32 %v1978, 1.442695
      %v2046 = vpow.pop %v2045
      %v2047 = vmul.f32 %v1979, 1.442695
      %v2048 = vpow.pop %v2047
      %v2049 = vmul.f32 %v1980, 1.442695
      %v2050 = vpow.pop %v2049
      %v2051 = vmul.f32 %v1981, 1.442695
      %v2052 = vpow.pop %v2051
      %v2053 = vmul.f32 %v1982, 1.442695
      %v2054 = vpow.pop %v2053
      %v2055 = vmul.f32 %v1983, 1.442695
      %v2056 = vpow.pop %v2055
      %v2057 = vmul.f32 %v1984, 1.442695
      %v2058 = vpow.pop %v2057
      %v2059 = vmul.f32 %v1985, 1.442695
      %v2060 = vpow.pop %v2059
      %v2061 = vmul.f32 %v1986, 1.442695
      %v2062 = vpow.pop %v2061
      %v2063 = vmul.f32 %v1987, 1.442695
      %v2064 = vpow.pop %v2063
      %v2065 = vmul.f32 %v1988, 1.442695
      %v2066 = vpow.pop %v2065
      %v2067 = vmul.f32 %v1989, 1.442695
      %v2068 = vpow.pop %v2067
      %v2069 = vmul.f32 %v1990, 1.442695
      %v2070 = vpow.pop %v2069
      %v2071 = vmul.f32 %v1991, 1.442695
      %v2072 = vpow.pop %v2071
      %v2073 = vmul.f32 %v1992, 1.442695
      %v2074 = vpow.pop %v2073
      %v2075 = vmul.f32 %v1993, 1.442695
      %v2076 = vpow.pop %v2075
      %v2077 = vmul.f32 %v1994, 1.442695
      %v2078 = vpow.pop %v2077
      %v2079 = vmul.f32 %v1995, 1.442695
      %v2080 = vpow.pop %v2079
      %v2081 = vmul.f32 %v1996, 1.442695
      %v2082 = vpow.pop %v2081
      %v2083 = vmul.f32 %v1997, 1.442695
      %v2084 = vpow.pop %v2083
      %v2085 = vmul.f32 %v1998, 1.442695
      %v2086 = vpow.pop %v2085
      %v2087 = vmul.f32 %v1999, 1.442695
      %v2088 = vpow.pop %v2087
      %v2089 = vmul.f32 %v2000, 1.442695
      %v2090 = vpow.pop %v2089
      %v2091 = vmul.f32 %v2001, 1.442695
      %v2092 = vpow.pop %v2091
      %v2093 = vmul.f32 %v2002, 1.442695
      %v2094 = vpow.pop %v2093
      %v2095 = vmul.f32 %v2003, 1.442695
      %v2096 = vpow.pop %v2095
      %v2097 = vmul.f32 %v2004, 1.442695
      %v2098 = vpow.pop %v2097
      %v2099 = vmul.f32 %v2005, 1.442695
      %v2100 = vpow.pop %v2099
      %v2101 = vmul.f32 %v2006, 1.442695
      %v2102 = vpow.pop %v2101
      %v2103 = vmul.f32 %v2007, 1.442695
      %v2104 = vpow.pop %v2103
      %v2105 = vmul.f32 %v2008, 1.442695
      %v2106 = vpow.pop %v2105
      %v2107 = vmul.f32 %v2009, 1.442695
      %v2108 = vpow.pop %v2107
      %v2109 = vmul.f32 %v2010, 1.442695
      %v2110 = vpow.pop %v2109
      %v2111 = vmul.f32 %v2011, 1.442695
      %v2112 = vpow.pop %v2111
      %v2113 = vmul.f32 %v2012, 1.442695
      %v2114 = vpow.pop %v2113
      %v2115 = vmul.f32 %v2013, 1.442695
      %v2116 = vpow.pop %v2115
      %v2117 = vmul.f32 %v2014, 1.442695
      %v2118 = vpow.pop %v2117
      %v2119 = vmul.f32 %v2015, 1.442695
      %v2120 = vpow.pop %v2119
      %v2121 = vmul.f32 %v2016, 1.442695
      %v2122 = vpow.pop %v2121
      %v2123 = vmul.f32 %v2017, 1.442695
      %v2124 = vpow.pop %v2123
      %v2125 = vmul.f32 %v2018, 1.442695
      %v2126 = vpow.pop %v2125
      %v2127 = vmul.f32 %v2019, 1.442695
      %v2128 = vpow.pop %v2127
      %v2129 = vmul.f32 %v2020, 1.442695
      %v2130 = vpow.pop %v2129
      %v2131 = vmul.f32 %v2021, 1.442695
      %v2132 = vpow.pop %v2131
      %v2133 = vmul.f32 %v2022, 1.442695
      %v2134 = vpow.pop %v2133
      %v2135 = vmul.f32 %v2023, 1.442695
      %v2136 = vpow.pop %v2135
      %v2137 = vmul.f32 %v2024, 1.442695
      %v2138 = vpow.pop %v2137
      %v2139 = vmul.f32 %v2025, 1.442695
      %v2140 = vpow.pop %v2139
      %v2141 = vmul.f32 %v2026, 1.442695
      %v2142 = vpow.pop %v2141
      %v2143 = vmul.f32 %v2027, 1.442695
      %v2144 = vpow.pop %v2143
      %v2145 = vmul.f32 %v2028, 1.442695
      %v2146 = vpow.pop %v2145
      %v2147 = vmul.f32 %v2029, 1.442695
      %v2148 = vpow.pop %v2147
      %v2149 = vmul.f32 %v2030, 1.442695
      %v2150 = vpow.pop %v2149
      %v2151 = vmul.f32 %v2031, 1.442695
      %v2152 = vpow.pop %v2151
      %v2153 = vmul.f32 %v2032, 1.442695
      %v2154 = vpow.pop %v2153
      %v2155 = vmul.f32 %v2033, 1.442695
      %v2156 = vpow.pop %v2155
      %v2157 = vmul.f32 %v2034, 1.442695
      %v2158 = vpow.pop %v2157
      %v2159 = vmul.f32 %v2035, 1.442695
      %v2160 = vpow.pop %v2159
      %v2161 = vmul.f32 %v2036, 1.442695
      %v2162 = vpow.pop %v2161
      %v2163 = vmul.f32 %v2037, 1.442695
      %v2164 = vpow.pop %v2163
      %v2165 = vmul.f32 %v2038, 1.442695
      %v2166 = vpow.pop %v2165
      %v2167 = vpack.c.bf16 %v2044, %v2040
      %v2168 = vpack.c.bf16 %v2046, %v2042
      %v2169 = vpack.c.bf16 %v2052, %v2048
      %v2170 = vpack.c.bf16 %v2054, %v2050
      %v2171 = vpack.c.bf16 %v2060, %v2056
      %v2172 = vpack.c.bf16 %v2062, %v2058
      %v2173 = vpack.c.bf16 %v2068, %v2064
      %v2174 = vpack.c.bf16 %v2070, %v2066
      %v2175 = vpack.c.bf16 %v2076, %v2072
      %v2176 = vpack.c.bf16 %v2078, %v2074
      %v2177 = vpack.c.bf16 %v2084, %v2080
      %v2178 = vpack.c.bf16 %v2086, %v2082
      %v2179 = vpack.c.bf16 %v2092, %v2088
      %v2180 = vpack.c.bf16 %v2094, %v2090
      %v2181 = vpack.c.bf16 %v2100, %v2096
      %v2182 = vpack.c.bf16 %v2102, %v2098
      %v2183 = vpack.c.bf16 %v2108, %v2104
      %v2184 = vpack.c.bf16 %v2110, %v2106
      %v2185 = vpack.c.bf16 %v2116, %v2112
      %v2186 = vpack.c.bf16 %v2118, %v2114
      %v2187 = vpack.c.bf16 %v2124, %v2120
      %v2188 = vpack.c.bf16 %v2126, %v2122
      %v2189 = vpack.c.bf16 %v2132, %v2128
      %v2190 = vpack.c.bf16 %v2134, %v2130
      %v2191 = vpack.c.bf16 %v2140, %v2136
      %v2192 = vpack.c.bf16 %v2142, %v2138
      %v2193 = vpack.c.bf16 %v2148, %v2144
      %v2194 = vpack.c.bf16 %v2150, %v2146
      %v2195 = vpack.c.bf16 %v2156, %v2152
      %v2196 = vpack.c.bf16 %v2158, %v2154
      %v2197 = vpack.c.bf16 %v2164, %v2160
      %v2198 = vpack.c.bf16 %v2166, %v2162
      %v2199 = vld [vmem:[%s406] sm:$0xff]
      %v2201 = vcombine.high %v2199, %v2199
      %v2203 = vpack.c.bf16 %v2199, %v2199
      %v2204 = vpack.c.bf16 %v2201, %v2201
      %2205 = vmatprep.subr.bf16.mxu0 %v2182
      %2206 = vmatpush1.bf16.msra.mxu0 %v2181
      %2207 = vmatprep.subr.bf16.mxu0 %v2180
      %2208 = vmatpush1.bf16.msra.mxu0 %v2179
      %2209 = vmatprep.subr.bf16.mxu0 %v2178
      %2210 = vmatpush1.bf16.msra.mxu0 %v2177
      %2211 = vmatprep.subr.bf16.mxu0 %v2176
      %2212 = vmatpush1.bf16.msra.mxu0 %v2175
      %2213 = vmatprep.subr.bf16.mxu0 %v2174
      %2214 = vmatpush1.bf16.msra.mxu0 %v2173
      %2215 = vmatprep.subr.bf16.mxu0 %v2172
      %2216 = vmatpush1.bf16.msra.mxu0 %v2171
      %2217 = vmatprep.subr.bf16.mxu0 %v2170
      %2218 = vmatpush1.bf16.msra.mxu0 %v2169
      %2219 = vmatprep.subr.bf16.mxu0 %v2168
      %2220 = vmatpush1.bf16.msra.mxu0 %v2167
      %2221 = vmatprep.subr.bf16.mxu0 %v2198
      %2222 = vmatpush2.bf16.msra.mxu0 %v2197
      %2223 = vmatprep.subr.bf16.mxu0 %v2196
      %2224 = vmatpush2.bf16.msra.mxu0 %v2195
      %2225 = vmatprep.subr.bf16.mxu0 %v2194
      %2226 = vmatpush2.bf16.msra.mxu0 %v2193
      %2227 = vmatprep.subr.bf16.mxu0 %v2192
      %2228 = vmatpush2.bf16.msra.mxu0 %v2191
      %2229 = vmatprep.subr.bf16.mxu0 %v2190
      %2230 = vmatpush2.bf16.msra.mxu0 %v2189
      %2231 = vmatprep.subr.bf16.mxu0 %v2188
      %2232 = vmatpush2.bf16.msra.mxu0 %v2187
      %2233 = vmatprep.subr.bf16.mxu0 %v2186
      %2234 = vmatpush2.bf16.msra.mxu0 %v2185
      %2235 = vmatprep.subr.bf16.mxu0 %v2184
      %2236 = vmatpush2.bf16.msra.mxu0 %v2183
      %2237 = vmatprep.mubr.bf16.mxu0 %v2204
      %2238 = vmatmul.mubr.bf16.gmra.mxu0 %v2203
      %v2239 = vpop.f32.mrf.mxu0
      %v2240 = vadd.f32 0.0, %v2239
      %v2241 = vpop.f32.mrf.mxu0
      %v2242 = vadd.f32 0.0, %v2241
      %v2243 = vpop.f32.mrf.mxu0
      %v2244 = vpop.f32.mrf.mxu0
      %2245 = vdwg.mxu0
      %2246 = vmatprep.subr.bf16.mxu0 %v2182
      %2247 = vmatpush1.bf16.msra.mxu0 %v2181
      %2248 = vmatprep.subr.bf16.mxu0 %v2180
      %2249 = vmatpush1.bf16.msra.mxu0 %v2179
      %2250 = vmatprep.subr.bf16.mxu0 %v2178
      %2251 = vmatpush1.bf16.msra.mxu0 %v2177
      %2252 = vmatprep.subr.bf16.mxu0 %v2176
      %2253 = vmatpush1.bf16.msra.mxu0 %v2175
      %2254 = vmatprep.subr.bf16.mxu0 %v2174
      %2255 = vmatpush1.bf16.msra.mxu0 %v2173
      %2256 = vmatprep.subr.bf16.mxu0 %v2172
      %2257 = vmatpush1.bf16.msra.mxu0 %v2171
      %2258 = vmatprep.subr.bf16.mxu0 %v2170
      %2259 = vmatpush1.bf16.msra.mxu0 %v2169
      %2260 = vmatprep.subr.bf16.mxu0 %v2168
      %2261 = vmatpush1.bf16.msra.mxu0 %v2167
      %2262 = vmatprep.subr.bf16.mxu0 %v2198
      %2263 = vmatpush2.bf16.msra.mxu0 %v2197
      %2264 = vmatprep.subr.bf16.mxu0 %v2196
      %2265 = vmatpush2.bf16.msra.mxu0 %v2195
      %2266 = vmatprep.subr.bf16.mxu0 %v2194
      %2267 = vmatpush2.bf16.msra.mxu0 %v2193
      %2268 = vmatprep.subr.bf16.mxu0 %v2192
      %2269 = vmatpush2.bf16.msra.mxu0 %v2191
      %2270 = vmatprep.subr.bf16.mxu0 %v2190
      %2271 = vmatpush2.bf16.msra.mxu0 %v2189
      %2272 = vmatprep.subr.bf16.mxu0 %v2188
      %2273 = vmatpush2.bf16.msra.mxu0 %v2187
      %2274 = vmatprep.subr.bf16.mxu0 %v2186
      %2275 = vmatpush2.bf16.msra.mxu0 %v2185
      %2276 = vmatprep.subr.bf16.mxu0 %v2184
      %2277 = vmatpush2.bf16.msra.mxu0 %v2183
      %2278 = vmatprep.mubr.bf16.mxu0 1065369472
      %2279 = vmatmul.mubr.bf16.gmra.mxu0 1065369472
      %v2280 = vpop.f32.mrf.mxu0
      %v2281 = vadd.f32 0.0, %v2280
      %v2282 = vpop.f32.mrf.mxu0
      %v2283 = vadd.f32 0.0, %v2282
      %v2284 = vpop.f32.mrf.mxu0
      %v2285 = vpop.f32.mrf.mxu0
      %2286 = vdwg.mxu0
      %v2287 = vrcp.pop %v2281
      %v2288 = vrcp.pop %v2283
      %v2289 = vlaneseq
      %v2290 = vshrl.u32 %v2289, 7
      %v2291 = vsub.s32 0, %v2290
      %v2292 = vrot.slane %v2287, %v2291
      %v2293 = vlaneseq
      %v2294 = vshrl.u32 %v2293, 7
      %v2295 = vsub.s32 0, %v2294
      %v2296 = vrot.slane %v2288, %v2295
      %v2297 = vmul.f32 %v2240, %v2292
      %v2298 = vmul.f32 %v2242, %v2296
      %v2299 = vld [vmem:[%s411] sm:$0xff]
      %v2301 = vcombine.high %v2299, %v2299
      %vm2303 = vcmask 1043456
      %v2304 = vsel %vm2303, %v2299, -inf
      %v2305 = vrot.slane %v2304, 4
      %v2306 = vmax.f32 %v2304, %v2305
      %v2307 = vrot.slane %v2306, 2
      %v2308 = vmax.f32 %v2306, %v2307
      %v2309 = vrot.slane %v2308, 1
      %v2310 = vmax.f32 %v2308, %v2309
      %v2311 = vsel %vm2303, %v2301, -inf
      %v2312 = vrot.slane %v2311, 4
      %v2313 = vmax.f32 %v2311, %v2312
      %v2314 = vrot.slane %v2313, 2
      %v2315 = vmax.f32 %v2313, %v2314
      %v2316 = vrot.slane %v2315, 1
      %v2317 = vmax.f32 %v2315, %v2316
      %v2320 = vcombine.low %v2310, %v2317
      %v2322 = vsub.f32 %v2299, %v2320
      %v2323 = vmul.f32 %v2322, 1.442695
      %v2324 = vpow.pop %v2323
      %v2326 = vcombine.high %v2324, %v2324
      %v2328 = vsel %vm2303, %v2324, 0.0
      %v2329 = vrot.slane %v2328, 4
      %v2330 = vadd.f32 %v2328, %v2329
      %v2331 = vrot.slane %v2330, 2
      %v2332 = vadd.f32 %v2330, %v2331
      %v2333 = vrot.slane %v2332, 1
      %v2334 = vadd.f32 %v2332, %v2333
      %v2335 = vsel %vm2303, %v2326, 0.0
      %v2336 = vrot.slane %v2335, 4
      %v2337 = vadd.f32 %v2335, %v2336
      %v2338 = vrot.slane %v2337, 2
      %v2339 = vadd.f32 %v2337, %v2338
      %v2340 = vrot.slane %v2339, 1
      %v2341 = vadd.f32 %v2339, %v2340
      %v2342 = vrcp.pop %v2334
      %v2343 = vmul.f32 1.0, %v2342
      %v2344 = vrcp.pop %v2341
      %v2345 = vmul.f32 1.0, %v2344
      %v2348 = vcombine.low %v2343, %v2345
      %v2350 = vmul.f32 %v2324, %v2348
      %v2351 = vld [vmem:[%s415] sm:$0x3]
      %v2354 = vcombine.low %v2297, %v2298
      %v2356 = vsub.f32 %v2350, %v2354
      %v2357 = vand.u32 2147483647, %v2356
      %v2359 = vlaneseq
      %v2360 = vshrl.u32 %v2359, 7
      %v2361 = vsub.s32 0, %v2360
      %v2362 = vrot.slane %v2351, %v2361
      %v2363 = vlaneseq
      %v2364 = vshrl.u32 %v2363, 7
      %v2365 = vsub.s32 1, %v2364
      %v2366 = vrot.slane %v2351, %v2365
      %v2370 = vcombine.high %v2357, %v2357
      %v2372 = vmul.f32 %v2362, %v2357
      %v2373 = vmul.f32 %v2366, %v2370
      %v2374 = vsel %vm2303, %v2372, 0.0
      %v2375 = vsel %vm2303, %v2373, 0.0
      %v2376 = vadd.f32 %v2374, %v2375
      %2377 = vadd.xlane.f32.xlu0 %v2376
      %v2378 = vpop.xlane.xlu0 %2377
      %v2379 = vrot.slane %v2378, 4
      %v2380 = vadd.f32 %v2378, %v2379
      %v2381 = vrot.slane %v2380, 2
      %v2382 = vadd.f32 %v2380, %v2381
      %v2383 = vrot.slane %v2382, 1
      %v2384 = vadd.f32 %v2382, %v2383
      %s2385 = vtos %v2384
      %v2386 = vstv %s2385
      %v2387 = vadd.f32 %v2386, 0.0
      %vm2388 = vcmask 0
      %2389 = vst.msk [vmem:[%s418] sm:$0x1] %vm2388, %v2387
      %vm2390 = vcmask 1040384
      %v2391 = vsel %vm2390, %v2362, 0.0
      %v2392 = vsel %vm2390, %v2366, 0.0
      %v2393 = vadd.f32 %v2391, %v2392
      %2394 = vadd.xlane.f32.xlu0 %v2393
      %v2395 = vpop.xlane.xlu0 %2394
      %v2396 = vrot.slane %v2395, 4
      %v2397 = vadd.f32 %v2395, %v2396
      %v2398 = vrot.slane %v2397, 2
      %v2399 = vadd.f32 %v2397, %v2398
      %v2400 = vrot.slane %v2399, 1
      %v2401 = vadd.f32 %v2399, %v2400
      %s2402 = vtos %v2401
      %v2403 = vstv %s2402
      %v2404 = vadd.f32 %v2403, 0.0
      %2405 = vst.msk [vmem:[%s421] sm:$0x1] %vm2388, %v2404
      %p2406 = scmp.lt.s32.totalorder %s20, 1
      %s2407 = scalar_select %p2406, %s20, 1
      %s2408 = scalar_lea.vmem %s7, %s2407
      %p2409 = scmp.lt.s32.totalorder %s20, 1
      %s2410 = scalar_select %p2409, %s20, 1
      %s2411 = scalar_lea.vmem %s8, %s2410
      // Predicated region
      $region56: #{tree_energy_loss.3} parent=47 // pred_check
        %p2412 = pneg %p220
      $region57: #{tree_energy_loss.3} parent=47 // pred_check_branch
        %2414 = sbr.rel (%p2412) target = $region59
      $region58: #{tree_energy_loss.3} parent=47 // pred_region
        _
      $region59: #{tree_energy_loss.3} parent=47 // pred_fallthru
        _
      // Predicated region
      $region60: #{tree_energy_loss.3} parent=47 // pred_check
        %p2415 = pneg %p246
      $region61: #{tree_energy_loss.3} parent=47 // pred_check_branch
        %2417 = sbr.rel (%p2415) target = $region63
      $region62: #{tree_energy_loss.3} parent=47 // pred_region
        _
      $region63: #{tree_energy_loss.3} parent=47 // pred_fallthru
        _
    $region48: #{tree_energy_loss.3} parent=5 // pred_fallthru
      _
    %p2418 = scmp.le.s32.totalorder 2, %s15
    // Predicated region
    $region64: #{tree_energy_loss.3} parent=5 // pred_check
      %p2419 = pneg %p2418
    $region65: #{tree_energy_loss.3} parent=5 // pred_check_branch
      %2421 = sbr.rel (%p2419) target = $region67
    $region66: #{tree_energy_loss.3} parent=5 // pred_region
      %s2422 = ssub.s32 %s15, 2
      // Predicated region
      $region68: #{tree_energy_loss.3} parent=66 // pred_check
        %p2423 = pneg %p226
      $region69: #{tree_energy_loss.3} parent=66 // pred_check_branch
        %2425 = sbr.rel (%p2423) target = $region71
      $region70: #{tree_energy_loss.3} parent=66 // pred_region
        %p2426 = scmp.lt.s32.totalorder %s21, 1
        %s2427 = scalar_select %p2426, %s21, 1
        %s2428 = scalar_lea.vmem %s7, %s2427
      $region71: #{tree_energy_loss.3} parent=66 // pred_fallthru
        _
      // Predicated region
      $region72: #{tree_energy_loss.3} parent=66 // pred_check
        %p2429 = pneg %p252
      $region73: #{tree_energy_loss.3} parent=66 // pred_check_branch
        %2431 = sbr.rel (%p2429) target = $region75
      $region74: #{tree_energy_loss.3} parent=66 // pred_region
        %p2432 = scmp.lt.s32.totalorder %s21, 1
        %s2433 = scalar_select %p2432, %s21, 1
        %s2434 = scalar_lea.vmem %s8, %s2433
      $region75: #{tree_energy_loss.3} parent=66 // pred_fallthru
        _
    $region67: #{tree_energy_loss.3} parent=5 // pred_fallthru
      _
  $region6: #{tree_energy_loss.3} parent=0 // loop_footer
    %s19 = sadd.s32 1, %s15
  $region7: #{tree_energy_loss.3} parent=0 // loop_footer_branch
    %14 = sbr.rel target = $region3
  $region8: #{tree_energy_loss.3} parent=0 // loop_exit
    _

</llo_original>
